<compile_context>
chip_gen: v5e
topology: v5e:2x2
jax: 0.10.0
libtpu: 0.0.40
codegen_flags: <defaults>
</compile_context>

<pallas_src>
import math

import jax
import jax.numpy as jnp
from jax.experimental import pallas as pl
from jax.experimental.pallas import tpu as pltpu

# ---------------- scaled-down RoBERTa config (same structure as codebert) ----------
VOCAB = 100
PAD_ID = 1            # RoBERTa padding token id
H = 128               # hidden size   (768 in codebert-base)
NH = 4                # heads         (12 in codebert-base)
DH = H // NH
FF = 256              # intermediate  (3072 in codebert-base)
LAYERS = 2            # encoder layers (12 in codebert-base)
MAX_POS = 34
NUM_CLASSES = 2
LOGIT_PAD = 128       # lane-dense classifier output width (sliced to 2 outside)
LN_EPS = 1e-5
DROP_P = 0.3          # F.dropout(pooler, 0.3) -- default training=True, so applied

_LAYER_PARAM_ORDER = ("wqkv", "bqkv", "wo", "bo", "ln1_g", "ln1_b",
                      "w1", "b1", "w2", "b2", "ln2_g", "ln2_b")


# ---------------- small in-kernel helpers (all f32) --------------------------------
def _layer_norm(x, g, b):
    mu = jnp.mean(x, axis=-1, keepdims=True)
    var = jnp.mean(jnp.square(x - mu), axis=-1, keepdims=True)
    return (x - mu) * jax.lax.rsqrt(var + LN_EPS) * g + b


def _gelu(x):
    # TODO(synk): HF RoBERTa uses exact erf-GELU; tanh approximation used here.
    c = math.sqrt(2.0 / math.pi)
    return 0.5 * x * (1.0 + jnp.tanh(c * (x + 0.044715 * x * x * x)))


def _bf16(x):
    return x.astype(jnp.bfloat16)


# ---------------- single fused forward kernel --------------------------------------
def fused_forward_kernel(emb_ref, amask_ref, drop_ref,
                         ln0g_ref, ln0b_ref,
                         wqkv_ref, bqkv_ref, wo_ref, bo_ref,
                         ln1g_ref, ln1b_ref,
                         w1_ref, b1_ref, w2_ref, b2_ref, ln2g_ref, ln2b_ref,
                         fcw_ref, fcb_ref, cw_ref, cb_ref,
                         o_ref):
    B, S, Hdim = emb_ref.shape
    BS = B * S

    # --- embedding LayerNorm, rows flattened to (B*S, H) ---------------------------
    x = emb_ref[...].reshape(BS, Hdim)
    x = _layer_norm(x, ln0g_ref[...], ln0b_ref[...])

    amask = amask_ref[...]                       # (B, 1, S) additive mask, f32
    scale = 1.0 / math.sqrt(DH)

    # --- encoder layers (static unrolled; weights stacked on leading L axis) -------
    for l in range(LAYERS):
        xb = _bf16(x)
        # fused QKV projection: one lane-dense (BS,H) x (H,3H) MXU call
        qkv = jnp.dot(xb, wqkv_ref[l],
                      preferred_element_type=jnp.float32) + bqkv_ref[l]
        q = qkv[:, :Hdim] * scale                # fold score scale into q once
        k = qkv[:, Hdim:2 * Hdim]
        v = qkv[:, 2 * Hdim:]

        heads = []
        for h in range(NH):                      # static head loop, batched over B
            lo = h * DH
            qh = q[:, lo:lo + DH].reshape(B, S, DH)
            kh = k[:, lo:lo + DH].reshape(B, S, DH)
            vh = v[:, lo:lo + DH].reshape(B, S, DH)
            s = jnp.einsum('bqd,bkd->bqk', _bf16(qh), _bf16(kh),
                           preferred_element_type=jnp.float32)
            s = s + amask                        # f32 mask, broadcast over queries
            s = s - jnp.max(s, axis=-1, keepdims=True)
            p = jnp.exp(s)
            p = p * pl.reciprocal(jnp.sum(p, axis=-1, keepdims=True), approx=True)
            ctx_h = jnp.einsum('bqk,bkd->bqd', _bf16(p), _bf16(vh),
                               preferred_element_type=jnp.float32)
            heads.append(ctx_h.reshape(BS, DH))
        ctx = jnp.concatenate(heads, axis=-1)    # (B*S, H)

        attn = jnp.dot(_bf16(ctx), wo_ref[l],
                       preferred_element_type=jnp.float32) + bo_ref[l]
        h1 = _layer_norm(x + attn, ln1g_ref[l], ln1b_ref[l])

        ff = jnp.dot(_bf16(h1), w1_ref[l],
                     preferred_element_type=jnp.float32) + b1_ref[l]
        ff = _gelu(ff)
        ff = jnp.dot(_bf16(ff), w2_ref[l],
                     preferred_element_type=jnp.float32) + b2_ref[l]
        x = _layer_norm(h1 + ff, ln2g_ref[l], ln2b_ref[l])

    # --- CLS pooling + fc/ReLU + dropout + classifier (lane-dense output) ----------
    cls = x.reshape(B, S, Hdim)[:, 0, :]                              # (B, H)
    pool = jnp.dot(_bf16(cls), fcw_ref[...],
                   preferred_element_type=jnp.float32) + fcb_ref[...]
    pool = jnp.maximum(pool, 0.0)
    pool = pool * drop_ref[...]                  # pre-scaled keep mask (B, H)
    o_ref[...] = (jnp.dot(_bf16(pool), cw_ref[...],
                          preferred_element_type=jnp.float32) + cb_ref[...])


# ---------------- parameters --------------------------------------------------------
def init_params(key):
    keys = iter(jax.random.split(key, 64))

    def W(shape, dtype=jnp.bfloat16, scale=0.02):
        return (jax.random.normal(next(keys), shape, jnp.float32) * scale).astype(dtype)

    def zeros(shape):
        return jnp.zeros(shape, jnp.float32)

    def ones(shape):
        return jnp.ones(shape, jnp.float32)

    clf_w = jax.random.normal(next(keys), (H, NUM_CLASSES), jnp.float32) * 0.02
    clf_w_pad = (jnp.zeros((H, LOGIT_PAD), jnp.float32)
                 .at[:, :NUM_CLASSES].set(clf_w).astype(jnp.bfloat16))

    params = {
        "word_emb": W((VOCAB, H), jnp.float32),
        "pos_emb": W((MAX_POS, H), jnp.float32),
        "type_emb": W((1, H), jnp.float32),
        "emb_ln_g": ones((1, H)),
        "emb_ln_b": zeros((1, H)),
        # per-layer weights stacked along a leading LAYERS axis; QKV fused to (H, 3H)
        "layers": {
            "wqkv": W((LAYERS, H, 3 * H)), "bqkv": zeros((LAYERS, 1, 3 * H)),
            "wo": W((LAYERS, H, H)), "bo": zeros((LAYERS, 1, H)),
            "ln1_g": ones((LAYERS, 1, H)), "ln1_b": zeros((LAYERS, 1, H)),
            "w1": W((LAYERS, H, FF)), "b1": zeros((LAYERS, 1, FF)),
            "w2": W((LAYERS, FF, H)), "b2": zeros((LAYERS, 1, H)),
            "ln2_g": ones((LAYERS, 1, H)), "ln2_b": zeros((LAYERS, 1, H)),
        },
        "fc_w": W((H, H)),                     # nn.Linear(768, 768) analogue
        "fc_b": zeros((1, H)),
        "clf_w_pad": clf_w_pad,                # nn.Linear(768, 2), zero-padded to 128 lanes
        "clf_b_pad": zeros((1, LOGIT_PAD)),
    }
    return params


# ---------------- forward ------------------------------------------------------------
@jax.jit
def roberta_class_forward(params, input_ids, attention_mask, dropout_key):
    B, S = input_ids.shape

    # --- embeddings: gathers are glue, kept in plain JAX ---------------------------
    not_pad = (input_ids != PAD_ID).astype(jnp.int32)
    position_ids = jnp.cumsum(not_pad, axis=1) * not_pad + PAD_ID      # RoBERTa offset
    position_ids = jnp.minimum(position_ids, MAX_POS - 1)
    emb = (params["word_emb"][input_ids]
           + params["pos_emb"][position_ids]
           + params["type_emb"][0][None, None, :]).astype(jnp.float32)

    # additive attention mask, shape (B, 1, S): 0 for attend, -1e9 for pad (f32)
    amask = ((1.0 - attention_mask.astype(jnp.float32)) * -1e9)[:, None, :]

    # dropout keep-mask generated host-side (no TPU-only PRNG primitives in-kernel)
    keep = jax.random.bernoulli(dropout_key, 1.0 - DROP_P, (B, H))
    drop_scale = keep.astype(jnp.float32) * (1.0 / (1.0 - DROP_P))     # (B, H)

    lw = params["layers"]
    args = [emb, amask, drop_scale,
            params["emb_ln_g"], params["emb_ln_b"],
            *(lw[name] for name in _LAYER_PARAM_ORDER),
            params["fc_w"], params["fc_b"],
            params["clf_w_pad"], params["clf_b_pad"]]

    out_pad = pl.pallas_call(
        fused_forward_kernel,
        out_shape=jax.ShapeDtypeStruct((B, LOGIT_PAD), jnp.float32),
        in_specs=[pl.BlockSpec(memory_space=pltpu.MemorySpace.VMEM)] * len(args),
        out_specs=pl.BlockSpec(memory_space=pltpu.MemorySpace.VMEM),
    )(*args)

    return out_pad[:, :NUM_CLASSES]


# ---------------- demo ---------------------------------------------------------------
if __name__ == "__main__":
    key = jax.random.PRNGKey(0)
    pkey, ikey, dkey = jax.random.split(key, 3)
    params = init_params(pkey)

    B, S = 2, 8
    input_ids = jax.random.randint(ikey, (B, S), 2, VOCAB, dtype=jnp.int32)
    input_ids = input_ids.at[:, 0].set(0)             # <s> / CLS token id
    attention_mask = jnp.ones((B, S), jnp.int32)

    logits = roberta_class_forward(params, input_ids, attention_mask, dkey)
    jax.block_until_ready(logits)
    assert logits.shape == (B, NUM_CLASSES) and logits.dtype == jnp.float32
    assert bool(jnp.all(jnp.isfinite(logits)))
    print("KERNEL_OK")
</pallas_src>

<mosaic_0001>
module attributes {stable_mosaic.version = 11 : i64} {
  func.func @fused_forward_kernel(%arg0: memref<2x8x128xf32, #tpu.memory_space<vmem>>, %arg1: memref<2x1x8xf32, #tpu.memory_space<vmem>>, %arg2: memref<2x128xf32, #tpu.memory_space<vmem>>, %arg3: memref<1x128xf32, #tpu.memory_space<vmem>>, %arg4: memref<1x128xf32, #tpu.memory_space<vmem>>, %arg5: memref<2x128x384xbf16, #tpu.memory_space<vmem>>, %arg6: memref<2x1x384xf32, #tpu.memory_space<vmem>>, %arg7: memref<2x128x128xbf16, #tpu.memory_space<vmem>>, %arg8: memref<2x1x128xf32, #tpu.memory_space<vmem>>, %arg9: memref<2x1x128xf32, #tpu.memory_space<vmem>>, %arg10: memref<2x1x128xf32, #tpu.memory_space<vmem>>, %arg11: memref<2x128x256xbf16, #tpu.memory_space<vmem>>, %arg12: memref<2x1x256xf32, #tpu.memory_space<vmem>>, %arg13: memref<2x256x128xbf16, #tpu.memory_space<vmem>>, %arg14: memref<2x1x128xf32, #tpu.memory_space<vmem>>, %arg15: memref<2x1x128xf32, #tpu.memory_space<vmem>>, %arg16: memref<2x1x128xf32, #tpu.memory_space<vmem>>, %arg17: memref<128x128xbf16, #tpu.memory_space<vmem>>, %arg18: memref<1x128xf32, #tpu.memory_space<vmem>>, %arg19: memref<128x128xbf16, #tpu.memory_space<vmem>>, %arg20: memref<1x128xf32, #tpu.memory_space<vmem>>, %arg21: memref<2x128xf32, #tpu.memory_space<vmem>>) attributes {dimension_semantics = [], scalar_prefetch = 0 : i64, scratch_operands = 0 : i64, tpu.core_type = #tpu.core_type<tc>} {
    %c0 = arith.constant 0 : index
    %c0_0 = arith.constant 0 : index
    %c0_1 = arith.constant 0 : index
    %0 = vector.load %arg0[%c0, %c0_0, %c0_1] : memref<2x8x128xf32, #tpu.memory_space<vmem>>, vector<2x8x128xf32>
    %1 = vector.shape_cast %0 : vector<2x8x128xf32> to vector<16x128xf32>
    %c0_2 = arith.constant 0 : index
    %c0_3 = arith.constant 0 : index
    %2 = vector.load %arg3[%c0_2, %c0_3] : memref<1x128xf32, #tpu.memory_space<vmem>>, vector<1x128xf32>
    %c0_4 = arith.constant 0 : index
    %c0_5 = arith.constant 0 : index
    %3 = vector.load %arg4[%c0_4, %c0_5] : memref<1x128xf32, #tpu.memory_space<vmem>>, vector<1x128xf32>
    %cst = arith.constant dense<0.000000e+00> : vector<16xf32>
    %4 = vector.multi_reduction <add>, %1, %cst [1] : vector<16x128xf32> to vector<16xf32>
    %5 = vector.shape_cast %4 : vector<16xf32> to vector<16x1xf32>
    %cst_6 = arith.constant 1.280000e+02 : f32
    %6 = vector.broadcast %cst_6 : f32 to vector<16x1xf32>
    %7 = arith.divf %5, %6 : vector<16x1xf32>
    %8 = vector.broadcast %7 : vector<16x1xf32> to vector<16x128xf32>
    %9 = arith.subf %1, %8 : vector<16x128xf32>
    %10 = arith.mulf %9, %9 : vector<16x128xf32>
    %cst_7 = arith.constant dense<0.000000e+00> : vector<16xf32>
    %11 = vector.multi_reduction <add>, %10, %cst_7 [1] : vector<16x128xf32> to vector<16xf32>
    %12 = vector.shape_cast %11 : vector<16xf32> to vector<16x1xf32>
    %cst_8 = arith.constant 1.280000e+02 : f32
    %13 = vector.broadcast %cst_8 : f32 to vector<16x1xf32>
    %14 = arith.divf %12, %13 : vector<16x1xf32>
    %15 = vector.broadcast %7 : vector<16x1xf32> to vector<16x128xf32>
    %16 = arith.subf %1, %15 : vector<16x128xf32>
    %cst_9 = arith.constant 9.99999974E-6 : f32
    %17 = vector.broadcast %cst_9 : f32 to vector<16x1xf32>
    %18 = arith.addf %14, %17 : vector<16x1xf32>
    %19 = math.rsqrt %18 : vector<16x1xf32>
    %20 = vector.broadcast %19 : vector<16x1xf32> to vector<16x128xf32>
    %21 = arith.mulf %16, %20 : vector<16x128xf32>
    %22 = vector.broadcast %2 : vector<1x128xf32> to vector<16x128xf32>
    %23 = arith.mulf %21, %22 : vector<16x128xf32>
    %24 = vector.broadcast %3 : vector<1x128xf32> to vector<16x128xf32>
    %25 = arith.addf %23, %24 : vector<16x128xf32>
    %c0_10 = arith.constant 0 : index
    %c0_11 = arith.constant 0 : index
    %c0_12 = arith.constant 0 : index
    %26 = vector.load %arg1[%c0_10, %c0_11, %c0_12] : memref<2x1x8xf32, #tpu.memory_space<vmem>>, vector<2x1x8xf32>
    %27 = arith.truncf %25 : vector<16x128xf32> to vector<16x128xbf16>
    %c0_13 = arith.constant 0 : index
    %c0_14 = arith.constant 0 : index
    %c0_15 = arith.constant 0 : index
    %28 = vector.load %arg5[%c0_13, %c0_14, %c0_15] : memref<2x128x384xbf16, #tpu.memory_space<vmem>>, vector<1x128x384xbf16>
    %29 = vector.shape_cast %28 : vector<1x128x384xbf16> to vector<128x384xbf16>
    %cst_16 = arith.constant dense<0.000000e+00> : vector<16x384xf32>
    %30 = tpu.matmul %27, %29, %cst_16 {dimension_numbers = #tpu.dot_dimension_numbers<[1], [0], [0], [1], [0, 0, 1, 1], [], []>} : vector<16x128xbf16>, vector<128x384xbf16>, vector<16x384xf32> -> vector<16x384xf32>
    %c0_17 = arith.constant 0 : index
    %c0_18 = arith.constant 0 : index
    %c0_19 = arith.constant 0 : index
    %31 = vector.load %arg6[%c0_17, %c0_18, %c0_19] : memref<2x1x384xf32, #tpu.memory_space<vmem>>, vector<1x1x384xf32>
    %32 = vector.shape_cast %31 : vector<1x1x384xf32> to vector<1x384xf32>
    %33 = vector.broadcast %32 : vector<1x384xf32> to vector<16x384xf32>
    %34 = arith.addf %30, %33 : vector<16x384xf32>
    %35 = vector.extract_strided_slice %34 {offsets = [0, 0], sizes = [16, 128], strides = [1, 1]} : vector<16x384xf32> to vector<16x128xf32>
    %cst_20 = arith.constant 0.176776692 : f32
    %36 = vector.broadcast %cst_20 : f32 to vector<16x128xf32>
    %37 = arith.mulf %35, %36 : vector<16x128xf32>
    %38 = vector.extract_strided_slice %34 {offsets = [0, 128], sizes = [16, 128], strides = [1, 1]} : vector<16x384xf32> to vector<16x128xf32>
    %39 = vector.extract_strided_slice %34 {offsets = [0, 256], sizes = [16, 128], strides = [1, 1]} : vector<16x384xf32> to vector<16x128xf32>
    %40 = vector.extract_strided_slice %37 {offsets = [0, 0], sizes = [16, 32], strides = [1, 1]} : vector<16x128xf32> to vector<16x32xf32>
    %41 = vector.shape_cast %40 : vector<16x32xf32> to vector<2x8x32xf32>
    %42 = vector.extract_strided_slice %38 {offsets = [0, 0], sizes = [16, 32], strides = [1, 1]} : vector<16x128xf32> to vector<16x32xf32>
    %43 = vector.shape_cast %42 : vector<16x32xf32> to vector<2x8x32xf32>
    %44 = vector.extract_strided_slice %39 {offsets = [0, 0], sizes = [16, 32], strides = [1, 1]} : vector<16x128xf32> to vector<16x32xf32>
    %45 = vector.shape_cast %44 : vector<16x32xf32> to vector<2x8x32xf32>
    %46 = arith.truncf %41 : vector<2x8x32xf32> to vector<2x8x32xbf16>
    %47 = arith.truncf %43 : vector<2x8x32xf32> to vector<2x8x32xbf16>
    "tpu.trace_start"() <{level = 10 : i32, message = "bqd,bkd->bqk"}> : () -> ()
    %cst_21 = arith.constant dense<0.000000e+00> : vector<2x8x8xf32>
    %48 = tpu.matmul %46, %47, %cst_21 {dimension_numbers = #tpu.dot_dimension_numbers<[2], [2], [1], [1], [0, 0, 0, 1, 1, 1], [0], [0]>} : vector<2x8x32xbf16>, vector<2x8x32xbf16>, vector<2x8x8xf32> -> vector<2x8x8xf32>
    "tpu.trace_stop"() : () -> ()
    %49 = vector.broadcast %26 : vector<2x1x8xf32> to vector<2x8x8xf32>
    %50 = arith.addf %48, %49 : vector<2x8x8xf32>
    %cst_22 = arith.constant dense<0xFF800000> : vector<2x8xf32>
    %51 = vector.multi_reduction <maximumf>, %50, %cst_22 [2] : vector<2x8x8xf32> to vector<2x8xf32>
    %52 = vector.shape_cast %51 : vector<2x8xf32> to vector<2x8x1xf32>
    %53 = vector.broadcast %52 : vector<2x8x1xf32> to vector<2x8x8xf32>
    %54 = arith.subf %50, %53 : vector<2x8x8xf32>
    %55 = math.exp %54 : vector<2x8x8xf32>
    %cst_23 = arith.constant dense<0.000000e+00> : vector<2x8xf32>
    %56 = vector.multi_reduction <add>, %55, %cst_23 [2] : vector<2x8x8xf32> to vector<2x8xf32>
    %57 = vector.shape_cast %56 : vector<2x8xf32> to vector<2x8x1xf32>
    %58 = tpu.reciprocal %57 {approx = true} : vector<2x8x1xf32> -> vector<2x8x1xf32>
    %59 = vector.broadcast %58 : vector<2x8x1xf32> to vector<2x8x8xf32>
    %60 = arith.mulf %55, %59 : vector<2x8x8xf32>
    %61 = arith.truncf %60 : vector<2x8x8xf32> to vector<2x8x8xbf16>
    %62 = arith.truncf %45 : vector<2x8x32xf32> to vector<2x8x32xbf16>
    "tpu.trace_start"() <{level = 10 : i32, message = "bqk,bkd->bqd"}> : () -> ()
    %cst_24 = arith.constant dense<0.000000e+00> : vector<2x8x32xf32>
    %63 = tpu.matmul %61, %62, %cst_24 {dimension_numbers = #tpu.dot_dimension_numbers<[2], [1], [1], [2], [0, 0, 0, 1, 1, 2], [0], [0]>} : vector<2x8x8xbf16>, vector<2x8x32xbf16>, vector<2x8x32xf32> -> vector<2x8x32xf32>
    "tpu.trace_stop"() : () -> ()
    %64 = vector.shape_cast %63 : vector<2x8x32xf32> to vector<16x32xf32>
    %65 = vector.extract_strided_slice %37 {offsets = [0, 32], sizes = [16, 32], strides = [1, 1]} : vector<16x128xf32> to vector<16x32xf32>
    %66 = vector.shape_cast %65 : vector<16x32xf32> to vector<2x8x32xf32>
    %67 = vector.extract_strided_slice %38 {offsets = [0, 32], sizes = [16, 32], strides = [1, 1]} : vector<16x128xf32> to vector<16x32xf32>
    %68 = vector.shape_cast %67 : vector<16x32xf32> to vector<2x8x32xf32>
    %69 = vector.extract_strided_slice %39 {offsets = [0, 32], sizes = [16, 32], strides = [1, 1]} : vector<16x128xf32> to vector<16x32xf32>
    %70 = vector.shape_cast %69 : vector<16x32xf32> to vector<2x8x32xf32>
    %71 = arith.truncf %66 : vector<2x8x32xf32> to vector<2x8x32xbf16>
    %72 = arith.truncf %68 : vector<2x8x32xf32> to vector<2x8x32xbf16>
    "tpu.trace_start"() <{level = 10 : i32, message = "bqd,bkd->bqk"}> : () -> ()
    %cst_25 = arith.constant dense<0.000000e+00> : vector<2x8x8xf32>
    %73 = tpu.matmul %71, %72, %cst_25 {dimension_numbers = #tpu.dot_dimension_numbers<[2], [2], [1], [1], [0, 0, 0, 1, 1, 1], [0], [0]>} : vector<2x8x32xbf16>, vector<2x8x32xbf16>, vector<2x8x8xf32> -> vector<2x8x8xf32>
    "tpu.trace_stop"() : () -> ()
    %74 = vector.broadcast %26 : vector<2x1x8xf32> to vector<2x8x8xf32>
    %75 = arith.addf %73, %74 : vector<2x8x8xf32>
    %cst_26 = arith.constant dense<0xFF800000> : vector<2x8xf32>
    %76 = vector.multi_reduction <maximumf>, %75, %cst_26 [2] : vector<2x8x8xf32> to vector<2x8xf32>
    %77 = vector.shape_cast %76 : vector<2x8xf32> to vector<2x8x1xf32>
    %78 = vector.broadcast %77 : vector<2x8x1xf32> to vector<2x8x8xf32>
    %79 = arith.subf %75, %78 : vector<2x8x8xf32>
    %80 = math.exp %79 : vector<2x8x8xf32>
    %cst_27 = arith.constant dense<0.000000e+00> : vector<2x8xf32>
    %81 = vector.multi_reduction <add>, %80, %cst_27 [2] : vector<2x8x8xf32> to vector<2x8xf32>
    %82 = vector.shape_cast %81 : vector<2x8xf32> to vector<2x8x1xf32>
    %83 = tpu.reciprocal %82 {approx = true} : vector<2x8x1xf32> -> vector<2x8x1xf32>
    %84 = vector.broadcast %83 : vector<2x8x1xf32> to vector<2x8x8xf32>
    %85 = arith.mulf %80, %84 : vector<2x8x8xf32>
    %86 = arith.truncf %85 : vector<2x8x8xf32> to vector<2x8x8xbf16>
    %87 = arith.truncf %70 : vector<2x8x32xf32> to vector<2x8x32xbf16>
    "tpu.trace_start"() <{level = 10 : i32, message = "bqk,bkd->bqd"}> : () -> ()
    %cst_28 = arith.constant dense<0.000000e+00> : vector<2x8x32xf32>
    %88 = tpu.matmul %86, %87, %cst_28 {dimension_numbers = #tpu.dot_dimension_numbers<[2], [1], [1], [2], [0, 0, 0, 1, 1, 2], [0], [0]>} : vector<2x8x8xbf16>, vector<2x8x32xbf16>, vector<2x8x32xf32> -> vector<2x8x32xf32>
    "tpu.trace_stop"() : () -> ()
    %89 = vector.shape_cast %88 : vector<2x8x32xf32> to vector<16x32xf32>
    %90 = vector.extract_strided_slice %37 {offsets = [0, 64], sizes = [16, 32], strides = [1, 1]} : vector<16x128xf32> to vector<16x32xf32>
    %91 = vector.shape_cast %90 : vector<16x32xf32> to vector<2x8x32xf32>
    %92 = vector.extract_strided_slice %38 {offsets = [0, 64], sizes = [16, 32], strides = [1, 1]} : vector<16x128xf32> to vector<16x32xf32>
    %93 = vector.shape_cast %92 : vector<16x32xf32> to vector<2x8x32xf32>
    %94 = vector.extract_strided_slice %39 {offsets = [0, 64], sizes = [16, 32], strides = [1, 1]} : vector<16x128xf32> to vector<16x32xf32>
    %95 = vector.shape_cast %94 : vector<16x32xf32> to vector<2x8x32xf32>
    %96 = arith.truncf %91 : vector<2x8x32xf32> to vector<2x8x32xbf16>
    %97 = arith.truncf %93 : vector<2x8x32xf32> to vector<2x8x32xbf16>
    "tpu.trace_start"() <{level = 10 : i32, message = "bqd,bkd->bqk"}> : () -> ()
    %cst_29 = arith.constant dense<0.000000e+00> : vector<2x8x8xf32>
    %98 = tpu.matmul %96, %97, %cst_29 {dimension_numbers = #tpu.dot_dimension_numbers<[2], [2], [1], [1], [0, 0, 0, 1, 1, 1], [0], [0]>} : vector<2x8x32xbf16>, vector<2x8x32xbf16>, vector<2x8x8xf32> -> vector<2x8x8xf32>
    "tpu.trace_stop"() : () -> ()
    %99 = vector.broadcast %26 : vector<2x1x8xf32> to vector<2x8x8xf32>
    %100 = arith.addf %98, %99 : vector<2x8x8xf32>
    %cst_30 = arith.constant dense<0xFF800000> : vector<2x8xf32>
    %101 = vector.multi_reduction <maximumf>, %100, %cst_30 [2] : vector<2x8x8xf32> to vector<2x8xf32>
    %102 = vector.shape_cast %101 : vector<2x8xf32> to vector<2x8x1xf32>
    %103 = vector.broadcast %102 : vector<2x8x1xf32> to vector<2x8x8xf32>
    %104 = arith.subf %100, %103 : vector<2x8x8xf32>
    %105 = math.exp %104 : vector<2x8x8xf32>
    %cst_31 = arith.constant dense<0.000000e+00> : vector<2x8xf32>
    %106 = vector.multi_reduction <add>, %105, %cst_31 [2] : vector<2x8x8xf32> to vector<2x8xf32>
    %107 = vector.shape_cast %106 : vector<2x8xf32> to vector<2x8x1xf32>
    %108 = tpu.reciprocal %107 {approx = true} : vector<2x8x1xf32> -> vector<2x8x1xf32>
    %109 = vector.broadcast %108 : vector<2x8x1xf32> to vector<2x8x8xf32>
    %110 = arith.mulf %105, %109 : vector<2x8x8xf32>
    %111 = arith.truncf %110 : vector<2x8x8xf32> to vector<2x8x8xbf16>
    %112 = arith.truncf %95 : vector<2x8x32xf32> to vector<2x8x32xbf16>
    "tpu.trace_start"() <{level = 10 : i32, message = "bqk,bkd->bqd"}> : () -> ()
    %cst_32 = arith.constant dense<0.000000e+00> : vector<2x8x32xf32>
    %113 = tpu.matmul %111, %112, %cst_32 {dimension_numbers = #tpu.dot_dimension_numbers<[2], [1], [1], [2], [0, 0, 0, 1, 1, 2], [0], [0]>} : vector<2x8x8xbf16>, vector<2x8x32xbf16>, vector<2x8x32xf32> -> vector<2x8x32xf32>
    "tpu.trace_stop"() : () -> ()
    %114 = vector.shape_cast %113 : vector<2x8x32xf32> to vector<16x32xf32>
    %115 = vector.extract_strided_slice %37 {offsets = [0, 96], sizes = [16, 32], strides = [1, 1]} : vector<16x128xf32> to vector<16x32xf32>
    %116 = vector.shape_cast %115 : vector<16x32xf32> to vector<2x8x32xf32>
    %117 = vector.extract_strided_slice %38 {offsets = [0, 96], sizes = [16, 32], strides = [1, 1]} : vector<16x128xf32> to vector<16x32xf32>
    %118 = vector.shape_cast %117 : vector<16x32xf32> to vector<2x8x32xf32>
    %119 = vector.extract_strided_slice %39 {offsets = [0, 96], sizes = [16, 32], strides = [1, 1]} : vector<16x128xf32> to vector<16x32xf32>
    %120 = vector.shape_cast %119 : vector<16x32xf32> to vector<2x8x32xf32>
    %121 = arith.truncf %116 : vector<2x8x32xf32> to vector<2x8x32xbf16>
    %122 = arith.truncf %118 : vector<2x8x32xf32> to vector<2x8x32xbf16>
    "tpu.trace_start"() <{level = 10 : i32, message = "bqd,bkd->bqk"}> : () -> ()
    %cst_33 = arith.constant dense<0.000000e+00> : vector<2x8x8xf32>
    %123 = tpu.matmul %121, %122, %cst_33 {dimension_numbers = #tpu.dot_dimension_numbers<[2], [2], [1], [1], [0, 0, 0, 1, 1, 1], [0], [0]>} : vector<2x8x32xbf16>, vector<2x8x32xbf16>, vector<2x8x8xf32> -> vector<2x8x8xf32>
    "tpu.trace_stop"() : () -> ()
    %124 = vector.broadcast %26 : vector<2x1x8xf32> to vector<2x8x8xf32>
    %125 = arith.addf %123, %124 : vector<2x8x8xf32>
    %cst_34 = arith.constant dense<0xFF800000> : vector<2x8xf32>
    %126 = vector.multi_reduction <maximumf>, %125, %cst_34 [2] : vector<2x8x8xf32> to vector<2x8xf32>
    %127 = vector.shape_cast %126 : vector<2x8xf32> to vector<2x8x1xf32>
    %128 = vector.broadcast %127 : vector<2x8x1xf32> to vector<2x8x8xf32>
    %129 = arith.subf %125, %128 : vector<2x8x8xf32>
    %130 = math.exp %129 : vector<2x8x8xf32>
    %cst_35 = arith.constant dense<0.000000e+00> : vector<2x8xf32>
    %131 = vector.multi_reduction <add>, %130, %cst_35 [2] : vector<2x8x8xf32> to vector<2x8xf32>
    %132 = vector.shape_cast %131 : vector<2x8xf32> to vector<2x8x1xf32>
    %133 = tpu.reciprocal %132 {approx = true} : vector<2x8x1xf32> -> vector<2x8x1xf32>
    %134 = vector.broadcast %133 : vector<2x8x1xf32> to vector<2x8x8xf32>
    %135 = arith.mulf %130, %134 : vector<2x8x8xf32>
    %136 = arith.truncf %135 : vector<2x8x8xf32> to vector<2x8x8xbf16>
    %137 = arith.truncf %120 : vector<2x8x32xf32> to vector<2x8x32xbf16>
    "tpu.trace_start"() <{level = 10 : i32, message = "bqk,bkd->bqd"}> : () -> ()
    %cst_36 = arith.constant dense<0.000000e+00> : vector<2x8x32xf32>
    %138 = tpu.matmul %136, %137, %cst_36 {dimension_numbers = #tpu.dot_dimension_numbers<[2], [1], [1], [2], [0, 0, 0, 1, 1, 2], [0], [0]>} : vector<2x8x8xbf16>, vector<2x8x32xbf16>, vector<2x8x32xf32> -> vector<2x8x32xf32>
    "tpu.trace_stop"() : () -> ()
    %139 = vector.shape_cast %138 : vector<2x8x32xf32> to vector<16x32xf32>
    %140 = tpu.concatenate %64, %89, %114, %139 in 1 : vector<16x32xf32>, vector<16x32xf32>, vector<16x32xf32>, vector<16x32xf32> -> vector<16x128xf32>
    %141 = arith.truncf %140 : vector<16x128xf32> to vector<16x128xbf16>
    %c0_37 = arith.constant 0 : index
    %c0_38 = arith.constant 0 : index
    %c0_39 = arith.constant 0 : index
    %142 = vector.load %arg7[%c0_37, %c0_38, %c0_39] : memref<2x128x128xbf16, #tpu.memory_space<vmem>>, vector<1x128x128xbf16>
    %143 = vector.shape_cast %142 : vector<1x128x128xbf16> to vector<128x128xbf16>
    %cst_40 = arith.constant dense<0.000000e+00> : vector<16x128xf32>
    %144 = tpu.matmul %141, %143, %cst_40 {dimension_numbers = #tpu.dot_dimension_numbers<[1], [0], [0], [1], [0, 0, 1, 1], [], []>} : vector<16x128xbf16>, vector<128x128xbf16>, vector<16x128xf32> -> vector<16x128xf32>
    %c0_41 = arith.constant 0 : index
    %c0_42 = arith.constant 0 : index
    %c0_43 = arith.constant 0 : index
    %145 = vector.load %arg8[%c0_41, %c0_42, %c0_43] : memref<2x1x128xf32, #tpu.memory_space<vmem>>, vector<1x1x128xf32>
    %146 = vector.shape_cast %145 : vector<1x1x128xf32> to vector<1x128xf32>
    %147 = vector.broadcast %146 : vector<1x128xf32> to vector<16x128xf32>
    %148 = arith.addf %144, %147 : vector<16x128xf32>
    %149 = arith.addf %25, %148 : vector<16x128xf32>
    %c0_44 = arith.constant 0 : index
    %c0_45 = arith.constant 0 : index
    %c0_46 = arith.constant 0 : index
    %150 = vector.load %arg9[%c0_44, %c0_45, %c0_46] : memref<2x1x128xf32, #tpu.memory_space<vmem>>, vector<1x1x128xf32>
    %151 = vector.shape_cast %150 : vector<1x1x128xf32> to vector<1x128xf32>
    %c0_47 = arith.constant 0 : index
    %c0_48 = arith.constant 0 : index
    %c0_49 = arith.constant 0 : index
    %152 = vector.load %arg10[%c0_47, %c0_48, %c0_49] : memref<2x1x128xf32, #tpu.memory_space<vmem>>, vector<1x1x128xf32>
    %153 = vector.shape_cast %152 : vector<1x1x128xf32> to vector<1x128xf32>
    %cst_50 = arith.constant dense<0.000000e+00> : vector<16xf32>
    %154 = vector.multi_reduction <add>, %149, %cst_50 [1] : vector<16x128xf32> to vector<16xf32>
    %155 = vector.shape_cast %154 : vector<16xf32> to vector<16x1xf32>
    %cst_51 = arith.constant 1.280000e+02 : f32
    %156 = vector.broadcast %cst_51 : f32 to vector<16x1xf32>
    %157 = arith.divf %155, %156 : vector<16x1xf32>
    %158 = vector.broadcast %157 : vector<16x1xf32> to vector<16x128xf32>
    %159 = arith.subf %149, %158 : vector<16x128xf32>
    %160 = arith.mulf %159, %159 : vector<16x128xf32>
    %cst_52 = arith.constant dense<0.000000e+00> : vector<16xf32>
    %161 = vector.multi_reduction <add>, %160, %cst_52 [1] : vector<16x128xf32> to vector<16xf32>
    %162 = vector.shape_cast %161 : vector<16xf32> to vector<16x1xf32>
    %cst_53 = arith.constant 1.280000e+02 : f32
    %163 = vector.broadcast %cst_53 : f32 to vector<16x1xf32>
    %164 = arith.divf %162, %163 : vector<16x1xf32>
    %165 = vector.broadcast %157 : vector<16x1xf32> to vector<16x128xf32>
    %166 = arith.subf %149, %165 : vector<16x128xf32>
    %cst_54 = arith.constant 9.99999974E-6 : f32
    %167 = vector.broadcast %cst_54 : f32 to vector<16x1xf32>
    %168 = arith.addf %164, %167 : vector<16x1xf32>
    %169 = math.rsqrt %168 : vector<16x1xf32>
    %170 = vector.broadcast %169 : vector<16x1xf32> to vector<16x128xf32>
    %171 = arith.mulf %166, %170 : vector<16x128xf32>
    %172 = vector.broadcast %151 : vector<1x128xf32> to vector<16x128xf32>
    %173 = arith.mulf %171, %172 : vector<16x128xf32>
    %174 = vector.broadcast %153 : vector<1x128xf32> to vector<16x128xf32>
    %175 = arith.addf %173, %174 : vector<16x128xf32>
    %176 = arith.truncf %175 : vector<16x128xf32> to vector<16x128xbf16>
    %c0_55 = arith.constant 0 : index
    %c0_56 = arith.constant 0 : index
    %c0_57 = arith.constant 0 : index
    %177 = vector.load %arg11[%c0_55, %c0_56, %c0_57] : memref<2x128x256xbf16, #tpu.memory_space<vmem>>, vector<1x128x256xbf16>
    %178 = vector.shape_cast %177 : vector<1x128x256xbf16> to vector<128x256xbf16>
    %cst_58 = arith.constant dense<0.000000e+00> : vector<16x256xf32>
    %179 = tpu.matmul %176, %178, %cst_58 {dimension_numbers = #tpu.dot_dimension_numbers<[1], [0], [0], [1], [0, 0, 1, 1], [], []>} : vector<16x128xbf16>, vector<128x256xbf16>, vector<16x256xf32> -> vector<16x256xf32>
    %c0_59 = arith.constant 0 : index
    %c0_60 = arith.constant 0 : index
    %c0_61 = arith.constant 0 : index
    %180 = vector.load %arg12[%c0_59, %c0_60, %c0_61] : memref<2x1x256xf32, #tpu.memory_space<vmem>>, vector<1x1x256xf32>
    %181 = vector.shape_cast %180 : vector<1x1x256xf32> to vector<1x256xf32>
    %182 = vector.broadcast %181 : vector<1x256xf32> to vector<16x256xf32>
    %183 = arith.addf %179, %182 : vector<16x256xf32>
    %cst_62 = arith.constant 5.000000e-01 : f32
    %184 = vector.broadcast %cst_62 : f32 to vector<16x256xf32>
    %185 = arith.mulf %184, %183 : vector<16x256xf32>
    %cst_63 = arith.constant 4.471500e-02 : f32
    %186 = vector.broadcast %cst_63 : f32 to vector<16x256xf32>
    %187 = arith.mulf %186, %183 : vector<16x256xf32>
    %188 = arith.mulf %187, %183 : vector<16x256xf32>
    %189 = arith.mulf %188, %183 : vector<16x256xf32>
    %190 = arith.addf %183, %189 : vector<16x256xf32>
    %cst_64 = arith.constant 0.797884583 : f32
    %191 = vector.broadcast %cst_64 : f32 to vector<16x256xf32>
    %192 = arith.mulf %191, %190 : vector<16x256xf32>
    %193 = math.tanh %192 : vector<16x256xf32>
    %cst_65 = arith.constant 1.000000e+00 : f32
    %194 = vector.broadcast %cst_65 : f32 to vector<16x256xf32>
    %195 = arith.addf %194, %193 : vector<16x256xf32>
    %196 = arith.mulf %185, %195 : vector<16x256xf32>
    %197 = arith.truncf %196 : vector<16x256xf32> to vector<16x256xbf16>
    %c0_66 = arith.constant 0 : index
    %c0_67 = arith.constant 0 : index
    %c0_68 = arith.constant 0 : index
    %198 = vector.load %arg13[%c0_66, %c0_67, %c0_68] : memref<2x256x128xbf16, #tpu.memory_space<vmem>>, vector<1x256x128xbf16>
    %199 = vector.shape_cast %198 : vector<1x256x128xbf16> to vector<256x128xbf16>
    %cst_69 = arith.constant dense<0.000000e+00> : vector<16x128xf32>
    %200 = tpu.matmul %197, %199, %cst_69 {dimension_numbers = #tpu.dot_dimension_numbers<[1], [0], [0], [1], [0, 0, 1, 1], [], []>} : vector<16x256xbf16>, vector<256x128xbf16>, vector<16x128xf32> -> vector<16x128xf32>
    %c0_70 = arith.constant 0 : index
    %c0_71 = arith.constant 0 : index
    %c0_72 = arith.constant 0 : index
    %201 = vector.load %arg14[%c0_70, %c0_71, %c0_72] : memref<2x1x128xf32, #tpu.memory_space<vmem>>, vector<1x1x128xf32>
    %202 = vector.shape_cast %201 : vector<1x1x128xf32> to vector<1x128xf32>
    %203 = vector.broadcast %202 : vector<1x128xf32> to vector<16x128xf32>
    %204 = arith.addf %200, %203 : vector<16x128xf32>
    %205 = arith.addf %175, %204 : vector<16x128xf32>
    %c0_73 = arith.constant 0 : index
    %c0_74 = arith.constant 0 : index
    %c0_75 = arith.constant 0 : index
    %206 = vector.load %arg15[%c0_73, %c0_74, %c0_75] : memref<2x1x128xf32, #tpu.memory_space<vmem>>, vector<1x1x128xf32>
    %207 = vector.shape_cast %206 : vector<1x1x128xf32> to vector<1x128xf32>
    %c0_76 = arith.constant 0 : index
    %c0_77 = arith.constant 0 : index
    %c0_78 = arith.constant 0 : index
    %208 = vector.load %arg16[%c0_76, %c0_77, %c0_78] : memref<2x1x128xf32, #tpu.memory_space<vmem>>, vector<1x1x128xf32>
    %209 = vector.shape_cast %208 : vector<1x1x128xf32> to vector<1x128xf32>
    %cst_79 = arith.constant dense<0.000000e+00> : vector<16xf32>
    %210 = vector.multi_reduction <add>, %205, %cst_79 [1] : vector<16x128xf32> to vector<16xf32>
    %211 = vector.shape_cast %210 : vector<16xf32> to vector<16x1xf32>
    %cst_80 = arith.constant 1.280000e+02 : f32
    %212 = vector.broadcast %cst_80 : f32 to vector<16x1xf32>
    %213 = arith.divf %211, %212 : vector<16x1xf32>
    %214 = vector.broadcast %213 : vector<16x1xf32> to vector<16x128xf32>
    %215 = arith.subf %205, %214 : vector<16x128xf32>
    %216 = arith.mulf %215, %215 : vector<16x128xf32>
    %cst_81 = arith.constant dense<0.000000e+00> : vector<16xf32>
    %217 = vector.multi_reduction <add>, %216, %cst_81 [1] : vector<16x128xf32> to vector<16xf32>
    %218 = vector.shape_cast %217 : vector<16xf32> to vector<16x1xf32>
    %cst_82 = arith.constant 1.280000e+02 : f32
    %219 = vector.broadcast %cst_82 : f32 to vector<16x1xf32>
    %220 = arith.divf %218, %219 : vector<16x1xf32>
    %221 = vector.broadcast %213 : vector<16x1xf32> to vector<16x128xf32>
    %222 = arith.subf %205, %221 : vector<16x128xf32>
    %cst_83 = arith.constant 9.99999974E-6 : f32
    %223 = vector.broadcast %cst_83 : f32 to vector<16x1xf32>
    %224 = arith.addf %220, %223 : vector<16x1xf32>
    %225 = math.rsqrt %224 : vector<16x1xf32>
    %226 = vector.broadcast %225 : vector<16x1xf32> to vector<16x128xf32>
    %227 = arith.mulf %222, %226 : vector<16x128xf32>
    %228 = vector.broadcast %207 : vector<1x128xf32> to vector<16x128xf32>
    %229 = arith.mulf %227, %228 : vector<16x128xf32>
    %230 = vector.broadcast %209 : vector<1x128xf32> to vector<16x128xf32>
    %231 = arith.addf %229, %230 : vector<16x128xf32>
    %232 = arith.truncf %231 : vector<16x128xf32> to vector<16x128xbf16>
    %c1 = arith.constant 1 : index
    %c0_84 = arith.constant 0 : index
    %c0_85 = arith.constant 0 : index
    %233 = vector.load %arg5[%c1, %c0_84, %c0_85] : memref<2x128x384xbf16, #tpu.memory_space<vmem>>, vector<1x128x384xbf16>
    %234 = vector.shape_cast %233 : vector<1x128x384xbf16> to vector<128x384xbf16>
    %cst_86 = arith.constant dense<0.000000e+00> : vector<16x384xf32>
    %235 = tpu.matmul %232, %234, %cst_86 {dimension_numbers = #tpu.dot_dimension_numbers<[1], [0], [0], [1], [0, 0, 1, 1], [], []>} : vector<16x128xbf16>, vector<128x384xbf16>, vector<16x384xf32> -> vector<16x384xf32>
    %c1_87 = arith.constant 1 : index
    %c0_88 = arith.constant 0 : index
    %c0_89 = arith.constant 0 : index
    %236 = vector.load %arg6[%c1_87, %c0_88, %c0_89] : memref<2x1x384xf32, #tpu.memory_space<vmem>>, vector<1x1x384xf32>
    %237 = vector.shape_cast %236 : vector<1x1x384xf32> to vector<1x384xf32>
    %238 = vector.broadcast %237 : vector<1x384xf32> to vector<16x384xf32>
    %239 = arith.addf %235, %238 : vector<16x384xf32>
    %240 = vector.extract_strided_slice %239 {offsets = [0, 0], sizes = [16, 128], strides = [1, 1]} : vector<16x384xf32> to vector<16x128xf32>
    %cst_90 = arith.constant 0.176776692 : f32
    %241 = vector.broadcast %cst_90 : f32 to vector<16x128xf32>
    %242 = arith.mulf %240, %241 : vector<16x128xf32>
    %243 = vector.extract_strided_slice %239 {offsets = [0, 128], sizes = [16, 128], strides = [1, 1]} : vector<16x384xf32> to vector<16x128xf32>
    %244 = vector.extract_strided_slice %239 {offsets = [0, 256], sizes = [16, 128], strides = [1, 1]} : vector<16x384xf32> to vector<16x128xf32>
    %245 = vector.extract_strided_slice %242 {offsets = [0, 0], sizes = [16, 32], strides = [1, 1]} : vector<16x128xf32> to vector<16x32xf32>
    %246 = vector.shape_cast %245 : vector<16x32xf32> to vector<2x8x32xf32>
    %247 = vector.extract_strided_slice %243 {offsets = [0, 0], sizes = [16, 32], strides = [1, 1]} : vector<16x128xf32> to vector<16x32xf32>
    %248 = vector.shape_cast %247 : vector<16x32xf32> to vector<2x8x32xf32>
    %249 = vector.extract_strided_slice %244 {offsets = [0, 0], sizes = [16, 32], strides = [1, 1]} : vector<16x128xf32> to vector<16x32xf32>
    %250 = vector.shape_cast %249 : vector<16x32xf32> to vector<2x8x32xf32>
    %251 = arith.truncf %246 : vector<2x8x32xf32> to vector<2x8x32xbf16>
    %252 = arith.truncf %248 : vector<2x8x32xf32> to vector<2x8x32xbf16>
    "tpu.trace_start"() <{level = 10 : i32, message = "bqd,bkd->bqk"}> : () -> ()
    %cst_91 = arith.constant dense<0.000000e+00> : vector<2x8x8xf32>
    %253 = tpu.matmul %251, %252, %cst_91 {dimension_numbers = #tpu.dot_dimension_numbers<[2], [2], [1], [1], [0, 0, 0, 1, 1, 1], [0], [0]>} : vector<2x8x32xbf16>, vector<2x8x32xbf16>, vector<2x8x8xf32> -> vector<2x8x8xf32>
    "tpu.trace_stop"() : () -> ()
    %254 = vector.broadcast %26 : vector<2x1x8xf32> to vector<2x8x8xf32>
    %255 = arith.addf %253, %254 : vector<2x8x8xf32>
    %cst_92 = arith.constant dense<0xFF800000> : vector<2x8xf32>
    %256 = vector.multi_reduction <maximumf>, %255, %cst_92 [2] : vector<2x8x8xf32> to vector<2x8xf32>
    %257 = vector.shape_cast %256 : vector<2x8xf32> to vector<2x8x1xf32>
    %258 = vector.broadcast %257 : vector<2x8x1xf32> to vector<2x8x8xf32>
    %259 = arith.subf %255, %258 : vector<2x8x8xf32>
    %260 = math.exp %259 : vector<2x8x8xf32>
    %cst_93 = arith.constant dense<0.000000e+00> : vector<2x8xf32>
    %261 = vector.multi_reduction <add>, %260, %cst_93 [2] : vector<2x8x8xf32> to vector<2x8xf32>
    %262 = vector.shape_cast %261 : vector<2x8xf32> to vector<2x8x1xf32>
    %263 = tpu.reciprocal %262 {approx = true} : vector<2x8x1xf32> -> vector<2x8x1xf32>
    %264 = vector.broadcast %263 : vector<2x8x1xf32> to vector<2x8x8xf32>
    %265 = arith.mulf %260, %264 : vector<2x8x8xf32>
    %266 = arith.truncf %265 : vector<2x8x8xf32> to vector<2x8x8xbf16>
    %267 = arith.truncf %250 : vector<2x8x32xf32> to vector<2x8x32xbf16>
    "tpu.trace_start"() <{level = 10 : i32, message = "bqk,bkd->bqd"}> : () -> ()
    %cst_94 = arith.constant dense<0.000000e+00> : vector<2x8x32xf32>
    %268 = tpu.matmul %266, %267, %cst_94 {dimension_numbers = #tpu.dot_dimension_numbers<[2], [1], [1], [2], [0, 0, 0, 1, 1, 2], [0], [0]>} : vector<2x8x8xbf16>, vector<2x8x32xbf16>, vector<2x8x32xf32> -> vector<2x8x32xf32>
    "tpu.trace_stop"() : () -> ()
    %269 = vector.shape_cast %268 : vector<2x8x32xf32> to vector<16x32xf32>
    %270 = vector.extract_strided_slice %242 {offsets = [0, 32], sizes = [16, 32], strides = [1, 1]} : vector<16x128xf32> to vector<16x32xf32>
    %271 = vector.shape_cast %270 : vector<16x32xf32> to vector<2x8x32xf32>
    %272 = vector.extract_strided_slice %243 {offsets = [0, 32], sizes = [16, 32], strides = [1, 1]} : vector<16x128xf32> to vector<16x32xf32>
    %273 = vector.shape_cast %272 : vector<16x32xf32> to vector<2x8x32xf32>
    %274 = vector.extract_strided_slice %244 {offsets = [0, 32], sizes = [16, 32], strides = [1, 1]} : vector<16x128xf32> to vector<16x32xf32>
    %275 = vector.shape_cast %274 : vector<16x32xf32> to vector<2x8x32xf32>
    %276 = arith.truncf %271 : vector<2x8x32xf32> to vector<2x8x32xbf16>
    %277 = arith.truncf %273 : vector<2x8x32xf32> to vector<2x8x32xbf16>
    "tpu.trace_start"() <{level = 10 : i32, message = "bqd,bkd->bqk"}> : () -> ()
    %cst_95 = arith.constant dense<0.000000e+00> : vector<2x8x8xf32>
    %278 = tpu.matmul %276, %277, %cst_95 {dimension_numbers = #tpu.dot_dimension_numbers<[2], [2], [1], [1], [0, 0, 0, 1, 1, 1], [0], [0]>} : vector<2x8x32xbf16>, vector<2x8x32xbf16>, vector<2x8x8xf32> -> vector<2x8x8xf32>
    "tpu.trace_stop"() : () -> ()
    %279 = vector.broadcast %26 : vector<2x1x8xf32> to vector<2x8x8xf32>
    %280 = arith.addf %278, %279 : vector<2x8x8xf32>
    %cst_96 = arith.constant dense<0xFF800000> : vector<2x8xf32>
    %281 = vector.multi_reduction <maximumf>, %280, %cst_96 [2] : vector<2x8x8xf32> to vector<2x8xf32>
    %282 = vector.shape_cast %281 : vector<2x8xf32> to vector<2x8x1xf32>
    %283 = vector.broadcast %282 : vector<2x8x1xf32> to vector<2x8x8xf32>
    %284 = arith.subf %280, %283 : vector<2x8x8xf32>
    %285 = math.exp %284 : vector<2x8x8xf32>
    %cst_97 = arith.constant dense<0.000000e+00> : vector<2x8xf32>
    %286 = vector.multi_reduction <add>, %285, %cst_97 [2] : vector<2x8x8xf32> to vector<2x8xf32>
    %287 = vector.shape_cast %286 : vector<2x8xf32> to vector<2x8x1xf32>
    %288 = tpu.reciprocal %287 {approx = true} : vector<2x8x1xf32> -> vector<2x8x1xf32>
    %289 = vector.broadcast %288 : vector<2x8x1xf32> to vector<2x8x8xf32>
    %290 = arith.mulf %285, %289 : vector<2x8x8xf32>
    %291 = arith.truncf %290 : vector<2x8x8xf32> to vector<2x8x8xbf16>
    %292 = arith.truncf %275 : vector<2x8x32xf32> to vector<2x8x32xbf16>
    "tpu.trace_start"() <{level = 10 : i32, message = "bqk,bkd->bqd"}> : () -> ()
    %cst_98 = arith.constant dense<0.000000e+00> : vector<2x8x32xf32>
    %293 = tpu.matmul %291, %292, %cst_98 {dimension_numbers = #tpu.dot_dimension_numbers<[2], [1], [1], [2], [0, 0, 0, 1, 1, 2], [0], [0]>} : vector<2x8x8xbf16>, vector<2x8x32xbf16>, vector<2x8x32xf32> -> vector<2x8x32xf32>
    "tpu.trace_stop"() : () -> ()
    %294 = vector.shape_cast %293 : vector<2x8x32xf32> to vector<16x32xf32>
    %295 = vector.extract_strided_slice %242 {offsets = [0, 64], sizes = [16, 32], strides = [1, 1]} : vector<16x128xf32> to vector<16x32xf32>
    %296 = vector.shape_cast %295 : vector<16x32xf32> to vector<2x8x32xf32>
    %297 = vector.extract_strided_slice %243 {offsets = [0, 64], sizes = [16, 32], strides = [1, 1]} : vector<16x128xf32> to vector<16x32xf32>
    %298 = vector.shape_cast %297 : vector<16x32xf32> to vector<2x8x32xf32>
    %299 = vector.extract_strided_slice %244 {offsets = [0, 64], sizes = [16, 32], strides = [1, 1]} : vector<16x128xf32> to vector<16x32xf32>
    %300 = vector.shape_cast %299 : vector<16x32xf32> to vector<2x8x32xf32>
    %301 = arith.truncf %296 : vector<2x8x32xf32> to vector<2x8x32xbf16>
    %302 = arith.truncf %298 : vector<2x8x32xf32> to vector<2x8x32xbf16>
    "tpu.trace_start"() <{level = 10 : i32, message = "bqd,bkd->bqk"}> : () -> ()
    %cst_99 = arith.constant dense<0.000000e+00> : vector<2x8x8xf32>
    %303 = tpu.matmul %301, %302, %cst_99 {dimension_numbers = #tpu.dot_dimension_numbers<[2], [2], [1], [1], [0, 0, 0, 1, 1, 1], [0], [0]>} : vector<2x8x32xbf16>, vector<2x8x32xbf16>, vector<2x8x8xf32> -> vector<2x8x8xf32>
    "tpu.trace_stop"() : () -> ()
    %304 = vector.broadcast %26 : vector<2x1x8xf32> to vector<2x8x8xf32>
    %305 = arith.addf %303, %304 : vector<2x8x8xf32>
    %cst_100 = arith.constant dense<0xFF800000> : vector<2x8xf32>
    %306 = vector.multi_reduction <maximumf>, %305, %cst_100 [2] : vector<2x8x8xf32> to vector<2x8xf32>
    %307 = vector.shape_cast %306 : vector<2x8xf32> to vector<2x8x1xf32>
    %308 = vector.broadcast %307 : vector<2x8x1xf32> to vector<2x8x8xf32>
    %309 = arith.subf %305, %308 : vector<2x8x8xf32>
    %310 = math.exp %309 : vector<2x8x8xf32>
    %cst_101 = arith.constant dense<0.000000e+00> : vector<2x8xf32>
    %311 = vector.multi_reduction <add>, %310, %cst_101 [2] : vector<2x8x8xf32> to vector<2x8xf32>
    %312 = vector.shape_cast %311 : vector<2x8xf32> to vector<2x8x1xf32>
    %313 = tpu.reciprocal %312 {approx = true} : vector<2x8x1xf32> -> vector<2x8x1xf32>
    %314 = vector.broadcast %313 : vector<2x8x1xf32> to vector<2x8x8xf32>
    %315 = arith.mulf %310, %314 : vector<2x8x8xf32>
    %316 = arith.truncf %315 : vector<2x8x8xf32> to vector<2x8x8xbf16>
    %317 = arith.truncf %300 : vector<2x8x32xf32> to vector<2x8x32xbf16>
    "tpu.trace_start"() <{level = 10 : i32, message = "bqk,bkd->bqd"}> : () -> ()
    %cst_102 = arith.constant dense<0.000000e+00> : vector<2x8x32xf32>
    %318 = tpu.matmul %316, %317, %cst_102 {dimension_numbers = #tpu.dot_dimension_numbers<[2], [1], [1], [2], [0, 0, 0, 1, 1, 2], [0], [0]>} : vector<2x8x8xbf16>, vector<2x8x32xbf16>, vector<2x8x32xf32> -> vector<2x8x32xf32>
    "tpu.trace_stop"() : () -> ()
    %319 = vector.shape_cast %318 : vector<2x8x32xf32> to vector<16x32xf32>
    %320 = vector.extract_strided_slice %242 {offsets = [0, 96], sizes = [16, 32], strides = [1, 1]} : vector<16x128xf32> to vector<16x32xf32>
    %321 = vector.shape_cast %320 : vector<16x32xf32> to vector<2x8x32xf32>
    %322 = vector.extract_strided_slice %243 {offsets = [0, 96], sizes = [16, 32], strides = [1, 1]} : vector<16x128xf32> to vector<16x32xf32>
    %323 = vector.shape_cast %322 : vector<16x32xf32> to vector<2x8x32xf32>
    %324 = vector.extract_strided_slice %244 {offsets = [0, 96], sizes = [16, 32], strides = [1, 1]} : vector<16x128xf32> to vector<16x32xf32>
    %325 = vector.shape_cast %324 : vector<16x32xf32> to vector<2x8x32xf32>
    %326 = arith.truncf %321 : vector<2x8x32xf32> to vector<2x8x32xbf16>
    %327 = arith.truncf %323 : vector<2x8x32xf32> to vector<2x8x32xbf16>
    "tpu.trace_start"() <{level = 10 : i32, message = "bqd,bkd->bqk"}> : () -> ()
    %cst_103 = arith.constant dense<0.000000e+00> : vector<2x8x8xf32>
    %328 = tpu.matmul %326, %327, %cst_103 {dimension_numbers = #tpu.dot_dimension_numbers<[2], [2], [1], [1], [0, 0, 0, 1, 1, 1], [0], [0]>} : vector<2x8x32xbf16>, vector<2x8x32xbf16>, vector<2x8x8xf32> -> vector<2x8x8xf32>
    "tpu.trace_stop"() : () -> ()
    %329 = vector.broadcast %26 : vector<2x1x8xf32> to vector<2x8x8xf32>
    %330 = arith.addf %328, %329 : vector<2x8x8xf32>
    %cst_104 = arith.constant dense<0xFF800000> : vector<2x8xf32>
    %331 = vector.multi_reduction <maximumf>, %330, %cst_104 [2] : vector<2x8x8xf32> to vector<2x8xf32>
    %332 = vector.shape_cast %331 : vector<2x8xf32> to vector<2x8x1xf32>
    %333 = vector.broadcast %332 : vector<2x8x1xf32> to vector<2x8x8xf32>
    %334 = arith.subf %330, %333 : vector<2x8x8xf32>
    %335 = math.exp %334 : vector<2x8x8xf32>
    %cst_105 = arith.constant dense<0.000000e+00> : vector<2x8xf32>
    %336 = vector.multi_reduction <add>, %335, %cst_105 [2] : vector<2x8x8xf32> to vector<2x8xf32>
    %337 = vector.shape_cast %336 : vector<2x8xf32> to vector<2x8x1xf32>
    %338 = tpu.reciprocal %337 {approx = true} : vector<2x8x1xf32> -> vector<2x8x1xf32>
    %339 = vector.broadcast %338 : vector<2x8x1xf32> to vector<2x8x8xf32>
    %340 = arith.mulf %335, %339 : vector<2x8x8xf32>
    %341 = arith.truncf %340 : vector<2x8x8xf32> to vector<2x8x8xbf16>
    %342 = arith.truncf %325 : vector<2x8x32xf32> to vector<2x8x32xbf16>
    "tpu.trace_start"() <{level = 10 : i32, message = "bqk,bkd->bqd"}> : () -> ()
    %cst_106 = arith.constant dense<0.000000e+00> : vector<2x8x32xf32>
    %343 = tpu.matmul %341, %342, %cst_106 {dimension_numbers = #tpu.dot_dimension_numbers<[2], [1], [1], [2], [0, 0, 0, 1, 1, 2], [0], [0]>} : vector<2x8x8xbf16>, vector<2x8x32xbf16>, vector<2x8x32xf32> -> vector<2x8x32xf32>
    "tpu.trace_stop"() : () -> ()
    %344 = vector.shape_cast %343 : vector<2x8x32xf32> to vector<16x32xf32>
    %345 = tpu.concatenate %269, %294, %319, %344 in 1 : vector<16x32xf32>, vector<16x32xf32>, vector<16x32xf32>, vector<16x32xf32> -> vector<16x128xf32>
    %346 = arith.truncf %345 : vector<16x128xf32> to vector<16x128xbf16>
    %c1_107 = arith.constant 1 : index
    %c0_108 = arith.constant 0 : index
    %c0_109 = arith.constant 0 : index
    %347 = vector.load %arg7[%c1_107, %c0_108, %c0_109] : memref<2x128x128xbf16, #tpu.memory_space<vmem>>, vector<1x128x128xbf16>
    %348 = vector.shape_cast %347 : vector<1x128x128xbf16> to vector<128x128xbf16>
    %cst_110 = arith.constant dense<0.000000e+00> : vector<16x128xf32>
    %349 = tpu.matmul %346, %348, %cst_110 {dimension_numbers = #tpu.dot_dimension_numbers<[1], [0], [0], [1], [0, 0, 1, 1], [], []>} : vector<16x128xbf16>, vector<128x128xbf16>, vector<16x128xf32> -> vector<16x128xf32>
    %c1_111 = arith.constant 1 : index
    %c0_112 = arith.constant 0 : index
    %c0_113 = arith.constant 0 : index
    %350 = vector.load %arg8[%c1_111, %c0_112, %c0_113] : memref<2x1x128xf32, #tpu.memory_space<vmem>>, vector<1x1x128xf32>
    %351 = vector.shape_cast %350 : vector<1x1x128xf32> to vector<1x128xf32>
    %352 = vector.broadcast %351 : vector<1x128xf32> to vector<16x128xf32>
    %353 = arith.addf %349, %352 : vector<16x128xf32>
    %354 = arith.addf %231, %353 : vector<16x128xf32>
    %c1_114 = arith.constant 1 : index
    %c0_115 = arith.constant 0 : index
    %c0_116 = arith.constant 0 : index
    %355 = vector.load %arg9[%c1_114, %c0_115, %c0_116] : memref<2x1x128xf32, #tpu.memory_space<vmem>>, vector<1x1x128xf32>
    %356 = vector.shape_cast %355 : vector<1x1x128xf32> to vector<1x128xf32>
    %c1_117 = arith.constant 1 : index
    %c0_118 = arith.constant 0 : index
    %c0_119 = arith.constant 0 : index
    %357 = vector.load %arg10[%c1_117, %c0_118, %c0_119] : memref<2x1x128xf32, #tpu.memory_space<vmem>>, vector<1x1x128xf32>
    %358 = vector.shape_cast %357 : vector<1x1x128xf32> to vector<1x128xf32>
    %cst_120 = arith.constant dense<0.000000e+00> : vector<16xf32>
    %359 = vector.multi_reduction <add>, %354, %cst_120 [1] : vector<16x128xf32> to vector<16xf32>
    %360 = vector.shape_cast %359 : vector<16xf32> to vector<16x1xf32>
    %cst_121 = arith.constant 1.280000e+02 : f32
    %361 = vector.broadcast %cst_121 : f32 to vector<16x1xf32>
    %362 = arith.divf %360, %361 : vector<16x1xf32>
    %363 = vector.broadcast %362 : vector<16x1xf32> to vector<16x128xf32>
    %364 = arith.subf %354, %363 : vector<16x128xf32>
    %365 = arith.mulf %364, %364 : vector<16x128xf32>
    %cst_122 = arith.constant dense<0.000000e+00> : vector<16xf32>
    %366 = vector.multi_reduction <add>, %365, %cst_122 [1] : vector<16x128xf32> to vector<16xf32>
    %367 = vector.shape_cast %366 : vector<16xf32> to vector<16x1xf32>
    %cst_123 = arith.constant 1.280000e+02 : f32
    %368 = vector.broadcast %cst_123 : f32 to vector<16x1xf32>
    %369 = arith.divf %367, %368 : vector<16x1xf32>
    %370 = vector.broadcast %362 : vector<16x1xf32> to vector<16x128xf32>
    %371 = arith.subf %354, %370 : vector<16x128xf32>
    %cst_124 = arith.constant 9.99999974E-6 : f32
    %372 = vector.broadcast %cst_124 : f32 to vector<16x1xf32>
    %373 = arith.addf %369, %372 : vector<16x1xf32>
    %374 = math.rsqrt %373 : vector<16x1xf32>
    %375 = vector.broadcast %374 : vector<16x1xf32> to vector<16x128xf32>
    %376 = arith.mulf %371, %375 : vector<16x128xf32>
    %377 = vector.broadcast %356 : vector<1x128xf32> to vector<16x128xf32>
    %378 = arith.mulf %376, %377 : vector<16x128xf32>
    %379 = vector.broadcast %358 : vector<1x128xf32> to vector<16x128xf32>
    %380 = arith.addf %378, %379 : vector<16x128xf32>
    %381 = arith.truncf %380 : vector<16x128xf32> to vector<16x128xbf16>
    %c1_125 = arith.constant 1 : index
    %c0_126 = arith.constant 0 : index
    %c0_127 = arith.constant 0 : index
    %382 = vector.load %arg11[%c1_125, %c0_126, %c0_127] : memref<2x128x256xbf16, #tpu.memory_space<vmem>>, vector<1x128x256xbf16>
    %383 = vector.shape_cast %382 : vector<1x128x256xbf16> to vector<128x256xbf16>
    %cst_128 = arith.constant dense<0.000000e+00> : vector<16x256xf32>
    %384 = tpu.matmul %381, %383, %cst_128 {dimension_numbers = #tpu.dot_dimension_numbers<[1], [0], [0], [1], [0, 0, 1, 1], [], []>} : vector<16x128xbf16>, vector<128x256xbf16>, vector<16x256xf32> -> vector<16x256xf32>
    %c1_129 = arith.constant 1 : index
    %c0_130 = arith.constant 0 : index
    %c0_131 = arith.constant 0 : index
    %385 = vector.load %arg12[%c1_129, %c0_130, %c0_131] : memref<2x1x256xf32, #tpu.memory_space<vmem>>, vector<1x1x256xf32>
    %386 = vector.shape_cast %385 : vector<1x1x256xf32> to vector<1x256xf32>
    %387 = vector.broadcast %386 : vector<1x256xf32> to vector<16x256xf32>
    %388 = arith.addf %384, %387 : vector<16x256xf32>
    %cst_132 = arith.constant 5.000000e-01 : f32
    %389 = vector.broadcast %cst_132 : f32 to vector<16x256xf32>
    %390 = arith.mulf %389, %388 : vector<16x256xf32>
    %cst_133 = arith.constant 4.471500e-02 : f32
    %391 = vector.broadcast %cst_133 : f32 to vector<16x256xf32>
    %392 = arith.mulf %391, %388 : vector<16x256xf32>
    %393 = arith.mulf %392, %388 : vector<16x256xf32>
    %394 = arith.mulf %393, %388 : vector<16x256xf32>
    %395 = arith.addf %388, %394 : vector<16x256xf32>
    %cst_134 = arith.constant 0.797884583 : f32
    %396 = vector.broadcast %cst_134 : f32 to vector<16x256xf32>
    %397 = arith.mulf %396, %395 : vector<16x256xf32>
    %398 = math.tanh %397 : vector<16x256xf32>
    %cst_135 = arith.constant 1.000000e+00 : f32
    %399 = vector.broadcast %cst_135 : f32 to vector<16x256xf32>
    %400 = arith.addf %399, %398 : vector<16x256xf32>
    %401 = arith.mulf %390, %400 : vector<16x256xf32>
    %402 = arith.truncf %401 : vector<16x256xf32> to vector<16x256xbf16>
    %c1_136 = arith.constant 1 : index
    %c0_137 = arith.constant 0 : index
    %c0_138 = arith.constant 0 : index
    %403 = vector.load %arg13[%c1_136, %c0_137, %c0_138] : memref<2x256x128xbf16, #tpu.memory_space<vmem>>, vector<1x256x128xbf16>
    %404 = vector.shape_cast %403 : vector<1x256x128xbf16> to vector<256x128xbf16>
    %cst_139 = arith.constant dense<0.000000e+00> : vector<16x128xf32>
    %405 = tpu.matmul %402, %404, %cst_139 {dimension_numbers = #tpu.dot_dimension_numbers<[1], [0], [0], [1], [0, 0, 1, 1], [], []>} : vector<16x256xbf16>, vector<256x128xbf16>, vector<16x128xf32> -> vector<16x128xf32>
    %c1_140 = arith.constant 1 : index
    %c0_141 = arith.constant 0 : index
    %c0_142 = arith.constant 0 : index
    %406 = vector.load %arg14[%c1_140, %c0_141, %c0_142] : memref<2x1x128xf32, #tpu.memory_space<vmem>>, vector<1x1x128xf32>
    %407 = vector.shape_cast %406 : vector<1x1x128xf32> to vector<1x128xf32>
    %408 = vector.broadcast %407 : vector<1x128xf32> to vector<16x128xf32>
    %409 = arith.addf %405, %408 : vector<16x128xf32>
    %410 = arith.addf %380, %409 : vector<16x128xf32>
    %c1_143 = arith.constant 1 : index
    %c0_144 = arith.constant 0 : index
    %c0_145 = arith.constant 0 : index
    %411 = vector.load %arg15[%c1_143, %c0_144, %c0_145] : memref<2x1x128xf32, #tpu.memory_space<vmem>>, vector<1x1x128xf32>
    %412 = vector.shape_cast %411 : vector<1x1x128xf32> to vector<1x128xf32>
    %c1_146 = arith.constant 1 : index
    %c0_147 = arith.constant 0 : index
    %c0_148 = arith.constant 0 : index
    %413 = vector.load %arg16[%c1_146, %c0_147, %c0_148] : memref<2x1x128xf32, #tpu.memory_space<vmem>>, vector<1x1x128xf32>
    %414 = vector.shape_cast %413 : vector<1x1x128xf32> to vector<1x128xf32>
    %cst_149 = arith.constant dense<0.000000e+00> : vector<16xf32>
    %415 = vector.multi_reduction <add>, %410, %cst_149 [1] : vector<16x128xf32> to vector<16xf32>
    %416 = vector.shape_cast %415 : vector<16xf32> to vector<16x1xf32>
    %cst_150 = arith.constant 1.280000e+02 : f32
    %417 = vector.broadcast %cst_150 : f32 to vector<16x1xf32>
    %418 = arith.divf %416, %417 : vector<16x1xf32>
    %419 = vector.broadcast %418 : vector<16x1xf32> to vector<16x128xf32>
    %420 = arith.subf %410, %419 : vector<16x128xf32>
    %421 = arith.mulf %420, %420 : vector<16x128xf32>
    %cst_151 = arith.constant dense<0.000000e+00> : vector<16xf32>
    %422 = vector.multi_reduction <add>, %421, %cst_151 [1] : vector<16x128xf32> to vector<16xf32>
    %423 = vector.shape_cast %422 : vector<16xf32> to vector<16x1xf32>
    %cst_152 = arith.constant 1.280000e+02 : f32
    %424 = vector.broadcast %cst_152 : f32 to vector<16x1xf32>
    %425 = arith.divf %423, %424 : vector<16x1xf32>
    %426 = vector.broadcast %418 : vector<16x1xf32> to vector<16x128xf32>
    %427 = arith.subf %410, %426 : vector<16x128xf32>
    %cst_153 = arith.constant 9.99999974E-6 : f32
    %428 = vector.broadcast %cst_153 : f32 to vector<16x1xf32>
    %429 = arith.addf %425, %428 : vector<16x1xf32>
    %430 = math.rsqrt %429 : vector<16x1xf32>
    %431 = vector.broadcast %430 : vector<16x1xf32> to vector<16x128xf32>
    %432 = arith.mulf %427, %431 : vector<16x128xf32>
    %433 = vector.broadcast %412 : vector<1x128xf32> to vector<16x128xf32>
    %434 = arith.mulf %432, %433 : vector<16x128xf32>
    %435 = vector.broadcast %414 : vector<1x128xf32> to vector<16x128xf32>
    %436 = arith.addf %434, %435 : vector<16x128xf32>
    %437 = vector.shape_cast %436 : vector<16x128xf32> to vector<2x8x128xf32>
    %438 = vector.extract_strided_slice %437 {offsets = [0, 0, 0], sizes = [2, 1, 128], strides = [1, 1, 1]} : vector<2x8x128xf32> to vector<2x1x128xf32>
    %439 = vector.shape_cast %438 : vector<2x1x128xf32> to vector<2x128xf32>
    %440 = arith.truncf %439 : vector<2x128xf32> to vector<2x128xbf16>
    %c0_154 = arith.constant 0 : index
    %c0_155 = arith.constant 0 : index
    %441 = vector.load %arg17[%c0_154, %c0_155] : memref<128x128xbf16, #tpu.memory_space<vmem>>, vector<128x128xbf16>
    %cst_156 = arith.constant dense<0.000000e+00> : vector<2x128xf32>
    %442 = tpu.matmul %440, %441, %cst_156 {dimension_numbers = #tpu.dot_dimension_numbers<[1], [0], [0], [1], [0, 0, 1, 1], [], []>} : vector<2x128xbf16>, vector<128x128xbf16>, vector<2x128xf32> -> vector<2x128xf32>
    %c0_157 = arith.constant 0 : index
    %c0_158 = arith.constant 0 : index
    %443 = vector.load %arg18[%c0_157, %c0_158] : memref<1x128xf32, #tpu.memory_space<vmem>>, vector<1x128xf32>
    %444 = vector.broadcast %443 : vector<1x128xf32> to vector<2x128xf32>
    %445 = arith.addf %442, %444 : vector<2x128xf32>
    %cst_159 = arith.constant 0.000000e+00 : f32
    %446 = vector.broadcast %cst_159 : f32 to vector<2x128xf32>
    %447 = arith.maximumf %445, %446 : vector<2x128xf32>
    %c0_160 = arith.constant 0 : index
    %c0_161 = arith.constant 0 : index
    %448 = vector.load %arg2[%c0_160, %c0_161] : memref<2x128xf32, #tpu.memory_space<vmem>>, vector<2x128xf32>
    %449 = arith.mulf %447, %448 : vector<2x128xf32>
    %450 = arith.truncf %449 : vector<2x128xf32> to vector<2x128xbf16>
    %c0_162 = arith.constant 0 : index
    %c0_163 = arith.constant 0 : index
    %451 = vector.load %arg19[%c0_162, %c0_163] : memref<128x128xbf16, #tpu.memory_space<vmem>>, vector<128x128xbf16>
    %cst_164 = arith.constant dense<0.000000e+00> : vector<2x128xf32>
    %452 = tpu.matmul %450, %451, %cst_164 {dimension_numbers = #tpu.dot_dimension_numbers<[1], [0], [0], [1], [0, 0, 1, 1], [], []>} : vector<2x128xbf16>, vector<128x128xbf16>, vector<2x128xf32> -> vector<2x128xf32>
    %c0_165 = arith.constant 0 : index
    %c0_166 = arith.constant 0 : index
    %453 = vector.load %arg20[%c0_165, %c0_166] : memref<1x128xf32, #tpu.memory_space<vmem>>, vector<1x128xf32>
    %454 = vector.broadcast %453 : vector<1x128xf32> to vector<2x128xf32>
    %455 = arith.addf %452, %454 : vector<2x128xf32>
    %c0_167 = arith.constant 0 : index
    %c0_168 = arith.constant 0 : index
    %456 = vector.load %arg21[%c0_167, %c0_168] : memref<2x128xf32, #tpu.memory_space<vmem>>, vector<2x128xf32>
    tpu.vector_store %arg21[%c0_167, %c0_168], %455 {strides = array<i32>} : memref<2x128xf32, #tpu.memory_space<vmem>>, vector<2x128xf32>,
    return
  }
}

</mosaic_0001>

<llo_original>
// kernel: roberta_class_forward.1
$region0: #{roberta_class_forward.1}
  #allocation0 [shape = 'u32[]', space=smem, size = 0x4, offset = 0x4, fixed_abs, tag = 'smem constant byte address 0x4 - core index']
  #allocation1 [shape = 'u32[72,128]{1,0:T(1,128)}', space=vmem, size = 0x9000, scoped, tag = 'internal scratch']
  %s0 = inlined_call_operand.vmem [shape: f32[2,8,128], index: 0, kind: input, shape index: {}]
  %s1 = inlined_call_operand.vmem [shape: f32[2,1,8], index: 1, kind: input, shape index: {}]
  %s2 = inlined_call_operand.vmem [shape: f32[2,128], index: 2, kind: input, shape index: {}]
  %s3 = inlined_call_operand.vmem [shape: f32[1,128], index: 3, kind: input, shape index: {}]
  %s4 = inlined_call_operand.vmem [shape: f32[1,128], index: 4, kind: input, shape index: {}]
  %s5 = inlined_call_operand.hbm [shape: bf16[2,128,384], index: 5, kind: input, shape index: {}]
  %s6 = inlined_call_operand.vmem [shape: f32[2,1,384], index: 6, kind: input, shape index: {}]
  %s7 = inlined_call_operand.hbm [shape: bf16[2,128,128], index: 7, kind: input, shape index: {}]
  %s8 = inlined_call_operand.vmem [shape: f32[2,1,128], index: 8, kind: input, shape index: {}]
  %s9 = inlined_call_operand.vmem [shape: f32[2,1,128], index: 9, kind: input, shape index: {}]
  %s10 = inlined_call_operand.vmem [shape: f32[2,1,128], index: 10, kind: input, shape index: {}]
  %s11 = inlined_call_operand.vmem [shape: bf16[2,128,256], index: 11, kind: input, shape index: {}]
  %s12 = inlined_call_operand.vmem [shape: f32[2,1,256], index: 12, kind: input, shape index: {}]
  %s13 = inlined_call_operand.hbm [shape: bf16[2,256,128], index: 13, kind: input, shape index: {}]
  %s14 = inlined_call_operand.vmem [shape: f32[2,1,128], index: 14, kind: input, shape index: {}]
  %s15 = inlined_call_operand.vmem [shape: f32[2,1,128], index: 15, kind: input, shape index: {}]
  %s16 = inlined_call_operand.vmem [shape: f32[2,1,128], index: 16, kind: input, shape index: {}]
  %s17 = inlined_call_operand.hbm [shape: bf16[128,128], index: 17, kind: input, shape index: {}]
  %s18 = inlined_call_operand.vmem [shape: f32[1,128], index: 18, kind: input, shape index: {}]
  %s19 = inlined_call_operand.hbm [shape: bf16[128,128], index: 19, kind: input, shape index: {}]
  %s20 = inlined_call_operand.vmem [shape: f32[1,128], index: 20, kind: input, shape index: {}]
  %s21 = inlined_call_operand.hbm [shape: f32[2,128], index: 21, kind: output, shape index: {}]
  %s22 = sld [smem:[#allocation0]]
  $region114: #{roberta_class_forward.1} parent=0
    _
  %s24 = ssub.s32 1, %s22
  %s25 = scalar_select 0, %s24, %s22
  $region1: #{roberta_class_forward.1} parent=0
    #allocation2 [shape = 'u8[196608]{0}', space=vmem, size = 0x30000, scoped, tag = 'input window, operand 5, single buffered']
    #allocation3 [shape = 's32[1]{0}', space=sflag, size = 0x4, scoped, tag = 'scoped memory for roberta_class_forward.1']
    #allocation4 [shape = 's32[1]{0}', space=sflag, size = 0x4, scoped, tag = 'scoped memory for roberta_class_forward.1']
    #allocation5 [shape = 'u8[65536]{0}', space=vmem, size = 0x10000, scoped, tag = 'input window, operand 7, single buffered']
    #allocation6 [shape = 's32[1]{0}', space=sflag, size = 0x4, scoped, tag = 'scoped memory for roberta_class_forward.1']
    #allocation7 [shape = 'u8[131072]{0}', space=vmem, size = 0x20000, scoped, tag = 'input window, operand 13, single buffered']
    #allocation8 [shape = 'u8[32768]{0}', space=vmem, size = 0x8000, scoped, tag = 'input window, operand 17, single buffered']
    #allocation9 [shape = 's32[1]{0}', space=sflag, size = 0x4, scoped, tag = 'scoped memory for roberta_class_forward.1']
    #allocation10 [shape = 'u8[32768]{0}', space=vmem, size = 0x8000, scoped, tag = 'input window, operand 19, single buffered']
    #allocation11 [shape = 'u8[1024]{0}', space=vmem, size = 0x400, scoped, tag = 'output window, operand 0, single buffered']
    %26 = vsyncpa [#allocation3], 0
    %27 = vsyncpa [#allocation6], 0
    %28 = vsyncpa [#allocation9], 0
    %29 = vsyncpa [#allocation4], 0
    // Predicated region
    $region2: #{roberta_class_forward.1} parent=1 // pred_check
      _
    $region3: #{roberta_class_forward.1} parent=1 // pred_check_branch
      %31 = sbr.rel (0) target = $region5
    $region4: #{roberta_class_forward.1} parent=1 // pred_region
      _
    $region5: #{roberta_class_forward.1} parent=1 // pred_fallthru
      _
    // Predicated region
    $region6: #{roberta_class_forward.1} parent=1 // pred_check
      _
    $region7: #{roberta_class_forward.1} parent=1 // pred_check_branch
      %33 = sbr.rel (0) target = $region9
    $region8: #{roberta_class_forward.1} parent=1 // pred_region
      _
    $region9: #{roberta_class_forward.1} parent=1 // pred_fallthru
      _
    // Predicated region
    $region10: #{roberta_class_forward.1} parent=1 // pred_check
      _
    $region11: #{roberta_class_forward.1} parent=1 // pred_check_branch
      %35 = sbr.rel (0) target = $region13
    $region12: #{roberta_class_forward.1} parent=1 // pred_region
      _
    $region13: #{roberta_class_forward.1} parent=1 // pred_fallthru
      _
    // Predicated region
    $region14: #{roberta_class_forward.1} parent=1 // pred_check
      _
    $region15: #{roberta_class_forward.1} parent=1 // pred_check_branch
      %37 = sbr.rel (0) target = $region17
    $region16: #{roberta_class_forward.1} parent=1 // pred_region
      _
    $region17: #{roberta_class_forward.1} parent=1 // pred_fallthru
      _
    // Predicated region
    $region18: #{roberta_class_forward.1} parent=1 // pred_check
      _
    $region19: #{roberta_class_forward.1} parent=1 // pred_check_branch
      %39 = sbr.rel (0) target = $region21
    $region20: #{roberta_class_forward.1} parent=1 // pred_region
      _
    $region21: #{roberta_class_forward.1} parent=1 // pred_fallthru
      _
    // Predicated region
    $region22: #{roberta_class_forward.1} parent=1 // pred_check
      _
    $region23: #{roberta_class_forward.1} parent=1 // pred_check_branch
      %41 = sbr.rel (0) target = $region25
    $region24: #{roberta_class_forward.1} parent=1 // pred_region
      %43 = vsyncadd [#allocation3], 0
      %s44 = sshll.u32 %s5, 4
      %s45 = int_to_ptr.hbm [resolvable:$true] %s44
      %s46 = sshll.u32 [#allocation2], 4
      %s47 = int_to_ptr.vmem [resolvable:$true] %s46
      %52 = dma.hbm_to_vmem [thread:$0]  %s45, 6144, %s47, [#allocation3], 192, 192, 12
    $region25: #{roberta_class_forward.1} parent=1 // pred_fallthru
      _
    // Predicated region
    $region26: #{roberta_class_forward.1} parent=1 // pred_check
      _
    $region27: #{roberta_class_forward.1} parent=1 // pred_check_branch
      %54 = sbr.rel (0) target = $region29
    $region28: #{roberta_class_forward.1} parent=1 // pred_region
      _
    $region29: #{roberta_class_forward.1} parent=1 // pred_fallthru
      _
    // Predicated region
    $region30: #{roberta_class_forward.1} parent=1 // pred_check
      _
    $region31: #{roberta_class_forward.1} parent=1 // pred_check_branch
      %56 = sbr.rel (0) target = $region33
    $region32: #{roberta_class_forward.1} parent=1 // pred_region
      %58 = vsyncadd [#allocation6], 0
      %s59 = sshll.u32 %s7, 4
      %s60 = int_to_ptr.hbm [resolvable:$true] %s59
      %s61 = sshll.u32 [#allocation5], 4
      %s62 = int_to_ptr.vmem [resolvable:$true] %s61
      %67 = dma.hbm_to_vmem [thread:$0]  %s60, 2048, %s62, [#allocation6], 64, 64, 4
    $region33: #{roberta_class_forward.1} parent=1 // pred_fallthru
      _
    // Predicated region
    $region34: #{roberta_class_forward.1} parent=1 // pred_check
      _
    $region35: #{roberta_class_forward.1} parent=1 // pred_check_branch
      %69 = sbr.rel (0) target = $region37
    $region36: #{roberta_class_forward.1} parent=1 // pred_region
      _
    $region37: #{roberta_class_forward.1} parent=1 // pred_fallthru
      _
    // Predicated region
    $region38: #{roberta_class_forward.1} parent=1 // pred_check
      _
    $region39: #{roberta_class_forward.1} parent=1 // pred_check_branch
      %71 = sbr.rel (0) target = $region41
    $region40: #{roberta_class_forward.1} parent=1 // pred_region
      _
    $region41: #{roberta_class_forward.1} parent=1 // pred_fallthru
      _
    // Predicated region
    $region42: #{roberta_class_forward.1} parent=1 // pred_check
      _
    $region43: #{roberta_class_forward.1} parent=1 // pred_check_branch
      %73 = sbr.rel (0) target = $region45
    $region44: #{roberta_class_forward.1} parent=1 // pred_region
      _
    $region45: #{roberta_class_forward.1} parent=1 // pred_fallthru
      _
    // Predicated region
    $region46: #{roberta_class_forward.1} parent=1 // pred_check
      _
    $region47: #{roberta_class_forward.1} parent=1 // pred_check_branch
      %75 = sbr.rel (0) target = $region49
    $region48: #{roberta_class_forward.1} parent=1 // pred_region
      _
    $region49: #{roberta_class_forward.1} parent=1 // pred_fallthru
      _
    // Predicated region
    $region50: #{roberta_class_forward.1} parent=1 // pred_check
      _
    $region51: #{roberta_class_forward.1} parent=1 // pred_check_branch
      %77 = sbr.rel (0) target = $region53
    $region52: #{roberta_class_forward.1} parent=1 // pred_region
      _
    $region53: #{roberta_class_forward.1} parent=1 // pred_fallthru
      _
    // Predicated region
    $region54: #{roberta_class_forward.1} parent=1 // pred_check
      _
    $region55: #{roberta_class_forward.1} parent=1 // pred_check_branch
      %79 = sbr.rel (0) target = $region57
    $region56: #{roberta_class_forward.1} parent=1 // pred_region
      %81 = vsyncadd [#allocation6], 0
      %s82 = sshll.u32 %s13, 4
      %s83 = int_to_ptr.hbm [resolvable:$true] %s82
      %s84 = sshll.u32 [#allocation7], 4
      %s85 = int_to_ptr.vmem [resolvable:$true] %s84
      %90 = dma.hbm_to_vmem [thread:$0]  %s83, 4096, %s85, [#allocation6], 64, 64, 4
    $region57: #{roberta_class_forward.1} parent=1 // pred_fallthru
      _
    // Predicated region
    $region58: #{roberta_class_forward.1} parent=1 // pred_check
      _
    $region59: #{roberta_class_forward.1} parent=1 // pred_check_branch
      %92 = sbr.rel (0) target = $region61
    $region60: #{roberta_class_forward.1} parent=1 // pred_region
      _
    $region61: #{roberta_class_forward.1} parent=1 // pred_fallthru
      _
    // Predicated region
    $region62: #{roberta_class_forward.1} parent=1 // pred_check
      _
    $region63: #{roberta_class_forward.1} parent=1 // pred_check_branch
      %94 = sbr.rel (0) target = $region65
    $region64: #{roberta_class_forward.1} parent=1 // pred_region
      _
    $region65: #{roberta_class_forward.1} parent=1 // pred_fallthru
      _
    // Predicated region
    $region66: #{roberta_class_forward.1} parent=1 // pred_check
      _
    $region67: #{roberta_class_forward.1} parent=1 // pred_check_branch
      %96 = sbr.rel (0) target = $region69
    $region68: #{roberta_class_forward.1} parent=1 // pred_region
      _
    $region69: #{roberta_class_forward.1} parent=1 // pred_fallthru
      _
    // Predicated region
    $region70: #{roberta_class_forward.1} parent=1 // pred_check
      _
    $region71: #{roberta_class_forward.1} parent=1 // pred_check_branch
      %98 = sbr.rel (0) target = $region73
    $region72: #{roberta_class_forward.1} parent=1 // pred_region
      %100 = vsyncadd [#allocation9], 0
      %s101 = sshll.u32 %s17, 4
      %s102 = int_to_ptr.hbm [resolvable:$true] %s101
      %s103 = sshll.u32 [#allocation8], 4
      %s104 = int_to_ptr.vmem [resolvable:$true] %s103
      %109 = dma.hbm_to_vmem [thread:$0]  %s102, 1024, %s104, [#allocation9], 64, 64, 4
    $region73: #{roberta_class_forward.1} parent=1 // pred_fallthru
      _
    // Predicated region
    $region74: #{roberta_class_forward.1} parent=1 // pred_check
      _
    $region75: #{roberta_class_forward.1} parent=1 // pred_check_branch
      %111 = sbr.rel (0) target = $region77
    $region76: #{roberta_class_forward.1} parent=1 // pred_region
      _
    $region77: #{roberta_class_forward.1} parent=1 // pred_fallthru
      _
    // Predicated region
    $region78: #{roberta_class_forward.1} parent=1 // pred_check
      _
    $region79: #{roberta_class_forward.1} parent=1 // pred_check_branch
      %113 = sbr.rel (0) target = $region81
    $region80: #{roberta_class_forward.1} parent=1 // pred_region
      %115 = vsyncadd [#allocation9], 0
      %s116 = sshll.u32 %s19, 4
      %s117 = int_to_ptr.hbm [resolvable:$true] %s116
      %s118 = sshll.u32 [#allocation10], 4
      %s119 = int_to_ptr.vmem [resolvable:$true] %s118
      %124 = dma.hbm_to_vmem [thread:$0]  %s117, 1024, %s119, [#allocation9], 64, 64, 4
    $region81: #{roberta_class_forward.1} parent=1 // pred_fallthru
      _
    // Predicated region
    $region82: #{roberta_class_forward.1} parent=1 // pred_check
      _
    $region83: #{roberta_class_forward.1} parent=1 // pred_check_branch
      %126 = sbr.rel (0) target = $region85
    $region84: #{roberta_class_forward.1} parent=1 // pred_region
      _
    $region85: #{roberta_class_forward.1} parent=1 // pred_fallthru
      _
    // Predicated region
    $region86: #{roberta_class_forward.1} parent=1 // pred_check
      _
    $region87: #{roberta_class_forward.1} parent=1 // pred_check_branch
      %128 = sbr.rel (0) target = $region89
    $region88: #{roberta_class_forward.1} parent=1 // pred_region
      %130 = dma.done [#allocation3], 6144
    $region89: #{roberta_class_forward.1} parent=1 // pred_fallthru
      _
    // Predicated region
    $region90: #{roberta_class_forward.1} parent=1 // pred_check
      _
    $region91: #{roberta_class_forward.1} parent=1 // pred_check_branch
      %132 = sbr.rel (0) target = $region93
    $region92: #{roberta_class_forward.1} parent=1 // pred_region
      %134 = dma.done [#allocation6], 2048
    $region93: #{roberta_class_forward.1} parent=1 // pred_fallthru
      _
    // Predicated region
    $region94: #{roberta_class_forward.1} parent=1 // pred_check
      _
    $region95: #{roberta_class_forward.1} parent=1 // pred_check_branch
      %136 = sbr.rel (0) target = $region97
    $region96: #{roberta_class_forward.1} parent=1 // pred_region
      %138 = dma.done [#allocation6], 4096
    $region97: #{roberta_class_forward.1} parent=1 // pred_fallthru
      _
    // Predicated region
    $region98: #{roberta_class_forward.1} parent=1 // pred_check
      _
    $region99: #{roberta_class_forward.1} parent=1 // pred_check_branch
      %140 = sbr.rel (0) target = $region101
    $region100: #{roberta_class_forward.1} parent=1 // pred_region
      %142 = dma.done [#allocation9], 1024
    $region101: #{roberta_class_forward.1} parent=1 // pred_fallthru
      _
    // Predicated region
    $region102: #{roberta_class_forward.1} parent=1 // pred_check
      _
    $region103: #{roberta_class_forward.1} parent=1 // pred_check_branch
      %144 = sbr.rel (0) target = $region105
    $region104: #{roberta_class_forward.1} parent=1 // pred_region
      %146 = dma.done [#allocation9], 1024
    $region105: #{roberta_class_forward.1} parent=1 // pred_fallthru
      _
    %v148 = vld [vmem:[%s0] sm:$0xff]
    %v149 = vld [vmem:[%s0 + $0x8] sm:$0xff]
    %v150 = vld [vmem:[%s3] sm:$0x1]
    %v151 = vld [vmem:[%s4] sm:$0x1]
    %152 = vadd.xlane.f32.xlu0 %v148
    %v153 = vpop.xlane.xlu0 %152
    %154 = vadd.xlane.f32.xlu0 %v149
    %v155 = vpop.xlane.xlu0 %154
    %v156 = vrcp.pop 128.0
    %v157 = vmul.f32 128.0, %v156
    %v158 = vsub.f32 1.0, %v157
    %v159 = vmul.f32 %v156, %v158
    %v160 = vadd.f32 %v156, %v159
    %vm161 = vweird.f32 %v156
    %v162 = vsel %vm161, %v156, %v160
    %v163 = vmul.f32 %v153, %v162
    %v164 = vmul.f32 %v155, %v162
    %v165 = vsub.f32 %v148, %v163
    %v166 = vsub.f32 %v149, %v164
    %v167 = vmul.f32 %v165, %v165
    %v168 = vmul.f32 %v166, %v166
    %169 = vadd.xlane.f32.xlu0 %v167
    %v170 = vpop.xlane.xlu0 %169
    %171 = vadd.xlane.f32.xlu0 %v168
    %v172 = vpop.xlane.xlu0 %171
    %v173 = vmul.f32 %v170, %v162
    %v174 = vmul.f32 %v172, %v162
    %v175 = vadd.f32 %v173, 1e-05
    %v176 = vadd.f32 %v174, 1e-05
    %v177 = vrsqrt.pop %v175
    %v178 = vmul.f32 %v177, %v175
    %v179 = vmul.f32 %v178, %v177
    %v180 = vmul.f32 0.5, %v179
    %v181 = vsub.f32 1.5, %v180
    %v182 = vmul.f32 %v177, %v181
    %vm183 = vweird.f32 %v175
    %vm184 = vweird.f32 %v177
    %vm185 = vmor %vm183, %vm184
    %v186 = vsel %vm185, %v177, %v182
    %v187 = vrsqrt.pop %v176
    %v188 = vmul.f32 %v187, %v176
    %v189 = vmul.f32 %v188, %v187
    %v190 = vmul.f32 0.5, %v189
    %v191 = vsub.f32 1.5, %v190
    %v192 = vmul.f32 %v187, %v191
    %vm193 = vweird.f32 %v176
    %vm194 = vweird.f32 %v187
    %vm195 = vmor %vm193, %vm194
    %v196 = vsel %vm195, %v187, %v192
    %v197 = vmul.f32 %v165, %v186
    %v198 = vmul.f32 %v166, %v196
    %v200 = vperm.slane %v150, 0
    %v202 = vmul.f32 %v197, %v200
    %v203 = vmul.f32 %v198, %v200
    %v205 = vperm.slane %v151, 0
    %v207 = vadd.f32 %v202, %v205
    %v208 = vadd.f32 %v203, %v205
    %v209 = vld [vmem:[%s1] sm:$0x1]
    %v210 = vld [vmem:[%s1 + $0x1] sm:$0x1]
    %v211 = vpack.c.bf16 %v208, %v207
    %v212 = vld [vmem:[#allocation2] sm:$0xff]
    %v213 = vld [vmem:[#allocation2 + $0x8] sm:$0xf]
    %v214 = vld [vmem:[#allocation2 + $0xc] sm:$0xff]
    %v215 = vld [vmem:[#allocation2 + $0x14] sm:$0xf]
    %v216 = vld [vmem:[#allocation2 + $0x18] sm:$0xff]
    %v217 = vld [vmem:[#allocation2 + $0x20] sm:$0xf]
    %v218 = vld [vmem:[#allocation2 + $0x24] sm:$0xff]
    %v219 = vld [vmem:[#allocation2 + $0x2c] sm:$0xf]
    %v220 = vld [vmem:[#allocation2 + $0x30] sm:$0xff]
    %v221 = vld [vmem:[#allocation2 + $0x38] sm:$0xf]
    %v222 = vld [vmem:[#allocation2 + $0x3c] sm:$0xff]
    %v223 = vld [vmem:[#allocation2 + $0x44] sm:$0xf]
    %v224 = vld [vmem:[#allocation2 + $0x48] sm:$0xff]
    %v225 = vld [vmem:[#allocation2 + $0x50] sm:$0xf]
    %v226 = vld [vmem:[#allocation2 + $0x54] sm:$0xff]
    %v227 = vld [vmem:[#allocation2 + $0x5c] sm:$0xf]
    %v228 = vld [vmem:[#allocation2 + $0x60] sm:$0xff]
    %v229 = vld [vmem:[#allocation2 + $0x68] sm:$0xf]
    %v230 = vld [vmem:[#allocation2 + $0x6c] sm:$0xff]
    %v231 = vld [vmem:[#allocation2 + $0x74] sm:$0xf]
    %v232 = vld [vmem:[#allocation2 + $0x78] sm:$0xff]
    %v233 = vld [vmem:[#allocation2 + $0x80] sm:$0xf]
    %v234 = vld [vmem:[#allocation2 + $0x84] sm:$0xff]
    %v235 = vld [vmem:[#allocation2 + $0x8c] sm:$0xf]
    %v236 = vld [vmem:[#allocation2 + $0x90] sm:$0xff]
    %v237 = vld [vmem:[#allocation2 + $0x98] sm:$0xf]
    %v238 = vld [vmem:[#allocation2 + $0x9c] sm:$0xff]
    %v239 = vld [vmem:[#allocation2 + $0xa4] sm:$0xf]
    %v240 = vld [vmem:[#allocation2 + $0xa8] sm:$0xff]
    %v241 = vld [vmem:[#allocation2 + $0xb0] sm:$0xf]
    %v242 = vld [vmem:[#allocation2 + $0xb4] sm:$0xff]
    %v243 = vld [vmem:[#allocation2 + $0xbc] sm:$0xf]
    %v244 = vld [vmem:[%s6] sm:$0x7]
    %v246 = vperm.slane %v244, 0
    %v247 = vperm.slane %v244, 1
    %v248 = vperm.slane %v244, 2
    %v284 = vunpack.c.l.b16 %v212
    %v285 = vunpack.c.h.b16 %v212
    %v286 = vunpack.c.l.b16 %v213
    %v287 = vunpack.c.l.b16 %v214
    %v288 = vunpack.c.h.b16 %v214
    %v289 = vunpack.c.l.b16 %v215
    %v290 = vunpack.c.l.b16 %v216
    %v291 = vunpack.c.h.b16 %v216
    %v292 = vunpack.c.l.b16 %v217
    %v293 = vunpack.c.l.b16 %v218
    %v294 = vunpack.c.h.b16 %v218
    %v295 = vunpack.c.l.b16 %v219
    %v296 = vunpack.c.l.b16 %v220
    %v297 = vunpack.c.h.b16 %v220
    %v298 = vunpack.c.l.b16 %v221
    %v299 = vunpack.c.l.b16 %v222
    %v300 = vunpack.c.h.b16 %v222
    %v301 = vunpack.c.l.b16 %v223
    %v302 = vunpack.c.l.b16 %v224
    %v303 = vunpack.c.h.b16 %v224
    %v304 = vunpack.c.l.b16 %v225
    %v305 = vunpack.c.l.b16 %v226
    %v306 = vunpack.c.h.b16 %v226
    %v307 = vunpack.c.l.b16 %v227
    %v308 = vunpack.c.l.b16 %v228
    %v309 = vunpack.c.h.b16 %v228
    %v310 = vunpack.c.l.b16 %v229
    %v311 = vunpack.c.l.b16 %v230
    %v312 = vunpack.c.h.b16 %v230
    %v313 = vunpack.c.l.b16 %v231
    %v314 = vunpack.c.l.b16 %v232
    %v315 = vunpack.c.h.b16 %v232
    %v316 = vunpack.c.l.b16 %v233
    %v317 = vunpack.c.l.b16 %v234
    %v318 = vunpack.c.h.b16 %v234
    %v319 = vunpack.c.l.b16 %v235
    %v320 = vunpack.c.l.b16 %v236
    %v321 = vunpack.c.h.b16 %v236
    %v322 = vunpack.c.l.b16 %v237
    %v323 = vunpack.c.l.b16 %v238
    %v324 = vunpack.c.h.b16 %v238
    %v325 = vunpack.c.l.b16 %v239
    %v326 = vunpack.c.l.b16 %v240
    %v327 = vunpack.c.h.b16 %v240
    %v328 = vunpack.c.l.b16 %v241
    %v329 = vunpack.c.l.b16 %v242
    %v330 = vunpack.c.h.b16 %v242
    %v331 = vunpack.c.l.b16 %v243
    %v332 = vpack.c.b16 %v287, %v284
    %v333 = vpack.c.b16 %v288, %v285
    %v334 = vpack.c.b16 %v289, %v286
    %v335 = vpack.c.b16 %v293, %v290
    %v336 = vpack.c.b16 %v294, %v291
    %v337 = vpack.c.b16 %v295, %v292
    %v338 = vpack.c.b16 %v299, %v296
    %v339 = vpack.c.b16 %v300, %v297
    %v340 = vpack.c.b16 %v301, %v298
    %v341 = vpack.c.b16 %v305, %v302
    %v342 = vpack.c.b16 %v306, %v303
    %v343 = vpack.c.b16 %v307, %v304
    %v344 = vpack.c.b16 %v311, %v308
    %v345 = vpack.c.b16 %v312, %v309
    %v346 = vpack.c.b16 %v313, %v310
    %v347 = vpack.c.b16 %v317, %v314
    %v348 = vpack.c.b16 %v318, %v315
    %v349 = vpack.c.b16 %v319, %v316
    %v350 = vpack.c.b16 %v323, %v320
    %v351 = vpack.c.b16 %v324, %v321
    %v352 = vpack.c.b16 %v325, %v322
    %v353 = vpack.c.b16 %v329, %v326
    %v354 = vpack.c.b16 %v330, %v327
    %v355 = vpack.c.b16 %v331, %v328
    %380 = vmatpush.bf16.msra.mxu0 %v353
    %381 = vmatpush.bf16.msra.mxu0 %v350
    %382 = vmatpush.bf16.msra.mxu0 %v347
    %383 = vmatpush.bf16.msra.mxu0 %v344
    %384 = vmatpush.bf16.msra.mxu0 %v341
    %385 = vmatpush.bf16.msra.mxu0 %v338
    %386 = vmatpush.bf16.msra.mxu0 %v335
    %387 = vmatpush.bf16.msra.mxu0 %v332
    %388 = vmatmul.bf16.gmra.mxu0 %v211
    %v389 = vpop.f32.mrf.mxu0
    %v390 = vadd.f32 %v246, %v389
    %v391 = vpop.f32.mrf.mxu0
    %v392 = vadd.f32 %v246, %v391
    %393 = vdwg.mxu0
    %394 = vmatpush.bf16.msra.mxu0 %v354
    %395 = vmatpush.bf16.msra.mxu0 %v351
    %396 = vmatpush.bf16.msra.mxu0 %v348
    %397 = vmatpush.bf16.msra.mxu0 %v345
    %398 = vmatpush.bf16.msra.mxu0 %v342
    %399 = vmatpush.bf16.msra.mxu0 %v339
    %400 = vmatpush.bf16.msra.mxu0 %v336
    %401 = vmatpush.bf16.msra.mxu0 %v333
    %402 = vmatmul.bf16.gmra.mxu0 %v211
    %v403 = vpop.f32.mrf.mxu0
    %v404 = vadd.f32 %v247, %v403
    %v405 = vpop.f32.mrf.mxu0
    %v406 = vadd.f32 %v247, %v405
    %407 = vdwg.mxu0
    %408 = vmatpush.bf16.msra.mxu0 %v355
    %409 = vmatpush.bf16.msra.mxu0 %v352
    %410 = vmatpush.bf16.msra.mxu0 %v349
    %411 = vmatpush.bf16.msra.mxu0 %v346
    %412 = vmatpush.bf16.msra.mxu0 %v343
    %413 = vmatpush.bf16.msra.mxu0 %v340
    %414 = vmatpush.bf16.msra.mxu0 %v337
    %415 = vmatpush.bf16.msra.mxu0 %v334
    %416 = vmatmul.bf16.gmra.mxu0 %v211
    %v417 = vpop.f32.mrf.mxu0
    %v418 = vadd.f32 %v248, %v417
    %v419 = vpop.f32.mrf.mxu0
    %v420 = vadd.f32 %v248, %v419
    %421 = vdwg.mxu0
    %v422 = vmul.f32 %v390, 0.17677669
    %v423 = vmul.f32 %v392, 0.17677669
    %v424 = vpack.c.bf16 %v422, %v422
    %v425 = vpack.c.bf16 %v423, %v423
    %v426 = vpack.c.bf16 %v404, %v404
    %v427 = vpack.c.bf16 %v406, %v406
    %v430 = vperm.slane %v209, 0
    %v431 = vperm.slane %v210, 0
    %vm434 = vcmask 261120
    %v436 = vsel %vm434, %v424, 0
    %v439 = vsel %vm434, %v426, 0
    %441 = vmatpush.bf16.xpose.msra.mxu0 0
    %442 = vmatpush.bf16.xpose.msra.mxu0 0
    %443 = vmatpush.bf16.xpose.msra.mxu0 0
    %444 = vmatpush.bf16.xpose.msra.mxu0 0
    %445 = vmatpush.bf16.xpose.msra.mxu0 0
    %446 = vmatpush.bf16.xpose.msra.mxu0 0
    %447 = vmatpush.bf16.xpose.msra.mxu0 0
    %448 = vmatpush.bf16.xpose.msra.mxu0 %v439
    %449 = vmatmul.bf16.gmra.mxu0 %v436
    %v450 = vpop.f32.mrf.mxu0
    %v451 = vadd.f32 %v430, %v450
    %v452 = vpop.f32.mrf.mxu0
    %453 = vdwg.mxu0
    %v455 = vsel %vm434, %v425, 0
    %v458 = vsel %vm434, %v427, 0
    %460 = vmatpush.bf16.xpose.msra.mxu0 0
    %461 = vmatpush.bf16.xpose.msra.mxu0 0
    %462 = vmatpush.bf16.xpose.msra.mxu0 0
    %463 = vmatpush.bf16.xpose.msra.mxu0 0
    %464 = vmatpush.bf16.xpose.msra.mxu0 0
    %465 = vmatpush.bf16.xpose.msra.mxu0 0
    %466 = vmatpush.bf16.xpose.msra.mxu0 0
    %467 = vmatpush.bf16.xpose.msra.mxu0 %v458
    %468 = vmatmul.bf16.gmra.mxu0 %v455
    %v469 = vpop.f32.mrf.mxu0
    %v470 = vadd.f32 %v431, %v469
    %v471 = vpop.f32.mrf.mxu0
    %472 = vdwg.mxu0
    %vm473 = vcmask 64512
    %v474 = vsel %vm473, %v451, -inf
    %475 = vmax.xlane.f32.xlu0 %v474
    %v476 = vpop.xlane.xlu0 %475
    %v477 = vsel %vm473, %v470, -inf
    %478 = vmax.xlane.f32.xlu0 %v477
    %v479 = vpop.xlane.xlu0 %478
    %v480 = vsub.f32 %v451, %v476
    %v481 = vsub.f32 %v470, %v479
    %v482 = vmul.f32 %v480, 1.442695
    %v483 = vpow.pop %v482
    %v484 = vmul.f32 %v481, 1.442695
    %v485 = vpow.pop %v484
    %v486 = vsel %vm473, %v483, 0.0
    %487 = vadd.xlane.f32.xlu0 %v486
    %v488 = vpop.xlane.xlu0 %487
    %v489 = vsel %vm473, %v485, 0.0
    %490 = vadd.xlane.f32.xlu0 %v489
    %v491 = vpop.xlane.xlu0 %490
    %v492 = vrcp.pop %v488
    %v493 = vrcp.pop %v491
    %v494 = vmul.f32 %v483, %v492
    %v495 = vmul.f32 %v485, %v493
    %v496 = vpack.c.bf16 %v494, %v494
    %v497 = vpack.c.bf16 %v495, %v495
    %v498 = vpack.c.bf16 %v418, %v418
    %v499 = vpack.c.bf16 %v420, %v420
    %v501 = vsel %vm473, %v496, 0
    %vm503 = vcmask 1043456
    %v505 = vsel %vm503, %v498, 0
    %507 = vmatpush.bf16.msra.mxu0 0
    %508 = vmatpush.bf16.msra.mxu0 0
    %509 = vmatpush.bf16.msra.mxu0 0
    %510 = vmatpush.bf16.msra.mxu0 0
    %511 = vmatpush.bf16.msra.mxu0 0
    %512 = vmatpush.bf16.msra.mxu0 0
    %513 = vmatpush.bf16.msra.mxu0 0
    %514 = vmatpush.bf16.msra.mxu0 %v505
    %515 = vmatmul.bf16.gmra.mxu0 %v501
    %v516 = vpop.f32.mrf.mxu0
    %v517 = vadd.f32 0.0, %v516
    %v518 = vpop.f32.mrf.mxu0
    %519 = vdwg.mxu0
    %v521 = vsel %vm473, %v497, 0
    %v524 = vsel %vm503, %v499, 0
    %526 = vmatpush.bf16.msra.mxu0 0
    %527 = vmatpush.bf16.msra.mxu0 0
    %528 = vmatpush.bf16.msra.mxu0 0
    %529 = vmatpush.bf16.msra.mxu0 0
    %530 = vmatpush.bf16.msra.mxu0 0
    %531 = vmatpush.bf16.msra.mxu0 0
    %532 = vmatpush.bf16.msra.mxu0 0
    %533 = vmatpush.bf16.msra.mxu0 %v524
    %534 = vmatmul.bf16.gmra.mxu0 %v521
    %v535 = vpop.f32.mrf.mxu0
    %v536 = vadd.f32 0.0, %v535
    %v537 = vpop.f32.mrf.mxu0
    %538 = vdwg.mxu0
    %v540 = vunpack.c.l.b16 %v424
    %v541 = vpack.c.b16 %v540, %v540
    %542 = vrot.lane.b32.xlu0 %v541, 96
    %v543 = vpop.permute.xlu0 %542
    %v545 = vunpack.c.l.b16 %v426
    %v546 = vpack.c.b16 %v545, %v545
    %547 = vrot.lane.b32.xlu0 %v546, 96
    %v548 = vpop.permute.xlu0 %547
    %v550 = vsel %vm434, %v543, 0
    %v553 = vsel %vm434, %v548, 0
    %555 = vmatpush.bf16.xpose.msra.mxu0 0
    %556 = vmatpush.bf16.xpose.msra.mxu0 0
    %557 = vmatpush.bf16.xpose.msra.mxu0 0
    %558 = vmatpush.bf16.xpose.msra.mxu0 0
    %559 = vmatpush.bf16.xpose.msra.mxu0 0
    %560 = vmatpush.bf16.xpose.msra.mxu0 0
    %561 = vmatpush.bf16.xpose.msra.mxu0 0
    %562 = vmatpush.bf16.xpose.msra.mxu0 %v553
    %563 = vmatmul.bf16.gmra.mxu0 %v550
    %v564 = vpop.f32.mrf.mxu0
    %v565 = vadd.f32 %v430, %v564
    %v566 = vpop.f32.mrf.mxu0
    %567 = vdwg.mxu0
    %v569 = vunpack.c.l.b16 %v425
    %v570 = vpack.c.b16 %v569, %v569
    %571 = vrot.lane.b32.xlu0 %v570, 96
    %v572 = vpop.permute.xlu0 %571
    %v574 = vunpack.c.l.b16 %v427
    %v575 = vpack.c.b16 %v574, %v574
    %576 = vrot.lane.b32.xlu0 %v575, 96
    %v577 = vpop.permute.xlu0 %576
    %v579 = vsel %vm434, %v572, 0
    %v582 = vsel %vm434, %v577, 0
    %584 = vmatpush.bf16.xpose.msra.mxu0 0
    %585 = vmatpush.bf16.xpose.msra.mxu0 0
    %586 = vmatpush.bf16.xpose.msra.mxu0 0
    %587 = vmatpush.bf16.xpose.msra.mxu0 0
    %588 = vmatpush.bf16.xpose.msra.mxu0 0
    %589 = vmatpush.bf16.xpose.msra.mxu0 0
    %590 = vmatpush.bf16.xpose.msra.mxu0 0
    %591 = vmatpush.bf16.xpose.msra.mxu0 %v582
    %592 = vmatmul.bf16.gmra.mxu0 %v579
    %v593 = vpop.f32.mrf.mxu0
    %v594 = vadd.f32 %v431, %v593
    %v595 = vpop.f32.mrf.mxu0
    %596 = vdwg.mxu0
    %v597 = vsel %vm473, %v565, -inf
    %598 = vmax.xlane.f32.xlu0 %v597
    %v599 = vpop.xlane.xlu0 %598
    %v600 = vsel %vm473, %v594, -inf
    %601 = vmax.xlane.f32.xlu0 %v600
    %v602 = vpop.xlane.xlu0 %601
    %v603 = vsub.f32 %v565, %v599
    %v604 = vsub.f32 %v594, %v602
    %v605 = vmul.f32 %v603, 1.442695
    %v606 = vpow.pop %v605
    %v607 = vmul.f32 %v604, 1.442695
    %v608 = vpow.pop %v607
    %v609 = vsel %vm473, %v606, 0.0
    %610 = vadd.xlane.f32.xlu0 %v609
    %v611 = vpop.xlane.xlu0 %610
    %v612 = vsel %vm473, %v608, 0.0
    %613 = vadd.xlane.f32.xlu0 %v612
    %v614 = vpop.xlane.xlu0 %613
    %v615 = vrcp.pop %v611
    %v616 = vrcp.pop %v614
    %v617 = vmul.f32 %v606, %v615
    %v618 = vmul.f32 %v608, %v616
    %v619 = vpack.c.bf16 %v617, %v617
    %v620 = vpack.c.bf16 %v618, %v618
    %v622 = vunpack.c.l.b16 %v498
    %v623 = vpack.c.b16 %v622, %v622
    %624 = vrot.lane.b32.xlu0 %v623, 96
    %v625 = vpop.permute.xlu0 %624
    %v627 = vsel %vm473, %v619, 0
    %v630 = vsel %vm503, %v625, 0
    %632 = vmatpush.bf16.msra.mxu0 0
    %633 = vmatpush.bf16.msra.mxu0 0
    %634 = vmatpush.bf16.msra.mxu0 0
    %635 = vmatpush.bf16.msra.mxu0 0
    %636 = vmatpush.bf16.msra.mxu0 0
    %637 = vmatpush.bf16.msra.mxu0 0
    %638 = vmatpush.bf16.msra.mxu0 0
    %639 = vmatpush.bf16.msra.mxu0 %v630
    %640 = vmatmul.bf16.gmra.mxu0 %v627
    %v641 = vpop.f32.mrf.mxu0
    %v642 = vadd.f32 0.0, %v641
    %v643 = vpop.f32.mrf.mxu0
    %644 = vdwg.mxu0
    %v646 = vunpack.c.l.b16 %v499
    %v647 = vpack.c.b16 %v646, %v646
    %648 = vrot.lane.b32.xlu0 %v647, 96
    %v649 = vpop.permute.xlu0 %648
    %v651 = vsel %vm473, %v620, 0
    %v654 = vsel %vm503, %v649, 0
    %656 = vmatpush.bf16.msra.mxu0 0
    %657 = vmatpush.bf16.msra.mxu0 0
    %658 = vmatpush.bf16.msra.mxu0 0
    %659 = vmatpush.bf16.msra.mxu0 0
    %660 = vmatpush.bf16.msra.mxu0 0
    %661 = vmatpush.bf16.msra.mxu0 0
    %662 = vmatpush.bf16.msra.mxu0 0
    %663 = vmatpush.bf16.msra.mxu0 %v654
    %664 = vmatmul.bf16.gmra.mxu0 %v651
    %v665 = vpop.f32.mrf.mxu0
    %v666 = vadd.f32 0.0, %v665
    %v667 = vpop.f32.mrf.mxu0
    %668 = vdwg.mxu0
    %669 = vrot.lane.b32.xlu0 %v541, 64
    %v670 = vpop.permute.xlu0 %669
    %671 = vrot.lane.b32.xlu0 %v546, 64
    %v672 = vpop.permute.xlu0 %671
    %v674 = vsel %vm434, %v670, 0
    %v677 = vsel %vm434, %v672, 0
    %679 = vmatpush.bf16.xpose.msra.mxu0 0
    %680 = vmatpush.bf16.xpose.msra.mxu0 0
    %681 = vmatpush.bf16.xpose.msra.mxu0 0
    %682 = vmatpush.bf16.xpose.msra.mxu0 0
    %683 = vmatpush.bf16.xpose.msra.mxu0 0
    %684 = vmatpush.bf16.xpose.msra.mxu0 0
    %685 = vmatpush.bf16.xpose.msra.mxu0 0
    %686 = vmatpush.bf16.xpose.msra.mxu0 %v677
    %687 = vmatmul.bf16.gmra.mxu0 %v674
    %v688 = vpop.f32.mrf.mxu0
    %v689 = vadd.f32 %v430, %v688
    %v690 = vpop.f32.mrf.mxu0
    %691 = vdwg.mxu0
    %692 = vrot.lane.b32.xlu0 %v570, 64
    %v693 = vpop.permute.xlu0 %692
    %694 = vrot.lane.b32.xlu0 %v575, 64
    %v695 = vpop.permute.xlu0 %694
    %v697 = vsel %vm434, %v693, 0
    %v700 = vsel %vm434, %v695, 0
    %702 = vmatpush.bf16.xpose.msra.mxu0 0
    %703 = vmatpush.bf16.xpose.msra.mxu0 0
    %704 = vmatpush.bf16.xpose.msra.mxu0 0
    %705 = vmatpush.bf16.xpose.msra.mxu0 0
    %706 = vmatpush.bf16.xpose.msra.mxu0 0
    %707 = vmatpush.bf16.xpose.msra.mxu0 0
    %708 = vmatpush.bf16.xpose.msra.mxu0 0
    %709 = vmatpush.bf16.xpose.msra.mxu0 %v700
    %710 = vmatmul.bf16.gmra.mxu0 %v697
    %v711 = vpop.f32.mrf.mxu0
    %v712 = vadd.f32 %v431, %v711
    %v713 = vpop.f32.mrf.mxu0
    %714 = vdwg.mxu0
    %v715 = vsel %vm473, %v689, -inf
    %716 = vmax.xlane.f32.xlu0 %v715
    %v717 = vpop.xlane.xlu0 %716
    %v718 = vsel %vm473, %v712, -inf
    %719 = vmax.xlane.f32.xlu0 %v718
    %v720 = vpop.xlane.xlu0 %719
    %v721 = vsub.f32 %v689, %v717
    %v722 = vsub.f32 %v712, %v720
    %v723 = vmul.f32 %v721, 1.442695
    %v724 = vpow.pop %v723
    %v725 = vmul.f32 %v722, 1.442695
    %v726 = vpow.pop %v725
    %v727 = vsel %vm473, %v724, 0.0
    %728 = vadd.xlane.f32.xlu0 %v727
    %v729 = vpop.xlane.xlu0 %728
    %v730 = vsel %vm473, %v726, 0.0
    %731 = vadd.xlane.f32.xlu0 %v730
    %v732 = vpop.xlane.xlu0 %731
    %v733 = vrcp.pop %v729
    %v734 = vrcp.pop %v732
    %v735 = vmul.f32 %v724, %v733
    %v736 = vmul.f32 %v726, %v734
    %v737 = vpack.c.bf16 %v735, %v735
    %v738 = vpack.c.bf16 %v736, %v736
    %739 = vrot.lane.b32.xlu0 %v623, 64
    %v740 = vpop.permute.xlu0 %739
    %v742 = vsel %vm473, %v737, 0
    %v745 = vsel %vm503, %v740, 0
    %747 = vmatpush.bf16.msra.mxu0 0
    %748 = vmatpush.bf16.msra.mxu0 0
    %749 = vmatpush.bf16.msra.mxu0 0
    %750 = vmatpush.bf16.msra.mxu0 0
    %751 = vmatpush.bf16.msra.mxu0 0
    %752 = vmatpush.bf16.msra.mxu0 0
    %753 = vmatpush.bf16.msra.mxu0 0
    %754 = vmatpush.bf16.msra.mxu0 %v745
    %755 = vmatmul.bf16.gmra.mxu0 %v742
    %v756 = vpop.f32.mrf.mxu0
    %v757 = vadd.f32 0.0, %v756
    %v758 = vpop.f32.mrf.mxu0
    %759 = vdwg.mxu0
    %760 = vrot.lane.b32.xlu0 %v647, 64
    %v761 = vpop.permute.xlu0 %760
    %v763 = vsel %vm473, %v738, 0
    %v766 = vsel %vm503, %v761, 0
    %768 = vmatpush.bf16.msra.mxu0 0
    %769 = vmatpush.bf16.msra.mxu0 0
    %770 = vmatpush.bf16.msra.mxu0 0
    %771 = vmatpush.bf16.msra.mxu0 0
    %772 = vmatpush.bf16.msra.mxu0 0
    %773 = vmatpush.bf16.msra.mxu0 0
    %774 = vmatpush.bf16.msra.mxu0 0
    %775 = vmatpush.bf16.msra.mxu0 %v766
    %776 = vmatmul.bf16.gmra.mxu0 %v763
    %v777 = vpop.f32.mrf.mxu0
    %v778 = vadd.f32 0.0, %v777
    %v779 = vpop.f32.mrf.mxu0
    %780 = vdwg.mxu0
    %781 = vrot.lane.b32.xlu0 %v541, 32
    %v782 = vpop.permute.xlu0 %781
    %783 = vrot.lane.b32.xlu0 %v546, 32
    %v784 = vpop.permute.xlu0 %783
    %v786 = vsel %vm434, %v782, 0
    %v789 = vsel %vm434, %v784, 0
    %791 = vmatpush.bf16.xpose.msra.mxu0 0
    %792 = vmatpush.bf16.xpose.msra.mxu0 0
    %793 = vmatpush.bf16.xpose.msra.mxu0 0
    %794 = vmatpush.bf16.xpose.msra.mxu0 0
    %795 = vmatpush.bf16.xpose.msra.mxu0 0
    %796 = vmatpush.bf16.xpose.msra.mxu0 0
    %797 = vmatpush.bf16.xpose.msra.mxu0 0
    %798 = vmatpush.bf16.xpose.msra.mxu0 %v789
    %799 = vmatmul.bf16.gmra.mxu0 %v786
    %v800 = vpop.f32.mrf.mxu0
    %v801 = vadd.f32 %v430, %v800
    %v802 = vpop.f32.mrf.mxu0
    %803 = vdwg.mxu0
    %804 = vrot.lane.b32.xlu0 %v570, 32
    %v805 = vpop.permute.xlu0 %804
    %806 = vrot.lane.b32.xlu0 %v575, 32
    %v807 = vpop.permute.xlu0 %806
    %v809 = vsel %vm434, %v805, 0
    %v812 = vsel %vm434, %v807, 0
    %814 = vmatpush.bf16.xpose.msra.mxu0 0
    %815 = vmatpush.bf16.xpose.msra.mxu0 0
    %816 = vmatpush.bf16.xpose.msra.mxu0 0
    %817 = vmatpush.bf16.xpose.msra.mxu0 0
    %818 = vmatpush.bf16.xpose.msra.mxu0 0
    %819 = vmatpush.bf16.xpose.msra.mxu0 0
    %820 = vmatpush.bf16.xpose.msra.mxu0 0
    %821 = vmatpush.bf16.xpose.msra.mxu0 %v812
    %822 = vmatmul.bf16.gmra.mxu0 %v809
    %v823 = vpop.f32.mrf.mxu0
    %v824 = vadd.f32 %v431, %v823
    %v825 = vpop.f32.mrf.mxu0
    %826 = vdwg.mxu0
    %v827 = vsel %vm473, %v801, -inf
    %828 = vmax.xlane.f32.xlu0 %v827
    %v829 = vpop.xlane.xlu0 %828
    %v830 = vsel %vm473, %v824, -inf
    %831 = vmax.xlane.f32.xlu0 %v830
    %v832 = vpop.xlane.xlu0 %831
    %v833 = vsub.f32 %v801, %v829
    %v834 = vsub.f32 %v824, %v832
    %v835 = vmul.f32 %v833, 1.442695
    %v836 = vpow.pop %v835
    %v837 = vmul.f32 %v834, 1.442695
    %v838 = vpow.pop %v837
    %v839 = vsel %vm473, %v836, 0.0
    %840 = vadd.xlane.f32.xlu0 %v839
    %v841 = vpop.xlane.xlu0 %840
    %v842 = vsel %vm473, %v838, 0.0
    %843 = vadd.xlane.f32.xlu0 %v842
    %v844 = vpop.xlane.xlu0 %843
    %v845 = vrcp.pop %v841
    %v846 = vrcp.pop %v844
    %v847 = vmul.f32 %v836, %v845
    %v848 = vmul.f32 %v838, %v846
    %v849 = vpack.c.bf16 %v847, %v847
    %v850 = vpack.c.bf16 %v848, %v848
    %851 = vrot.lane.b32.xlu0 %v623, 32
    %v852 = vpop.permute.xlu0 %851
    %v854 = vsel %vm473, %v849, 0
    %v857 = vsel %vm503, %v852, 0
    %859 = vmatpush.bf16.msra.mxu0 0
    %860 = vmatpush.bf16.msra.mxu0 0
    %861 = vmatpush.bf16.msra.mxu0 0
    %862 = vmatpush.bf16.msra.mxu0 0
    %863 = vmatpush.bf16.msra.mxu0 0
    %864 = vmatpush.bf16.msra.mxu0 0
    %865 = vmatpush.bf16.msra.mxu0 0
    %866 = vmatpush.bf16.msra.mxu0 %v857
    %867 = vmatmul.bf16.gmra.mxu0 %v854
    %v868 = vpop.f32.mrf.mxu0
    %v869 = vadd.f32 0.0, %v868
    %v870 = vpop.f32.mrf.mxu0
    %871 = vdwg.mxu0
    %872 = vrot.lane.b32.xlu0 %v647, 32
    %v873 = vpop.permute.xlu0 %872
    %v875 = vsel %vm473, %v850, 0
    %v878 = vsel %vm503, %v873, 0
    %880 = vmatpush.bf16.msra.mxu0 0
    %881 = vmatpush.bf16.msra.mxu0 0
    %882 = vmatpush.bf16.msra.mxu0 0
    %883 = vmatpush.bf16.msra.mxu0 0
    %884 = vmatpush.bf16.msra.mxu0 0
    %885 = vmatpush.bf16.msra.mxu0 0
    %886 = vmatpush.bf16.msra.mxu0 0
    %887 = vmatpush.bf16.msra.mxu0 %v878
    %888 = vmatmul.bf16.gmra.mxu0 %v875
    %v889 = vpop.f32.mrf.mxu0
    %v890 = vadd.f32 0.0, %v889
    %v891 = vpop.f32.mrf.mxu0
    %892 = vdwg.mxu0
    %895 = vrot.lane.b32.xlu0 %v642, 32
    %v896 = vpop.permute.xlu0 %895
    %897 = vrot.lane.b32.xlu0 %v666, 32
    %v898 = vpop.permute.xlu0 %897
    %903 = vrot.lane.b32.xlu0 %v757, 64
    %v904 = vpop.permute.xlu0 %903
    %905 = vrot.lane.b32.xlu0 %v778, 64
    %v906 = vpop.permute.xlu0 %905
    %911 = vrot.lane.b32.xlu0 %v869, 96
    %v912 = vpop.permute.xlu0 %911
    %913 = vrot.lane.b32.xlu0 %v890, 96
    %v914 = vpop.permute.xlu0 %913
    %v917 = vsel %vm434, %v517, %v896
    %v918 = vsel %vm434, %v536, %v898
    %vm919 = vcmask 523264
    %v920 = vsel %vm919, %v917, %v904
    %v921 = vsel %vm919, %v918, %v906
    %vm922 = vcmask 785408
    %v923 = vsel %vm922, %v920, %v912
    %v924 = vsel %vm922, %v921, %v914
    %v925 = vpack.c.bf16 %v924, %v923
    %v926 = vld [vmem:[#allocation5] sm:$0xf]
    %v927 = vld [vmem:[#allocation5 + $0x4] sm:$0xf]
    %v928 = vld [vmem:[#allocation5 + $0x8] sm:$0xf]
    %v929 = vld [vmem:[#allocation5 + $0xc] sm:$0xf]
    %v930 = vld [vmem:[#allocation5 + $0x10] sm:$0xf]
    %v931 = vld [vmem:[#allocation5 + $0x14] sm:$0xf]
    %v932 = vld [vmem:[#allocation5 + $0x18] sm:$0xf]
    %v933 = vld [vmem:[#allocation5 + $0x1c] sm:$0xf]
    %v934 = vld [vmem:[#allocation5 + $0x20] sm:$0xf]
    %v935 = vld [vmem:[#allocation5 + $0x24] sm:$0xf]
    %v936 = vld [vmem:[#allocation5 + $0x28] sm:$0xf]
    %v937 = vld [vmem:[#allocation5 + $0x2c] sm:$0xf]
    %v938 = vld [vmem:[#allocation5 + $0x30] sm:$0xf]
    %v939 = vld [vmem:[#allocation5 + $0x34] sm:$0xf]
    %v940 = vld [vmem:[#allocation5 + $0x38] sm:$0xf]
    %v941 = vld [vmem:[#allocation5 + $0x3c] sm:$0xf]
    %v942 = vld [vmem:[%s8] sm:$0x1]
    %v944 = vperm.slane %v942, 0
    %v962 = vunpack.c.l.b16 %v926
    %v963 = vunpack.c.l.b16 %v927
    %v964 = vunpack.c.l.b16 %v928
    %v965 = vunpack.c.l.b16 %v929
    %v966 = vunpack.c.l.b16 %v930
    %v967 = vunpack.c.l.b16 %v931
    %v968 = vunpack.c.l.b16 %v932
    %v969 = vunpack.c.l.b16 %v933
    %v970 = vunpack.c.l.b16 %v934
    %v971 = vunpack.c.l.b16 %v935
    %v972 = vunpack.c.l.b16 %v936
    %v973 = vunpack.c.l.b16 %v937
    %v974 = vunpack.c.l.b16 %v938
    %v975 = vunpack.c.l.b16 %v939
    %v976 = vunpack.c.l.b16 %v940
    %v977 = vunpack.c.l.b16 %v941
    %v978 = vpack.c.b16 %v963, %v962
    %v979 = vpack.c.b16 %v965, %v964
    %v980 = vpack.c.b16 %v967, %v966
    %v981 = vpack.c.b16 %v969, %v968
    %v982 = vpack.c.b16 %v971, %v970
    %v983 = vpack.c.b16 %v973, %v972
    %v984 = vpack.c.b16 %v975, %v974
    %v985 = vpack.c.b16 %v977, %v976
    %994 = vmatpush.bf16.msra.mxu0 %v985
    %995 = vmatpush.bf16.msra.mxu0 %v984
    %996 = vmatpush.bf16.msra.mxu0 %v983
    %997 = vmatpush.bf16.msra.mxu0 %v982
    %998 = vmatpush.bf16.msra.mxu0 %v981
    %999 = vmatpush.bf16.msra.mxu0 %v980
    %1000 = vmatpush.bf16.msra.mxu0 %v979
    %1001 = vmatpush.bf16.msra.mxu0 %v978
    %1002 = vmatmul.bf16.gmra.mxu0 %v925
    %v1003 = vpop.f32.mrf.mxu0
    %v1004 = vadd.f32 %v944, %v1003
    %v1005 = vpop.f32.mrf.mxu0
    %v1006 = vadd.f32 %v944, %v1005
    %1007 = vdwg.mxu0
    %v1008 = vadd.f32 %v207, %v1004
    %v1009 = vadd.f32 %v208, %v1006
    %v1010 = vld [vmem:[%s9] sm:$0x1]
    %v1011 = vld [vmem:[%s10] sm:$0x1]
    %1012 = vadd.xlane.f32.xlu0 %v1008
    %v1013 = vpop.xlane.xlu0 %1012
    %1014 = vadd.xlane.f32.xlu0 %v1009
    %v1015 = vpop.xlane.xlu0 %1014
    %v1016 = vmul.f32 %v1013, %v162
    %v1017 = vmul.f32 %v1015, %v162
    %v1018 = vsub.f32 %v1008, %v1016
    %v1019 = vsub.f32 %v1009, %v1017
    %v1020 = vmul.f32 %v1018, %v1018
    %v1021 = vmul.f32 %v1019, %v1019
    %1022 = vadd.xlane.f32.xlu0 %v1020
    %v1023 = vpop.xlane.xlu0 %1022
    %1024 = vadd.xlane.f32.xlu0 %v1021
    %v1025 = vpop.xlane.xlu0 %1024
    %v1026 = vmul.f32 %v1023, %v162
    %v1027 = vmul.f32 %v1025, %v162
    %v1028 = vadd.f32 %v1026, 1e-05
    %v1029 = vadd.f32 %v1027, 1e-05
    %v1030 = vrsqrt.pop %v1028
    %v1031 = vmul.f32 %v1030, %v1028
    %v1032 = vmul.f32 %v1031, %v1030
    %v1033 = vmul.f32 0.5, %v1032
    %v1034 = vsub.f32 1.5, %v1033
    %v1035 = vmul.f32 %v1030, %v1034
    %vm1036 = vweird.f32 %v1028
    %vm1037 = vweird.f32 %v1030
    %vm1038 = vmor %vm1036, %vm1037
    %v1039 = vsel %vm1038, %v1030, %v1035
    %v1040 = vrsqrt.pop %v1029
    %v1041 = vmul.f32 %v1040, %v1029
    %v1042 = vmul.f32 %v1041, %v1040
    %v1043 = vmul.f32 0.5, %v1042
    %v1044 = vsub.f32 1.5, %v1043
    %v1045 = vmul.f32 %v1040, %v1044
    %vm1046 = vweird.f32 %v1029
    %vm1047 = vweird.f32 %v1040
    %vm1048 = vmor %vm1046, %vm1047
    %v1049 = vsel %vm1048, %v1040, %v1045
    %v1050 = vmul.f32 %v1018, %v1039
    %v1051 = vmul.f32 %v1019, %v1049
    %v1053 = vperm.slane %v1010, 0
    %v1055 = vmul.f32 %v1050, %v1053
    %v1056 = vmul.f32 %v1051, %v1053
    %v1058 = vperm.slane %v1011, 0
    %v1060 = vadd.f32 %v1055, %v1058
    %v1061 = vadd.f32 %v1056, %v1058
    %v1062 = vpack.c.bf16 %v1061, %v1060
    %v1063 = vld [vmem:[%s11] sm:$0xff]
    %v1064 = vld [vmem:[%s11 + $0x8] sm:$0xff]
    %v1065 = vld [vmem:[%s11 + $0x10] sm:$0xff]
    %v1066 = vld [vmem:[%s11 + $0x18] sm:$0xff]
    %v1067 = vld [vmem:[%s11 + $0x20] sm:$0xff]
    %v1068 = vld [vmem:[%s11 + $0x28] sm:$0xff]
    %v1069 = vld [vmem:[%s11 + $0x30] sm:$0xff]
    %v1070 = vld [vmem:[%s11 + $0x38] sm:$0xff]
    %v1071 = vld [vmem:[%s11 + $0x40] sm:$0xff]
    %v1072 = vld [vmem:[%s11 + $0x48] sm:$0xff]
    %v1073 = vld [vmem:[%s11 + $0x50] sm:$0xff]
    %v1074 = vld [vmem:[%s11 + $0x58] sm:$0xff]
    %v1075 = vld [vmem:[%s11 + $0x60] sm:$0xff]
    %v1076 = vld [vmem:[%s11 + $0x68] sm:$0xff]
    %v1077 = vld [vmem:[%s11 + $0x70] sm:$0xff]
    %v1078 = vld [vmem:[%s11 + $0x78] sm:$0xff]
    %v1079 = vld [vmem:[%s12] sm:$0x3]
    %v1081 = vperm.slane %v1079, 0
    %v1082 = vperm.slane %v1079, 1
    %v1101 = vunpack.c.l.b16 %v1063
    %v1102 = vunpack.c.h.b16 %v1063
    %v1103 = vunpack.c.l.b16 %v1064
    %v1104 = vunpack.c.h.b16 %v1064
    %v1105 = vunpack.c.l.b16 %v1065
    %v1106 = vunpack.c.h.b16 %v1065
    %v1107 = vunpack.c.l.b16 %v1066
    %v1108 = vunpack.c.h.b16 %v1066
    %v1109 = vunpack.c.l.b16 %v1067
    %v1110 = vunpack.c.h.b16 %v1067
    %v1111 = vunpack.c.l.b16 %v1068
    %v1112 = vunpack.c.h.b16 %v1068
    %v1113 = vunpack.c.l.b16 %v1069
    %v1114 = vunpack.c.h.b16 %v1069
    %v1115 = vunpack.c.l.b16 %v1070
    %v1116 = vunpack.c.h.b16 %v1070
    %v1117 = vunpack.c.l.b16 %v1071
    %v1118 = vunpack.c.h.b16 %v1071
    %v1119 = vunpack.c.l.b16 %v1072
    %v1120 = vunpack.c.h.b16 %v1072
    %v1121 = vunpack.c.l.b16 %v1073
    %v1122 = vunpack.c.h.b16 %v1073
    %v1123 = vunpack.c.l.b16 %v1074
    %v1124 = vunpack.c.h.b16 %v1074
    %v1125 = vunpack.c.l.b16 %v1075
    %v1126 = vunpack.c.h.b16 %v1075
    %v1127 = vunpack.c.l.b16 %v1076
    %v1128 = vunpack.c.h.b16 %v1076
    %v1129 = vunpack.c.l.b16 %v1077
    %v1130 = vunpack.c.h.b16 %v1077
    %v1131 = vunpack.c.l.b16 %v1078
    %v1132 = vunpack.c.h.b16 %v1078
    %v1133 = vpack.c.b16 %v1103, %v1101
    %v1134 = vpack.c.b16 %v1104, %v1102
    %v1135 = vpack.c.b16 %v1107, %v1105
    %v1136 = vpack.c.b16 %v1108, %v1106
    %v1137 = vpack.c.b16 %v1111, %v1109
    %v1138 = vpack.c.b16 %v1112, %v1110
    %v1139 = vpack.c.b16 %v1115, %v1113
    %v1140 = vpack.c.b16 %v1116, %v1114
    %v1141 = vpack.c.b16 %v1119, %v1117
    %v1142 = vpack.c.b16 %v1120, %v1118
    %v1143 = vpack.c.b16 %v1123, %v1121
    %v1144 = vpack.c.b16 %v1124, %v1122
    %v1145 = vpack.c.b16 %v1127, %v1125
    %v1146 = vpack.c.b16 %v1128, %v1126
    %v1147 = vpack.c.b16 %v1131, %v1129
    %v1148 = vpack.c.b16 %v1132, %v1130
    %1165 = vmatpush.bf16.msra.mxu0 %v1147
    %1166 = vmatpush.bf16.msra.mxu0 %v1145
    %1167 = vmatpush.bf16.msra.mxu0 %v1143
    %1168 = vmatpush.bf16.msra.mxu0 %v1141
    %1169 = vmatpush.bf16.msra.mxu0 %v1139
    %1170 = vmatpush.bf16.msra.mxu0 %v1137
    %1171 = vmatpush.bf16.msra.mxu0 %v1135
    %1172 = vmatpush.bf16.msra.mxu0 %v1133
    %1173 = vmatmul.bf16.gmra.mxu0 %v1062
    %v1174 = vpop.f32.mrf.mxu0
    %v1175 = vadd.f32 %v1081, %v1174
    %v1176 = vpop.f32.mrf.mxu0
    %v1177 = vadd.f32 %v1081, %v1176
    %1178 = vdwg.mxu0
    %1179 = vmatpush.bf16.msra.mxu0 %v1148
    %1180 = vmatpush.bf16.msra.mxu0 %v1146
    %1181 = vmatpush.bf16.msra.mxu0 %v1144
    %1182 = vmatpush.bf16.msra.mxu0 %v1142
    %1183 = vmatpush.bf16.msra.mxu0 %v1140
    %1184 = vmatpush.bf16.msra.mxu0 %v1138
    %1185 = vmatpush.bf16.msra.mxu0 %v1136
    %1186 = vmatpush.bf16.msra.mxu0 %v1134
    %1187 = vmatmul.bf16.gmra.mxu0 %v1062
    %v1188 = vpop.f32.mrf.mxu0
    %v1189 = vadd.f32 %v1082, %v1188
    %v1190 = vpop.f32.mrf.mxu0
    %v1191 = vadd.f32 %v1082, %v1190
    %1192 = vdwg.mxu0
    %v1193 = vmul.f32 %v1175, 0.5
    %v1194 = vmul.f32 %v1189, 0.5
    %v1195 = vmul.f32 %v1177, 0.5
    %v1196 = vmul.f32 %v1191, 0.5
    %v1197 = vmul.f32 %v1175, 0.044715
    %v1198 = vmul.f32 %v1189, 0.044715
    %v1199 = vmul.f32 %v1177, 0.044715
    %v1200 = vmul.f32 %v1191, 0.044715
    %v1201 = vmul.f32 %v1197, %v1175
    %v1202 = vmul.f32 %v1198, %v1189
    %v1203 = vmul.f32 %v1199, %v1177
    %v1204 = vmul.f32 %v1200, %v1191
    %v1205 = vmul.f32 %v1201, %v1175
    %v1206 = vmul.f32 %v1202, %v1189
    %v1207 = vmul.f32 %v1203, %v1177
    %v1208 = vmul.f32 %v1204, %v1191
    %v1209 = vadd.f32 %v1175, %v1205
    %v1210 = vadd.f32 %v1189, %v1206
    %v1211 = vadd.f32 %v1177, %v1207
    %v1212 = vadd.f32 %v1191, %v1208
    %v1213 = vmul.f32 %v1209, 0.7978846
    %v1214 = vmul.f32 %v1210, 0.7978846
    %v1215 = vmul.f32 %v1211, 0.7978846
    %v1216 = vmul.f32 %v1212, 0.7978846
    %v1217 = vtanh.pop %v1213
    %v1218 = vtanh.pop %v1214
    %v1219 = vtanh.pop %v1215
    %v1220 = vtanh.pop %v1216
    %v1221 = vadd.f32 %v1217, 1.0
    %v1222 = vadd.f32 %v1218, 1.0
    %v1223 = vadd.f32 %v1219, 1.0
    %v1224 = vadd.f32 %v1220, 1.0
    %v1225 = vmul.f32 %v1193, %v1221
    %v1226 = vmul.f32 %v1194, %v1222
    %v1227 = vmul.f32 %v1195, %v1223
    %v1228 = vmul.f32 %v1196, %v1224
    %v1229 = vpack.c.bf16 %v1227, %v1225
    %v1230 = vpack.c.bf16 %v1228, %v1226
    %v1231 = vld [vmem:[#allocation7] sm:$0xf]
    %v1232 = vld [vmem:[#allocation7 + $0x4] sm:$0xf]
    %v1233 = vld [vmem:[#allocation7 + $0x8] sm:$0xf]
    %v1234 = vld [vmem:[#allocation7 + $0xc] sm:$0xf]
    %v1235 = vld [vmem:[#allocation7 + $0x10] sm:$0xf]
    %v1236 = vld [vmem:[#allocation7 + $0x14] sm:$0xf]
    %v1237 = vld [vmem:[#allocation7 + $0x18] sm:$0xf]
    %v1238 = vld [vmem:[#allocation7 + $0x1c] sm:$0xf]
    %v1239 = vld [vmem:[#allocation7 + $0x20] sm:$0xf]
    %v1240 = vld [vmem:[#allocation7 + $0x24] sm:$0xf]
    %v1241 = vld [vmem:[#allocation7 + $0x28] sm:$0xf]
    %v1242 = vld [vmem:[#allocation7 + $0x2c] sm:$0xf]
    %v1243 = vld [vmem:[#allocation7 + $0x30] sm:$0xf]
    %v1244 = vld [vmem:[#allocation7 + $0x34] sm:$0xf]
    %v1245 = vld [vmem:[#allocation7 + $0x38] sm:$0xf]
    %v1246 = vld [vmem:[#allocation7 + $0x3c] sm:$0xf]
    %v1247 = vld [vmem:[#allocation7 + $0x40] sm:$0xf]
    %v1248 = vld [vmem:[#allocation7 + $0x44] sm:$0xf]
    %v1249 = vld [vmem:[#allocation7 + $0x48] sm:$0xf]
    %v1250 = vld [vmem:[#allocation7 + $0x4c] sm:$0xf]
    %v1251 = vld [vmem:[#allocation7 + $0x50] sm:$0xf]
    %v1252 = vld [vmem:[#allocation7 + $0x54] sm:$0xf]
    %v1253 = vld [vmem:[#allocation7 + $0x58] sm:$0xf]
    %v1254 = vld [vmem:[#allocation7 + $0x5c] sm:$0xf]
    %v1255 = vld [vmem:[#allocation7 + $0x60] sm:$0xf]
    %v1256 = vld [vmem:[#allocation7 + $0x64] sm:$0xf]
    %v1257 = vld [vmem:[#allocation7 + $0x68] sm:$0xf]
    %v1258 = vld [vmem:[#allocation7 + $0x6c] sm:$0xf]
    %v1259 = vld [vmem:[#allocation7 + $0x70] sm:$0xf]
    %v1260 = vld [vmem:[#allocation7 + $0x74] sm:$0xf]
    %v1261 = vld [vmem:[#allocation7 + $0x78] sm:$0xf]
    %v1262 = vld [vmem:[#allocation7 + $0x7c] sm:$0xf]
    %v1263 = vld [vmem:[%s14] sm:$0x1]
    %v1265 = vperm.slane %v1263, 0
    %v1299 = vunpack.c.l.b16 %v1231
    %v1300 = vunpack.c.l.b16 %v1232
    %v1301 = vunpack.c.l.b16 %v1233
    %v1302 = vunpack.c.l.b16 %v1234
    %v1303 = vunpack.c.l.b16 %v1235
    %v1304 = vunpack.c.l.b16 %v1236
    %v1305 = vunpack.c.l.b16 %v1237
    %v1306 = vunpack.c.l.b16 %v1238
    %v1307 = vunpack.c.l.b16 %v1239
    %v1308 = vunpack.c.l.b16 %v1240
    %v1309 = vunpack.c.l.b16 %v1241
    %v1310 = vunpack.c.l.b16 %v1242
    %v1311 = vunpack.c.l.b16 %v1243
    %v1312 = vunpack.c.l.b16 %v1244
    %v1313 = vunpack.c.l.b16 %v1245
    %v1314 = vunpack.c.l.b16 %v1246
    %v1315 = vunpack.c.l.b16 %v1247
    %v1316 = vunpack.c.l.b16 %v1248
    %v1317 = vunpack.c.l.b16 %v1249
    %v1318 = vunpack.c.l.b16 %v1250
    %v1319 = vunpack.c.l.b16 %v1251
    %v1320 = vunpack.c.l.b16 %v1252
    %v1321 = vunpack.c.l.b16 %v1253
    %v1322 = vunpack.c.l.b16 %v1254
    %v1323 = vunpack.c.l.b16 %v1255
    %v1324 = vunpack.c.l.b16 %v1256
    %v1325 = vunpack.c.l.b16 %v1257
    %v1326 = vunpack.c.l.b16 %v1258
    %v1327 = vunpack.c.l.b16 %v1259
    %v1328 = vunpack.c.l.b16 %v1260
    %v1329 = vunpack.c.l.b16 %v1261
    %v1330 = vunpack.c.l.b16 %v1262
    %v1331 = vpack.c.b16 %v1300, %v1299
    %v1332 = vpack.c.b16 %v1302, %v1301
    %v1333 = vpack.c.b16 %v1304, %v1303
    %v1334 = vpack.c.b16 %v1306, %v1305
    %v1335 = vpack.c.b16 %v1308, %v1307
    %v1336 = vpack.c.b16 %v1310, %v1309
    %v1337 = vpack.c.b16 %v1312, %v1311
    %v1338 = vpack.c.b16 %v1314, %v1313
    %v1339 = vpack.c.b16 %v1316, %v1315
    %v1340 = vpack.c.b16 %v1318, %v1317
    %v1341 = vpack.c.b16 %v1320, %v1319
    %v1342 = vpack.c.b16 %v1322, %v1321
    %v1343 = vpack.c.b16 %v1324, %v1323
    %v1344 = vpack.c.b16 %v1326, %v1325
    %v1345 = vpack.c.b16 %v1328, %v1327
    %v1346 = vpack.c.b16 %v1330, %v1329
    %1363 = vmatpush.bf16.msra.mxu0 %v1338
    %1364 = vmatpush.bf16.msra.mxu0 %v1337
    %1365 = vmatpush.bf16.msra.mxu0 %v1336
    %1366 = vmatpush.bf16.msra.mxu0 %v1335
    %1367 = vmatpush.bf16.msra.mxu0 %v1334
    %1368 = vmatpush.bf16.msra.mxu0 %v1333
    %1369 = vmatpush.bf16.msra.mxu0 %v1332
    %1370 = vmatpush.bf16.msra.mxu0 %v1331
    %1371 = vmatmul.bf16.gmra.mxu0 %v1229
    %v1372 = vpop.f32.mrf.mxu0
    %v1373 = vadd.f32 %v1265, %v1372
    %v1374 = vpop.f32.mrf.mxu0
    %v1375 = vadd.f32 %v1265, %v1374
    %1376 = vdwg.mxu0
    %1377 = vmatpush.bf16.msra.mxu0 %v1346
    %1378 = vmatpush.bf16.msra.mxu0 %v1345
    %1379 = vmatpush.bf16.msra.mxu0 %v1344
    %1380 = vmatpush.bf16.msra.mxu0 %v1343
    %1381 = vmatpush.bf16.msra.mxu0 %v1342
    %1382 = vmatpush.bf16.msra.mxu0 %v1341
    %1383 = vmatpush.bf16.msra.mxu0 %v1340
    %1384 = vmatpush.bf16.msra.mxu0 %v1339
    %1385 = vmatmul.bf16.gmra.mxu0 %v1230
    %v1386 = vpop.f32.mrf.mxu0
    %v1387 = vadd.f32 %v1373, %v1386
    %v1388 = vpop.f32.mrf.mxu0
    %v1389 = vadd.f32 %v1375, %v1388
    %1390 = vdwg.mxu0
    %v1391 = vadd.f32 %v1060, %v1387
    %v1392 = vadd.f32 %v1061, %v1389
    %v1393 = vld [vmem:[%s15] sm:$0x1]
    %v1394 = vld [vmem:[%s16] sm:$0x1]
    %1395 = vadd.xlane.f32.xlu0 %v1391
    %v1396 = vpop.xlane.xlu0 %1395
    %1397 = vadd.xlane.f32.xlu0 %v1392
    %v1398 = vpop.xlane.xlu0 %1397
    %v1399 = vmul.f32 %v1396, %v162
    %v1400 = vmul.f32 %v1398, %v162
    %v1401 = vsub.f32 %v1391, %v1399
    %v1402 = vsub.f32 %v1392, %v1400
    %v1403 = vmul.f32 %v1401, %v1401
    %v1404 = vmul.f32 %v1402, %v1402
    %1405 = vadd.xlane.f32.xlu0 %v1403
    %v1406 = vpop.xlane.xlu0 %1405
    %1407 = vadd.xlane.f32.xlu0 %v1404
    %v1408 = vpop.xlane.xlu0 %1407
    %v1409 = vmul.f32 %v1406, %v162
    %v1410 = vmul.f32 %v1408, %v162
    %v1411 = vadd.f32 %v1409, 1e-05
    %v1412 = vadd.f32 %v1410, 1e-05
    %v1413 = vrsqrt.pop %v1411
    %v1414 = vmul.f32 %v1413, %v1411
    %v1415 = vmul.f32 %v1414, %v1413
    %v1416 = vmul.f32 0.5, %v1415
    %v1417 = vsub.f32 1.5, %v1416
    %v1418 = vmul.f32 %v1413, %v1417
    %vm1419 = vweird.f32 %v1411
    %vm1420 = vweird.f32 %v1413
    %vm1421 = vmor %vm1419, %vm1420
    %v1422 = vsel %vm1421, %v1413, %v1418
    %v1423 = vrsqrt.pop %v1412
    %v1424 = vmul.f32 %v1423, %v1412
    %v1425 = vmul.f32 %v1424, %v1423
    %v1426 = vmul.f32 0.5, %v1425
    %v1427 = vsub.f32 1.5, %v1426
    %v1428 = vmul.f32 %v1423, %v1427
    %vm1429 = vweird.f32 %v1412
    %vm1430 = vweird.f32 %v1423
    %vm1431 = vmor %vm1429, %vm1430
    %v1432 = vsel %vm1431, %v1423, %v1428
    %v1433 = vmul.f32 %v1401, %v1422
    %v1434 = vmul.f32 %v1402, %v1432
    %v1436 = vperm.slane %v1393, 0
    %v1438 = vmul.f32 %v1433, %v1436
    %v1439 = vmul.f32 %v1434, %v1436
    %v1441 = vperm.slane %v1394, 0
    %v1443 = vadd.f32 %v1438, %v1441
    %v1444 = vadd.f32 %v1439, %v1441
    %v1445 = vpack.c.bf16 %v1444, %v1443
    %s1446 = scalar_lea.vmem [#allocation2], 192
    %v1447 = vld [vmem:[%s1446] sm:$0xff]
    %v1448 = vld [vmem:[%s1446 + $0x8] sm:$0xf]
    %v1449 = vld [vmem:[%s1446 + $0xc] sm:$0xff]
    %v1450 = vld [vmem:[%s1446 + $0x14] sm:$0xf]
    %v1451 = vld [vmem:[%s1446 + $0x18] sm:$0xff]
    %v1452 = vld [vmem:[%s1446 + $0x20] sm:$0xf]
    %v1453 = vld [vmem:[%s1446 + $0x24] sm:$0xff]
    %v1454 = vld [vmem:[%s1446 + $0x2c] sm:$0xf]
    %v1455 = vld [vmem:[%s1446 + $0x30] sm:$0xff]
    %v1456 = vld [vmem:[%s1446 + $0x38] sm:$0xf]
    %v1457 = vld [vmem:[%s1446 + $0x3c] sm:$0xff]
    %v1458 = vld [vmem:[%s1446 + $0x44] sm:$0xf]
    %v1459 = vld [vmem:[%s1446 + $0x48] sm:$0xff]
    %v1460 = vld [vmem:[%s1446 + $0x50] sm:$0xf]
    %v1461 = vld [vmem:[%s1446 + $0x54] sm:$0xff]
    %v1462 = vld [vmem:[%s1446 + $0x5c] sm:$0xf]
    %v1463 = vld [vmem:[%s1446 + $0x60] sm:$0xff]
    %v1464 = vld [vmem:[%s1446 + $0x68] sm:$0xf]
    %v1465 = vld [vmem:[%s1446 + $0x6c] sm:$0xff]
    %v1466 = vld [vmem:[%s1446 + $0x74] sm:$0xf]
    %v1467 = vld [vmem:[%s1446 + $0x78] sm:$0xff]
    %v1468 = vld [vmem:[%s1446 + $0x80] sm:$0xf]
    %v1469 = vld [vmem:[%s1446 + $0x84] sm:$0xff]
    %v1470 = vld [vmem:[%s1446 + $0x8c] sm:$0xf]
    %v1471 = vld [vmem:[%s1446 + $0x90] sm:$0xff]
    %v1472 = vld [vmem:[%s1446 + $0x98] sm:$0xf]
    %v1473 = vld [vmem:[%s1446 + $0x9c] sm:$0xff]
    %v1474 = vld [vmem:[%s1446 + $0xa4] sm:$0xf]
    %v1475 = vld [vmem:[%s1446 + $0xa8] sm:$0xff]
    %v1476 = vld [vmem:[%s1446 + $0xb0] sm:$0xf]
    %v1477 = vld [vmem:[%s1446 + $0xb4] sm:$0xff]
    %v1478 = vld [vmem:[%s1446 + $0xbc] sm:$0xf]
    %s1479 = scalar_lea.vmem %s6, 3
    %v1480 = vld [vmem:[%s1479] sm:$0x7]
    %v1482 = vperm.slane %v1480, 0
    %v1483 = vperm.slane %v1480, 1
    %v1484 = vperm.slane %v1480, 2
    %v1520 = vunpack.c.l.b16 %v1447
    %v1521 = vunpack.c.h.b16 %v1447
    %v1522 = vunpack.c.l.b16 %v1448
    %v1523 = vunpack.c.l.b16 %v1449
    %v1524 = vunpack.c.h.b16 %v1449
    %v1525 = vunpack.c.l.b16 %v1450
    %v1526 = vunpack.c.l.b16 %v1451
    %v1527 = vunpack.c.h.b16 %v1451
    %v1528 = vunpack.c.l.b16 %v1452
    %v1529 = vunpack.c.l.b16 %v1453
    %v1530 = vunpack.c.h.b16 %v1453
    %v1531 = vunpack.c.l.b16 %v1454
    %v1532 = vunpack.c.l.b16 %v1455
    %v1533 = vunpack.c.h.b16 %v1455
    %v1534 = vunpack.c.l.b16 %v1456
    %v1535 = vunpack.c.l.b16 %v1457
    %v1536 = vunpack.c.h.b16 %v1457
    %v1537 = vunpack.c.l.b16 %v1458
    %v1538 = vunpack.c.l.b16 %v1459
    %v1539 = vunpack.c.h.b16 %v1459
    %v1540 = vunpack.c.l.b16 %v1460
    %v1541 = vunpack.c.l.b16 %v1461
    %v1542 = vunpack.c.h.b16 %v1461
    %v1543 = vunpack.c.l.b16 %v1462
    %v1544 = vunpack.c.l.b16 %v1463
    %v1545 = vunpack.c.h.b16 %v1463
    %v1546 = vunpack.c.l.b16 %v1464
    %v1547 = vunpack.c.l.b16 %v1465
    %v1548 = vunpack.c.h.b16 %v1465
    %v1549 = vunpack.c.l.b16 %v1466
    %v1550 = vunpack.c.l.b16 %v1467
    %v1551 = vunpack.c.h.b16 %v1467
    %v1552 = vunpack.c.l.b16 %v1468
    %v1553 = vunpack.c.l.b16 %v1469
    %v1554 = vunpack.c.h.b16 %v1469
    %v1555 = vunpack.c.l.b16 %v1470
    %v1556 = vunpack.c.l.b16 %v1471
    %v1557 = vunpack.c.h.b16 %v1471
    %v1558 = vunpack.c.l.b16 %v1472
    %v1559 = vunpack.c.l.b16 %v1473
    %v1560 = vunpack.c.h.b16 %v1473
    %v1561 = vunpack.c.l.b16 %v1474
    %v1562 = vunpack.c.l.b16 %v1475
    %v1563 = vunpack.c.h.b16 %v1475
    %v1564 = vunpack.c.l.b16 %v1476
    %v1565 = vunpack.c.l.b16 %v1477
    %v1566 = vunpack.c.h.b16 %v1477
    %v1567 = vunpack.c.l.b16 %v1478
    %v1568 = vpack.c.b16 %v1523, %v1520
    %v1569 = vpack.c.b16 %v1524, %v1521
    %v1570 = vpack.c.b16 %v1525, %v1522
    %v1571 = vpack.c.b16 %v1529, %v1526
    %v1572 = vpack.c.b16 %v1530, %v1527
    %v1573 = vpack.c.b16 %v1531, %v1528
    %v1574 = vpack.c.b16 %v1535, %v1532
    %v1575 = vpack.c.b16 %v1536, %v1533
    %v1576 = vpack.c.b16 %v1537, %v1534
    %v1577 = vpack.c.b16 %v1541, %v1538
    %v1578 = vpack.c.b16 %v1542, %v1539
    %v1579 = vpack.c.b16 %v1543, %v1540
    %v1580 = vpack.c.b16 %v1547, %v1544
    %v1581 = vpack.c.b16 %v1548, %v1545
    %v1582 = vpack.c.b16 %v1549, %v1546
    %v1583 = vpack.c.b16 %v1553, %v1550
    %v1584 = vpack.c.b16 %v1554, %v1551
    %v1585 = vpack.c.b16 %v1555, %v1552
    %v1586 = vpack.c.b16 %v1559, %v1556
    %v1587 = vpack.c.b16 %v1560, %v1557
    %v1588 = vpack.c.b16 %v1561, %v1558
    %v1589 = vpack.c.b16 %v1565, %v1562
    %v1590 = vpack.c.b16 %v1566, %v1563
    %v1591 = vpack.c.b16 %v1567, %v1564
    %1616 = vmatpush.bf16.msra.mxu0 %v1589
    %1617 = vmatpush.bf16.msra.mxu0 %v1586
    %1618 = vmatpush.bf16.msra.mxu0 %v1583
    %1619 = vmatpush.bf16.msra.mxu0 %v1580
    %1620 = vmatpush.bf16.msra.mxu0 %v1577
    %1621 = vmatpush.bf16.msra.mxu0 %v1574
    %1622 = vmatpush.bf16.msra.mxu0 %v1571
    %1623 = vmatpush.bf16.msra.mxu0 %v1568
    %1624 = vmatmul.bf16.gmra.mxu0 %v1445
    %v1625 = vpop.f32.mrf.mxu0
    %v1626 = vadd.f32 %v1482, %v1625
    %v1627 = vpop.f32.mrf.mxu0
    %v1628 = vadd.f32 %v1482, %v1627
    %1629 = vdwg.mxu0
    %1630 = vmatpush.bf16.msra.mxu0 %v1590
    %1631 = vmatpush.bf16.msra.mxu0 %v1587
    %1632 = vmatpush.bf16.msra.mxu0 %v1584
    %1633 = vmatpush.bf16.msra.mxu0 %v1581
    %1634 = vmatpush.bf16.msra.mxu0 %v1578
    %1635 = vmatpush.bf16.msra.mxu0 %v1575
    %1636 = vmatpush.bf16.msra.mxu0 %v1572
    %1637 = vmatpush.bf16.msra.mxu0 %v1569
    %1638 = vmatmul.bf16.gmra.mxu0 %v1445
    %v1639 = vpop.f32.mrf.mxu0
    %v1640 = vadd.f32 %v1483, %v1639
    %v1641 = vpop.f32.mrf.mxu0
    %v1642 = vadd.f32 %v1483, %v1641
    %1643 = vdwg.mxu0
    %1644 = vmatpush.bf16.msra.mxu0 %v1591
    %1645 = vmatpush.bf16.msra.mxu0 %v1588
    %1646 = vmatpush.bf16.msra.mxu0 %v1585
    %1647 = vmatpush.bf16.msra.mxu0 %v1582
    %1648 = vmatpush.bf16.msra.mxu0 %v1579
    %1649 = vmatpush.bf16.msra.mxu0 %v1576
    %1650 = vmatpush.bf16.msra.mxu0 %v1573
    %1651 = vmatpush.bf16.msra.mxu0 %v1570
    %1652 = vmatmul.bf16.gmra.mxu0 %v1445
    %v1653 = vpop.f32.mrf.mxu0
    %v1654 = vadd.f32 %v1484, %v1653
    %v1655 = vpop.f32.mrf.mxu0
    %v1656 = vadd.f32 %v1484, %v1655
    %1657 = vdwg.mxu0
    %v1658 = vmul.f32 %v1626, 0.17677669
    %v1659 = vmul.f32 %v1628, 0.17677669
    %v1660 = vpack.c.bf16 %v1658, %v1658
    %v1661 = vpack.c.bf16 %v1659, %v1659
    %v1662 = vpack.c.bf16 %v1640, %v1640
    %v1663 = vpack.c.bf16 %v1642, %v1642
    %v1665 = vsel %vm434, %v1660, 0
    %v1668 = vsel %vm434, %v1662, 0
    %1670 = vmatpush.bf16.xpose.msra.mxu0 0
    %1671 = vmatpush.bf16.xpose.msra.mxu0 0
    %1672 = vmatpush.bf16.xpose.msra.mxu0 0
    %1673 = vmatpush.bf16.xpose.msra.mxu0 0
    %1674 = vmatpush.bf16.xpose.msra.mxu0 0
    %1675 = vmatpush.bf16.xpose.msra.mxu0 0
    %1676 = vmatpush.bf16.xpose.msra.mxu0 0
    %1677 = vmatpush.bf16.xpose.msra.mxu0 %v1668
    %1678 = vmatmul.bf16.gmra.mxu0 %v1665
    %v1679 = vpop.f32.mrf.mxu0
    %v1680 = vadd.f32 %v430, %v1679
    %v1681 = vpop.f32.mrf.mxu0
    %1682 = vdwg.mxu0
    %v1684 = vsel %vm434, %v1661, 0
    %v1687 = vsel %vm434, %v1663, 0
    %1689 = vmatpush.bf16.xpose.msra.mxu0 0
    %1690 = vmatpush.bf16.xpose.msra.mxu0 0
    %1691 = vmatpush.bf16.xpose.msra.mxu0 0
    %1692 = vmatpush.bf16.xpose.msra.mxu0 0
    %1693 = vmatpush.bf16.xpose.msra.mxu0 0
    %1694 = vmatpush.bf16.xpose.msra.mxu0 0
    %1695 = vmatpush.bf16.xpose.msra.mxu0 0
    %1696 = vmatpush.bf16.xpose.msra.mxu0 %v1687
    %1697 = vmatmul.bf16.gmra.mxu0 %v1684
    %v1698 = vpop.f32.mrf.mxu0
    %v1699 = vadd.f32 %v431, %v1698
    %v1700 = vpop.f32.mrf.mxu0
    %1701 = vdwg.mxu0
    %v1702 = vsel %vm473, %v1680, -inf
    %1703 = vmax.xlane.f32.xlu0 %v1702
    %v1704 = vpop.xlane.xlu0 %1703
    %v1705 = vsel %vm473, %v1699, -inf
    %1706 = vmax.xlane.f32.xlu0 %v1705
    %v1707 = vpop.xlane.xlu0 %1706
    %v1708 = vsub.f32 %v1680, %v1704
    %v1709 = vsub.f32 %v1699, %v1707
    %v1710 = vmul.f32 %v1708, 1.442695
    %v1711 = vpow.pop %v1710
    %v1712 = vmul.f32 %v1709, 1.442695
    %v1713 = vpow.pop %v1712
    %v1714 = vsel %vm473, %v1711, 0.0
    %1715 = vadd.xlane.f32.xlu0 %v1714
    %v1716 = vpop.xlane.xlu0 %1715
    %v1717 = vsel %vm473, %v1713, 0.0
    %1718 = vadd.xlane.f32.xlu0 %v1717
    %v1719 = vpop.xlane.xlu0 %1718
    %v1720 = vrcp.pop %v1716
    %v1721 = vrcp.pop %v1719
    %v1722 = vmul.f32 %v1711, %v1720
    %v1723 = vmul.f32 %v1713, %v1721
    %v1724 = vpack.c.bf16 %v1722, %v1722
    %v1725 = vpack.c.bf16 %v1723, %v1723
    %v1726 = vpack.c.bf16 %v1654, %v1654
    %v1727 = vpack.c.bf16 %v1656, %v1656
    %v1729 = vsel %vm473, %v1724, 0
    %v1732 = vsel %vm503, %v1726, 0
    %1734 = vmatpush.bf16.msra.mxu0 0
    %1735 = vmatpush.bf16.msra.mxu0 0
    %1736 = vmatpush.bf16.msra.mxu0 0
    %1737 = vmatpush.bf16.msra.mxu0 0
    %1738 = vmatpush.bf16.msra.mxu0 0
    %1739 = vmatpush.bf16.msra.mxu0 0
    %1740 = vmatpush.bf16.msra.mxu0 0
    %1741 = vmatpush.bf16.msra.mxu0 %v1732
    %1742 = vmatmul.bf16.gmra.mxu0 %v1729
    %v1743 = vpop.f32.mrf.mxu0
    %v1744 = vadd.f32 0.0, %v1743
    %v1745 = vpop.f32.mrf.mxu0
    %1746 = vdwg.mxu0
    %v1748 = vsel %vm473, %v1725, 0
    %v1751 = vsel %vm503, %v1727, 0
    %1753 = vmatpush.bf16.msra.mxu0 0
    %1754 = vmatpush.bf16.msra.mxu0 0
    %1755 = vmatpush.bf16.msra.mxu0 0
    %1756 = vmatpush.bf16.msra.mxu0 0
    %1757 = vmatpush.bf16.msra.mxu0 0
    %1758 = vmatpush.bf16.msra.mxu0 0
    %1759 = vmatpush.bf16.msra.mxu0 0
    %1760 = vmatpush.bf16.msra.mxu0 %v1751
    %1761 = vmatmul.bf16.gmra.mxu0 %v1748
    %v1762 = vpop.f32.mrf.mxu0
    %v1763 = vadd.f32 0.0, %v1762
    %v1764 = vpop.f32.mrf.mxu0
    %1765 = vdwg.mxu0
    %v1767 = vunpack.c.l.b16 %v1660
    %v1768 = vpack.c.b16 %v1767, %v1767
    %1769 = vrot.lane.b32.xlu0 %v1768, 96
    %v1770 = vpop.permute.xlu0 %1769
    %v1772 = vunpack.c.l.b16 %v1662
    %v1773 = vpack.c.b16 %v1772, %v1772
    %1774 = vrot.lane.b32.xlu0 %v1773, 96
    %v1775 = vpop.permute.xlu0 %1774
    %v1777 = vsel %vm434, %v1770, 0
    %v1780 = vsel %vm434, %v1775, 0
    %1782 = vmatpush.bf16.xpose.msra.mxu0 0
    %1783 = vmatpush.bf16.xpose.msra.mxu0 0
    %1784 = vmatpush.bf16.xpose.msra.mxu0 0
    %1785 = vmatpush.bf16.xpose.msra.mxu0 0
    %1786 = vmatpush.bf16.xpose.msra.mxu0 0
    %1787 = vmatpush.bf16.xpose.msra.mxu0 0
    %1788 = vmatpush.bf16.xpose.msra.mxu0 0
    %1789 = vmatpush.bf16.xpose.msra.mxu0 %v1780
    %1790 = vmatmul.bf16.gmra.mxu0 %v1777
    %v1791 = vpop.f32.mrf.mxu0
    %v1792 = vadd.f32 %v430, %v1791
    %v1793 = vpop.f32.mrf.mxu0
    %1794 = vdwg.mxu0
    %v1796 = vunpack.c.l.b16 %v1661
    %v1797 = vpack.c.b16 %v1796, %v1796
    %1798 = vrot.lane.b32.xlu0 %v1797, 96
    %v1799 = vpop.permute.xlu0 %1798
    %v1801 = vunpack.c.l.b16 %v1663
    %v1802 = vpack.c.b16 %v1801, %v1801
    %1803 = vrot.lane.b32.xlu0 %v1802, 96
    %v1804 = vpop.permute.xlu0 %1803
    %v1806 = vsel %vm434, %v1799, 0
    %v1809 = vsel %vm434, %v1804, 0
    %1811 = vmatpush.bf16.xpose.msra.mxu0 0
    %1812 = vmatpush.bf16.xpose.msra.mxu0 0
    %1813 = vmatpush.bf16.xpose.msra.mxu0 0
    %1814 = vmatpush.bf16.xpose.msra.mxu0 0
    %1815 = vmatpush.bf16.xpose.msra.mxu0 0
    %1816 = vmatpush.bf16.xpose.msra.mxu0 0
    %1817 = vmatpush.bf16.xpose.msra.mxu0 0
    %1818 = vmatpush.bf16.xpose.msra.mxu0 %v1809
    %1819 = vmatmul.bf16.gmra.mxu0 %v1806
    %v1820 = vpop.f32.mrf.mxu0
    %v1821 = vadd.f32 %v431, %v1820
    %v1822 = vpop.f32.mrf.mxu0
    %1823 = vdwg.mxu0
    %v1824 = vsel %vm473, %v1792, -inf
    %1825 = vmax.xlane.f32.xlu0 %v1824
    %v1826 = vpop.xlane.xlu0 %1825
    %v1827 = vsel %vm473, %v1821, -inf
    %1828 = vmax.xlane.f32.xlu0 %v1827
    %v1829 = vpop.xlane.xlu0 %1828
    %v1830 = vsub.f32 %v1792, %v1826
    %v1831 = vsub.f32 %v1821, %v1829
    %v1832 = vmul.f32 %v1830, 1.442695
    %v1833 = vpow.pop %v1832
    %v1834 = vmul.f32 %v1831, 1.442695
    %v1835 = vpow.pop %v1834
    %v1836 = vsel %vm473, %v1833, 0.0
    %1837 = vadd.xlane.f32.xlu0 %v1836
    %v1838 = vpop.xlane.xlu0 %1837
    %v1839 = vsel %vm473, %v1835, 0.0
    %1840 = vadd.xlane.f32.xlu0 %v1839
    %v1841 = vpop.xlane.xlu0 %1840
    %v1842 = vrcp.pop %v1838
    %v1843 = vrcp.pop %v1841
    %v1844 = vmul.f32 %v1833, %v1842
    %v1845 = vmul.f32 %v1835, %v1843
    %v1846 = vpack.c.bf16 %v1844, %v1844
    %v1847 = vpack.c.bf16 %v1845, %v1845
    %v1849 = vunpack.c.l.b16 %v1726
    %v1850 = vpack.c.b16 %v1849, %v1849
    %1851 = vrot.lane.b32.xlu0 %v1850, 96
    %v1852 = vpop.permute.xlu0 %1851
    %v1854 = vsel %vm473, %v1846, 0
    %v1857 = vsel %vm503, %v1852, 0
    %1859 = vmatpush.bf16.msra.mxu0 0
    %1860 = vmatpush.bf16.msra.mxu0 0
    %1861 = vmatpush.bf16.msra.mxu0 0
    %1862 = vmatpush.bf16.msra.mxu0 0
    %1863 = vmatpush.bf16.msra.mxu0 0
    %1864 = vmatpush.bf16.msra.mxu0 0
    %1865 = vmatpush.bf16.msra.mxu0 0
    %1866 = vmatpush.bf16.msra.mxu0 %v1857
    %1867 = vmatmul.bf16.gmra.mxu0 %v1854
    %v1868 = vpop.f32.mrf.mxu0
    %v1869 = vadd.f32 0.0, %v1868
    %v1870 = vpop.f32.mrf.mxu0
    %1871 = vdwg.mxu0
    %v1873 = vunpack.c.l.b16 %v1727
    %v1874 = vpack.c.b16 %v1873, %v1873
    %1875 = vrot.lane.b32.xlu0 %v1874, 96
    %v1876 = vpop.permute.xlu0 %1875
    %v1878 = vsel %vm473, %v1847, 0
    %v1881 = vsel %vm503, %v1876, 0
    %1883 = vmatpush.bf16.msra.mxu0 0
    %1884 = vmatpush.bf16.msra.mxu0 0
    %1885 = vmatpush.bf16.msra.mxu0 0
    %1886 = vmatpush.bf16.msra.mxu0 0
    %1887 = vmatpush.bf16.msra.mxu0 0
    %1888 = vmatpush.bf16.msra.mxu0 0
    %1889 = vmatpush.bf16.msra.mxu0 0
    %1890 = vmatpush.bf16.msra.mxu0 %v1881
    %1891 = vmatmul.bf16.gmra.mxu0 %v1878
    %v1892 = vpop.f32.mrf.mxu0
    %v1893 = vadd.f32 0.0, %v1892
    %v1894 = vpop.f32.mrf.mxu0
    %1895 = vdwg.mxu0
    %1896 = vrot.lane.b32.xlu0 %v1768, 64
    %v1897 = vpop.permute.xlu0 %1896
    %1898 = vrot.lane.b32.xlu0 %v1773, 64
    %v1899 = vpop.permute.xlu0 %1898
    %v1901 = vsel %vm434, %v1897, 0
    %v1904 = vsel %vm434, %v1899, 0
    %1906 = vmatpush.bf16.xpose.msra.mxu0 0
    %1907 = vmatpush.bf16.xpose.msra.mxu0 0
    %1908 = vmatpush.bf16.xpose.msra.mxu0 0
    %1909 = vmatpush.bf16.xpose.msra.mxu0 0
    %1910 = vmatpush.bf16.xpose.msra.mxu0 0
    %1911 = vmatpush.bf16.xpose.msra.mxu0 0
    %1912 = vmatpush.bf16.xpose.msra.mxu0 0
    %1913 = vmatpush.bf16.xpose.msra.mxu0 %v1904
    %1914 = vmatmul.bf16.gmra.mxu0 %v1901
    %v1915 = vpop.f32.mrf.mxu0
    %v1916 = vadd.f32 %v430, %v1915
    %v1917 = vpop.f32.mrf.mxu0
    %1918 = vdwg.mxu0
    %1919 = vrot.lane.b32.xlu0 %v1797, 64
    %v1920 = vpop.permute.xlu0 %1919
    %1921 = vrot.lane.b32.xlu0 %v1802, 64
    %v1922 = vpop.permute.xlu0 %1921
    %v1924 = vsel %vm434, %v1920, 0
    %v1927 = vsel %vm434, %v1922, 0
    %1929 = vmatpush.bf16.xpose.msra.mxu0 0
    %1930 = vmatpush.bf16.xpose.msra.mxu0 0
    %1931 = vmatpush.bf16.xpose.msra.mxu0 0
    %1932 = vmatpush.bf16.xpose.msra.mxu0 0
    %1933 = vmatpush.bf16.xpose.msra.mxu0 0
    %1934 = vmatpush.bf16.xpose.msra.mxu0 0
    %1935 = vmatpush.bf16.xpose.msra.mxu0 0
    %1936 = vmatpush.bf16.xpose.msra.mxu0 %v1927
    %1937 = vmatmul.bf16.gmra.mxu0 %v1924
    %v1938 = vpop.f32.mrf.mxu0
    %v1939 = vadd.f32 %v431, %v1938
    %v1940 = vpop.f32.mrf.mxu0
    %1941 = vdwg.mxu0
    %v1942 = vsel %vm473, %v1916, -inf
    %1943 = vmax.xlane.f32.xlu0 %v1942
    %v1944 = vpop.xlane.xlu0 %1943
    %v1945 = vsel %vm473, %v1939, -inf
    %1946 = vmax.xlane.f32.xlu0 %v1945
    %v1947 = vpop.xlane.xlu0 %1946
    %v1948 = vsub.f32 %v1916, %v1944
    %v1949 = vsub.f32 %v1939, %v1947
    %v1950 = vmul.f32 %v1948, 1.442695
    %v1951 = vpow.pop %v1950
    %v1952 = vmul.f32 %v1949, 1.442695
    %v1953 = vpow.pop %v1952
    %v1954 = vsel %vm473, %v1951, 0.0
    %1955 = vadd.xlane.f32.xlu0 %v1954
    %v1956 = vpop.xlane.xlu0 %1955
    %v1957 = vsel %vm473, %v1953, 0.0
    %1958 = vadd.xlane.f32.xlu0 %v1957
    %v1959 = vpop.xlane.xlu0 %1958
    %v1960 = vrcp.pop %v1956
    %v1961 = vrcp.pop %v1959
    %v1962 = vmul.f32 %v1951, %v1960
    %v1963 = vmul.f32 %v1953, %v1961
    %v1964 = vpack.c.bf16 %v1962, %v1962
    %v1965 = vpack.c.bf16 %v1963, %v1963
    %1966 = vrot.lane.b32.xlu0 %v1850, 64
    %v1967 = vpop.permute.xlu0 %1966
    %v1969 = vsel %vm473, %v1964, 0
    %v1972 = vsel %vm503, %v1967, 0
    %1974 = vmatpush.bf16.msra.mxu0 0
    %1975 = vmatpush.bf16.msra.mxu0 0
    %1976 = vmatpush.bf16.msra.mxu0 0
    %1977 = vmatpush.bf16.msra.mxu0 0
    %1978 = vmatpush.bf16.msra.mxu0 0
    %1979 = vmatpush.bf16.msra.mxu0 0
    %1980 = vmatpush.bf16.msra.mxu0 0
    %1981 = vmatpush.bf16.msra.mxu0 %v1972
    %1982 = vmatmul.bf16.gmra.mxu0 %v1969
    %v1983 = vpop.f32.mrf.mxu0
    %v1984 = vadd.f32 0.0, %v1983
    %v1985 = vpop.f32.mrf.mxu0
    %1986 = vdwg.mxu0
    %1987 = vrot.lane.b32.xlu0 %v1874, 64
    %v1988 = vpop.permute.xlu0 %1987
    %v1990 = vsel %vm473, %v1965, 0
    %v1993 = vsel %vm503, %v1988, 0
    %1995 = vmatpush.bf16.msra.mxu0 0
    %1996 = vmatpush.bf16.msra.mxu0 0
    %1997 = vmatpush.bf16.msra.mxu0 0
    %1998 = vmatpush.bf16.msra.mxu0 0
    %1999 = vmatpush.bf16.msra.mxu0 0
    %2000 = vmatpush.bf16.msra.mxu0 0
    %2001 = vmatpush.bf16.msra.mxu0 0
    %2002 = vmatpush.bf16.msra.mxu0 %v1993
    %2003 = vmatmul.bf16.gmra.mxu0 %v1990
    %v2004 = vpop.f32.mrf.mxu0
    %v2005 = vadd.f32 0.0, %v2004
    %v2006 = vpop.f32.mrf.mxu0
    %2007 = vdwg.mxu0
    %2008 = vrot.lane.b32.xlu0 %v1768, 32
    %v2009 = vpop.permute.xlu0 %2008
    %2010 = vrot.lane.b32.xlu0 %v1773, 32
    %v2011 = vpop.permute.xlu0 %2010
    %v2013 = vsel %vm434, %v2009, 0
    %v2016 = vsel %vm434, %v2011, 0
    %2018 = vmatpush.bf16.xpose.msra.mxu0 0
    %2019 = vmatpush.bf16.xpose.msra.mxu0 0
    %2020 = vmatpush.bf16.xpose.msra.mxu0 0
    %2021 = vmatpush.bf16.xpose.msra.mxu0 0
    %2022 = vmatpush.bf16.xpose.msra.mxu0 0
    %2023 = vmatpush.bf16.xpose.msra.mxu0 0
    %2024 = vmatpush.bf16.xpose.msra.mxu0 0
    %2025 = vmatpush.bf16.xpose.msra.mxu0 %v2016
    %2026 = vmatmul.bf16.gmra.mxu0 %v2013
    %v2027 = vpop.f32.mrf.mxu0
    %v2028 = vadd.f32 %v430, %v2027
    %v2029 = vpop.f32.mrf.mxu0
    %2030 = vdwg.mxu0
    %2031 = vrot.lane.b32.xlu0 %v1797, 32
    %v2032 = vpop.permute.xlu0 %2031
    %2033 = vrot.lane.b32.xlu0 %v1802, 32
    %v2034 = vpop.permute.xlu0 %2033
    %v2036 = vsel %vm434, %v2032, 0
    %v2039 = vsel %vm434, %v2034, 0
    %2041 = vmatpush.bf16.xpose.msra.mxu0 0
    %2042 = vmatpush.bf16.xpose.msra.mxu0 0
    %2043 = vmatpush.bf16.xpose.msra.mxu0 0
    %2044 = vmatpush.bf16.xpose.msra.mxu0 0
    %2045 = vmatpush.bf16.xpose.msra.mxu0 0
    %2046 = vmatpush.bf16.xpose.msra.mxu0 0
    %2047 = vmatpush.bf16.xpose.msra.mxu0 0
    %2048 = vmatpush.bf16.xpose.msra.mxu0 %v2039
    %2049 = vmatmul.bf16.gmra.mxu0 %v2036
    %v2050 = vpop.f32.mrf.mxu0
    %v2051 = vadd.f32 %v431, %v2050
    %v2052 = vpop.f32.mrf.mxu0
    %2053 = vdwg.mxu0
    %v2054 = vsel %vm473, %v2028, -inf
    %2055 = vmax.xlane.f32.xlu0 %v2054
    %v2056 = vpop.xlane.xlu0 %2055
    %v2057 = vsel %vm473, %v2051, -inf
    %2058 = vmax.xlane.f32.xlu0 %v2057
    %v2059 = vpop.xlane.xlu0 %2058
    %v2060 = vsub.f32 %v2028, %v2056
    %v2061 = vsub.f32 %v2051, %v2059
    %v2062 = vmul.f32 %v2060, 1.442695
    %v2063 = vpow.pop %v2062
    %v2064 = vmul.f32 %v2061, 1.442695
    %v2065 = vpow.pop %v2064
    %v2066 = vsel %vm473, %v2063, 0.0
    %2067 = vadd.xlane.f32.xlu0 %v2066
    %v2068 = vpop.xlane.xlu0 %2067
    %v2069 = vsel %vm473, %v2065, 0.0
    %2070 = vadd.xlane.f32.xlu0 %v2069
    %v2071 = vpop.xlane.xlu0 %2070
    %v2072 = vrcp.pop %v2068
    %v2073 = vrcp.pop %v2071
    %v2074 = vmul.f32 %v2063, %v2072
    %v2075 = vmul.f32 %v2065, %v2073
    %v2076 = vpack.c.bf16 %v2074, %v2074
    %v2077 = vpack.c.bf16 %v2075, %v2075
    %2078 = vrot.lane.b32.xlu0 %v1850, 32
    %v2079 = vpop.permute.xlu0 %2078
    %v2081 = vsel %vm473, %v2076, 0
    %v2084 = vsel %vm503, %v2079, 0
    %2086 = vmatpush.bf16.msra.mxu0 0
    %2087 = vmatpush.bf16.msra.mxu0 0
    %2088 = vmatpush.bf16.msra.mxu0 0
    %2089 = vmatpush.bf16.msra.mxu0 0
    %2090 = vmatpush.bf16.msra.mxu0 0
    %2091 = vmatpush.bf16.msra.mxu0 0
    %2092 = vmatpush.bf16.msra.mxu0 0
    %2093 = vmatpush.bf16.msra.mxu0 %v2084
    %2094 = vmatmul.bf16.gmra.mxu0 %v2081
    %v2095 = vpop.f32.mrf.mxu0
    %v2096 = vadd.f32 0.0, %v2095
    %v2097 = vpop.f32.mrf.mxu0
    %2098 = vdwg.mxu0
    %2099 = vrot.lane.b32.xlu0 %v1874, 32
    %v2100 = vpop.permute.xlu0 %2099
    %v2102 = vsel %vm473, %v2077, 0
    %v2105 = vsel %vm503, %v2100, 0
    %2107 = vmatpush.bf16.msra.mxu0 0
    %2108 = vmatpush.bf16.msra.mxu0 0
    %2109 = vmatpush.bf16.msra.mxu0 0
    %2110 = vmatpush.bf16.msra.mxu0 0
    %2111 = vmatpush.bf16.msra.mxu0 0
    %2112 = vmatpush.bf16.msra.mxu0 0
    %2113 = vmatpush.bf16.msra.mxu0 0
    %2114 = vmatpush.bf16.msra.mxu0 %v2105
    %2115 = vmatmul.bf16.gmra.mxu0 %v2102
    %v2116 = vpop.f32.mrf.mxu0
    %v2117 = vadd.f32 0.0, %v2116
    %v2118 = vpop.f32.mrf.mxu0
    %2119 = vdwg.mxu0
    %2122 = vrot.lane.b32.xlu0 %v1869, 32
    %v2123 = vpop.permute.xlu0 %2122
    %2124 = vrot.lane.b32.xlu0 %v1893, 32
    %v2125 = vpop.permute.xlu0 %2124
    %2130 = vrot.lane.b32.xlu0 %v1984, 64
    %v2131 = vpop.permute.xlu0 %2130
    %2132 = vrot.lane.b32.xlu0 %v2005, 64
    %v2133 = vpop.permute.xlu0 %2132
    %2138 = vrot.lane.b32.xlu0 %v2096, 96
    %v2139 = vpop.permute.xlu0 %2138
    %2140 = vrot.lane.b32.xlu0 %v2117, 96
    %v2141 = vpop.permute.xlu0 %2140
    %v2144 = vsel %vm434, %v1744, %v2123
    %v2145 = vsel %vm434, %v1763, %v2125
    %v2146 = vsel %vm919, %v2144, %v2131
    %v2147 = vsel %vm919, %v2145, %v2133
    %v2148 = vsel %vm922, %v2146, %v2139
    %v2149 = vsel %vm922, %v2147, %v2141
    %v2150 = vpack.c.bf16 %v2149, %v2148
    %s2151 = scalar_lea.vmem [#allocation5], 64
    %v2152 = vld [vmem:[%s2151] sm:$0xf]
    %v2153 = vld [vmem:[%s2151 + $0x4] sm:$0xf]
    %v2154 = vld [vmem:[%s2151 + $0x8] sm:$0xf]
    %v2155 = vld [vmem:[%s2151 + $0xc] sm:$0xf]
    %v2156 = vld [vmem:[%s2151 + $0x10] sm:$0xf]
    %v2157 = vld [vmem:[%s2151 + $0x14] sm:$0xf]
    %v2158 = vld [vmem:[%s2151 + $0x18] sm:$0xf]
    %v2159 = vld [vmem:[%s2151 + $0x1c] sm:$0xf]
    %v2160 = vld [vmem:[%s2151 + $0x20] sm:$0xf]
    %v2161 = vld [vmem:[%s2151 + $0x24] sm:$0xf]
    %v2162 = vld [vmem:[%s2151 + $0x28] sm:$0xf]
    %v2163 = vld [vmem:[%s2151 + $0x2c] sm:$0xf]
    %v2164 = vld [vmem:[%s2151 + $0x30] sm:$0xf]
    %v2165 = vld [vmem:[%s2151 + $0x34] sm:$0xf]
    %v2166 = vld [vmem:[%s2151 + $0x38] sm:$0xf]
    %v2167 = vld [vmem:[%s2151 + $0x3c] sm:$0xf]
    %s2168 = scalar_lea.vmem %s8, 1
    %v2169 = vld [vmem:[%s2168] sm:$0x1]
    %v2171 = vperm.slane %v2169, 0
    %v2189 = vunpack.c.l.b16 %v2152
    %v2190 = vunpack.c.l.b16 %v2153
    %v2191 = vunpack.c.l.b16 %v2154
    %v2192 = vunpack.c.l.b16 %v2155
    %v2193 = vunpack.c.l.b16 %v2156
    %v2194 = vunpack.c.l.b16 %v2157
    %v2195 = vunpack.c.l.b16 %v2158
    %v2196 = vunpack.c.l.b16 %v2159
    %v2197 = vunpack.c.l.b16 %v2160
    %v2198 = vunpack.c.l.b16 %v2161
    %v2199 = vunpack.c.l.b16 %v2162
    %v2200 = vunpack.c.l.b16 %v2163
    %v2201 = vunpack.c.l.b16 %v2164
    %v2202 = vunpack.c.l.b16 %v2165
    %v2203 = vunpack.c.l.b16 %v2166
    %v2204 = vunpack.c.l.b16 %v2167
    %v2205 = vpack.c.b16 %v2190, %v2189
    %v2206 = vpack.c.b16 %v2192, %v2191
    %v2207 = vpack.c.b16 %v2194, %v2193
    %v2208 = vpack.c.b16 %v2196, %v2195
    %v2209 = vpack.c.b16 %v2198, %v2197
    %v2210 = vpack.c.b16 %v2200, %v2199
    %v2211 = vpack.c.b16 %v2202, %v2201
    %v2212 = vpack.c.b16 %v2204, %v2203
    %2221 = vmatpush.bf16.msra.mxu0 %v2212
    %2222 = vmatpush.bf16.msra.mxu0 %v2211
    %2223 = vmatpush.bf16.msra.mxu0 %v2210
    %2224 = vmatpush.bf16.msra.mxu0 %v2209
    %2225 = vmatpush.bf16.msra.mxu0 %v2208
    %2226 = vmatpush.bf16.msra.mxu0 %v2207
    %2227 = vmatpush.bf16.msra.mxu0 %v2206
    %2228 = vmatpush.bf16.msra.mxu0 %v2205
    %2229 = vmatmul.bf16.gmra.mxu0 %v2150
    %v2230 = vpop.f32.mrf.mxu0
    %v2231 = vadd.f32 %v2171, %v2230
    %v2232 = vpop.f32.mrf.mxu0
    %v2233 = vadd.f32 %v2171, %v2232
    %2234 = vdwg.mxu0
    %v2235 = vadd.f32 %v1443, %v2231
    %v2236 = vadd.f32 %v1444, %v2233
    %s2237 = scalar_lea.vmem %s9, 1
    %v2238 = vld [vmem:[%s2237] sm:$0x1]
    %s2239 = scalar_lea.vmem %s10, 1
    %v2240 = vld [vmem:[%s2239] sm:$0x1]
    %2241 = vadd.xlane.f32.xlu0 %v2235
    %v2242 = vpop.xlane.xlu0 %2241
    %2243 = vadd.xlane.f32.xlu0 %v2236
    %v2244 = vpop.xlane.xlu0 %2243
    %v2245 = vmul.f32 %v2242, %v162
    %v2246 = vmul.f32 %v2244, %v162
    %v2247 = vsub.f32 %v2235, %v2245
    %v2248 = vsub.f32 %v2236, %v2246
    %v2249 = vmul.f32 %v2247, %v2247
    %v2250 = vmul.f32 %v2248, %v2248
    %2251 = vadd.xlane.f32.xlu0 %v2249
    %v2252 = vpop.xlane.xlu0 %2251
    %2253 = vadd.xlane.f32.xlu0 %v2250
    %v2254 = vpop.xlane.xlu0 %2253
    %v2255 = vmul.f32 %v2252, %v162
    %v2256 = vmul.f32 %v2254, %v162
    %v2257 = vadd.f32 %v2255, 1e-05
    %v2258 = vadd.f32 %v2256, 1e-05
    %v2259 = vrsqrt.pop %v2257
    %v2260 = vmul.f32 %v2259, %v2257
    %v2261 = vmul.f32 %v2260, %v2259
    %v2262 = vmul.f32 0.5, %v2261
    %v2263 = vsub.f32 1.5, %v2262
    %v2264 = vmul.f32 %v2259, %v2263
    %vm2265 = vweird.f32 %v2257
    %vm2266 = vweird.f32 %v2259
    %vm2267 = vmor %vm2265, %vm2266
    %v2268 = vsel %vm2267, %v2259, %v2264
    %v2269 = vrsqrt.pop %v2258
    %v2270 = vmul.f32 %v2269, %v2258
    %v2271 = vmul.f32 %v2270, %v2269
    %v2272 = vmul.f32 0.5, %v2271
    %v2273 = vsub.f32 1.5, %v2272
    %v2274 = vmul.f32 %v2269, %v2273
    %vm2275 = vweird.f32 %v2258
    %vm2276 = vweird.f32 %v2269
    %vm2277 = vmor %vm2275, %vm2276
    %v2278 = vsel %vm2277, %v2269, %v2274
    %v2279 = vmul.f32 %v2247, %v2268
    %v2280 = vmul.f32 %v2248, %v2278
    %v2282 = vperm.slane %v2238, 0
    %v2284 = vmul.f32 %v2279, %v2282
    %v2285 = vmul.f32 %v2280, %v2282
    %v2287 = vperm.slane %v2240, 0
    %v2289 = vadd.f32 %v2284, %v2287
    %v2290 = vadd.f32 %v2285, %v2287
    %v2291 = vpack.c.bf16 %v2290, %v2289
    %s2292 = scalar_lea.vmem %s11, 128
    %v2293 = vld [vmem:[%s2292] sm:$0xff]
    %v2294 = vld [vmem:[%s2292 + $0x8] sm:$0xff]
    %v2295 = vld [vmem:[%s2292 + $0x10] sm:$0xff]
    %v2296 = vld [vmem:[%s2292 + $0x18] sm:$0xff]
    %v2297 = vld [vmem:[%s2292 + $0x20] sm:$0xff]
    %v2298 = vld [vmem:[%s2292 + $0x28] sm:$0xff]
    %v2299 = vld [vmem:[%s2292 + $0x30] sm:$0xff]
    %v2300 = vld [vmem:[%s2292 + $0x38] sm:$0xff]
    %v2301 = vld [vmem:[%s2292 + $0x40] sm:$0xff]
    %v2302 = vld [vmem:[%s2292 + $0x48] sm:$0xff]
    %v2303 = vld [vmem:[%s2292 + $0x50] sm:$0xff]
    %v2304 = vld [vmem:[%s2292 + $0x58] sm:$0xff]
    %v2305 = vld [vmem:[%s2292 + $0x60] sm:$0xff]
    %v2306 = vld [vmem:[%s2292 + $0x68] sm:$0xff]
    %v2307 = vld [vmem:[%s2292 + $0x70] sm:$0xff]
    %v2308 = vld [vmem:[%s2292 + $0x78] sm:$0xff]
    %s2309 = scalar_lea.vmem %s12, 2
    %v2310 = vld [vmem:[%s2309] sm:$0x3]
    %v2312 = vperm.slane %v2310, 0
    %v2313 = vperm.slane %v2310, 1
    %v2332 = vunpack.c.l.b16 %v2293
    %v2333 = vunpack.c.h.b16 %v2293
    %v2334 = vunpack.c.l.b16 %v2294
    %v2335 = vunpack.c.h.b16 %v2294
    %v2336 = vunpack.c.l.b16 %v2295
    %v2337 = vunpack.c.h.b16 %v2295
    %v2338 = vunpack.c.l.b16 %v2296
    %v2339 = vunpack.c.h.b16 %v2296
    %v2340 = vunpack.c.l.b16 %v2297
    %v2341 = vunpack.c.h.b16 %v2297
    %v2342 = vunpack.c.l.b16 %v2298
    %v2343 = vunpack.c.h.b16 %v2298
    %v2344 = vunpack.c.l.b16 %v2299
    %v2345 = vunpack.c.h.b16 %v2299
    %v2346 = vunpack.c.l.b16 %v2300
    %v2347 = vunpack.c.h.b16 %v2300
    %v2348 = vunpack.c.l.b16 %v2301
    %v2349 = vunpack.c.h.b16 %v2301
    %v2350 = vunpack.c.l.b16 %v2302
    %v2351 = vunpack.c.h.b16 %v2302
    %v2352 = vunpack.c.l.b16 %v2303
    %v2353 = vunpack.c.h.b16 %v2303
    %v2354 = vunpack.c.l.b16 %v2304
    %v2355 = vunpack.c.h.b16 %v2304
    %v2356 = vunpack.c.l.b16 %v2305
    %v2357 = vunpack.c.h.b16 %v2305
    %v2358 = vunpack.c.l.b16 %v2306
    %v2359 = vunpack.c.h.b16 %v2306
    %v2360 = vunpack.c.l.b16 %v2307
    %v2361 = vunpack.c.h.b16 %v2307
    %v2362 = vunpack.c.l.b16 %v2308
    %v2363 = vunpack.c.h.b16 %v2308
    %v2364 = vpack.c.b16 %v2334, %v2332
    %v2365 = vpack.c.b16 %v2335, %v2333
    %v2366 = vpack.c.b16 %v2338, %v2336
    %v2367 = vpack.c.b16 %v2339, %v2337
    %v2368 = vpack.c.b16 %v2342, %v2340
    %v2369 = vpack.c.b16 %v2343, %v2341
    %v2370 = vpack.c.b16 %v2346, %v2344
    %v2371 = vpack.c.b16 %v2347, %v2345
    %v2372 = vpack.c.b16 %v2350, %v2348
    %v2373 = vpack.c.b16 %v2351, %v2349
    %v2374 = vpack.c.b16 %v2354, %v2352
    %v2375 = vpack.c.b16 %v2355, %v2353
    %v2376 = vpack.c.b16 %v2358, %v2356
    %v2377 = vpack.c.b16 %v2359, %v2357
    %v2378 = vpack.c.b16 %v2362, %v2360
    %v2379 = vpack.c.b16 %v2363, %v2361
    %2396 = vmatpush.bf16.msra.mxu0 %v2378
    %2397 = vmatpush.bf16.msra.mxu0 %v2376
    %2398 = vmatpush.bf16.msra.mxu0 %v2374
    %2399 = vmatpush.bf16.msra.mxu0 %v2372
    %2400 = vmatpush.bf16.msra.mxu0 %v2370
    %2401 = vmatpush.bf16.msra.mxu0 %v2368
    %2402 = vmatpush.bf16.msra.mxu0 %v2366
    %2403 = vmatpush.bf16.msra.mxu0 %v2364
    %2404 = vmatmul.bf16.gmra.mxu0 %v2291
    %v2405 = vpop.f32.mrf.mxu0
    %v2406 = vadd.f32 %v2312, %v2405
    %v2407 = vpop.f32.mrf.mxu0
    %v2408 = vadd.f32 %v2312, %v2407
    %2409 = vdwg.mxu0
    %2410 = vmatpush.bf16.msra.mxu0 %v2379
    %2411 = vmatpush.bf16.msra.mxu0 %v2377
    %2412 = vmatpush.bf16.msra.mxu0 %v2375
    %2413 = vmatpush.bf16.msra.mxu0 %v2373
    %2414 = vmatpush.bf16.msra.mxu0 %v2371
    %2415 = vmatpush.bf16.msra.mxu0 %v2369
    %2416 = vmatpush.bf16.msra.mxu0 %v2367
    %2417 = vmatpush.bf16.msra.mxu0 %v2365
    %2418 = vmatmul.bf16.gmra.mxu0 %v2291
    %v2419 = vpop.f32.mrf.mxu0
    %v2420 = vadd.f32 %v2313, %v2419
    %v2421 = vpop.f32.mrf.mxu0
    %v2422 = vadd.f32 %v2313, %v2421
    %2423 = vdwg.mxu0
    %v2424 = vmul.f32 %v2406, 0.5
    %v2425 = vmul.f32 %v2420, 0.5
    %v2426 = vmul.f32 %v2408, 0.5
    %v2427 = vmul.f32 %v2422, 0.5
    %v2428 = vmul.f32 %v2406, 0.044715
    %v2429 = vmul.f32 %v2420, 0.044715
    %v2430 = vmul.f32 %v2408, 0.044715
    %v2431 = vmul.f32 %v2422, 0.044715
    %v2432 = vmul.f32 %v2428, %v2406
    %v2433 = vmul.f32 %v2429, %v2420
    %v2434 = vmul.f32 %v2430, %v2408
    %v2435 = vmul.f32 %v2431, %v2422
    %v2436 = vmul.f32 %v2432, %v2406
    %v2437 = vmul.f32 %v2433, %v2420
    %v2438 = vmul.f32 %v2434, %v2408
    %v2439 = vmul.f32 %v2435, %v2422
    %v2440 = vadd.f32 %v2406, %v2436
    %v2441 = vadd.f32 %v2420, %v2437
    %v2442 = vadd.f32 %v2408, %v2438
    %v2443 = vadd.f32 %v2422, %v2439
    %v2444 = vmul.f32 %v2440, 0.7978846
    %v2445 = vmul.f32 %v2441, 0.7978846
    %v2446 = vmul.f32 %v2442, 0.7978846
    %v2447 = vmul.f32 %v2443, 0.7978846
    %v2448 = vtanh.pop %v2444
    %v2449 = vtanh.pop %v2445
    %v2450 = vtanh.pop %v2446
    %v2451 = vtanh.pop %v2447
    %v2452 = vadd.f32 %v2448, 1.0
    %v2453 = vadd.f32 %v2449, 1.0
    %v2454 = vadd.f32 %v2450, 1.0
    %v2455 = vadd.f32 %v2451, 1.0
    %v2456 = vmul.f32 %v2424, %v2452
    %v2457 = vmul.f32 %v2425, %v2453
    %v2458 = vmul.f32 %v2426, %v2454
    %v2459 = vmul.f32 %v2427, %v2455
    %v2460 = vpack.c.bf16 %v2458, %v2456
    %v2461 = vpack.c.bf16 %v2459, %v2457
    %s2462 = scalar_lea.vmem [#allocation7], 128
    %v2463 = vld [vmem:[%s2462] sm:$0xf]
    %v2464 = vld [vmem:[%s2462 + $0x4] sm:$0xf]
    %v2465 = vld [vmem:[%s2462 + $0x8] sm:$0xf]
    %v2466 = vld [vmem:[%s2462 + $0xc] sm:$0xf]
    %v2467 = vld [vmem:[%s2462 + $0x10] sm:$0xf]
    %v2468 = vld [vmem:[%s2462 + $0x14] sm:$0xf]
    %v2469 = vld [vmem:[%s2462 + $0x18] sm:$0xf]
    %v2470 = vld [vmem:[%s2462 + $0x1c] sm:$0xf]
    %v2471 = vld [vmem:[%s2462 + $0x20] sm:$0xf]
    %v2472 = vld [vmem:[%s2462 + $0x24] sm:$0xf]
    %v2473 = vld [vmem:[%s2462 + $0x28] sm:$0xf]
    %v2474 = vld [vmem:[%s2462 + $0x2c] sm:$0xf]
    %v2475 = vld [vmem:[%s2462 + $0x30] sm:$0xf]
    %v2476 = vld [vmem:[%s2462 + $0x34] sm:$0xf]
    %v2477 = vld [vmem:[%s2462 + $0x38] sm:$0xf]
    %v2478 = vld [vmem:[%s2462 + $0x3c] sm:$0xf]
    %v2479 = vld [vmem:[%s2462 + $0x40] sm:$0xf]
    %v2480 = vld [vmem:[%s2462 + $0x44] sm:$0xf]
    %v2481 = vld [vmem:[%s2462 + $0x48] sm:$0xf]
    %v2482 = vld [vmem:[%s2462 + $0x4c] sm:$0xf]
    %v2483 = vld [vmem:[%s2462 + $0x50] sm:$0xf]
    %v2484 = vld [vmem:[%s2462 + $0x54] sm:$0xf]
    %v2485 = vld [vmem:[%s2462 + $0x58] sm:$0xf]
    %v2486 = vld [vmem:[%s2462 + $0x5c] sm:$0xf]
    %v2487 = vld [vmem:[%s2462 + $0x60] sm:$0xf]
    %v2488 = vld [vmem:[%s2462 + $0x64] sm:$0xf]
    %v2489 = vld [vmem:[%s2462 + $0x68] sm:$0xf]
    %v2490 = vld [vmem:[%s2462 + $0x6c] sm:$0xf]
    %v2491 = vld [vmem:[%s2462 + $0x70] sm:$0xf]
    %v2492 = vld [vmem:[%s2462 + $0x74] sm:$0xf]
    %v2493 = vld [vmem:[%s2462 + $0x78] sm:$0xf]
    %v2494 = vld [vmem:[%s2462 + $0x7c] sm:$0xf]
    %s2495 = scalar_lea.vmem %s14, 1
    %v2496 = vld [vmem:[%s2495] sm:$0x1]
    %v2498 = vperm.slane %v2496, 0
    %v2532 = vunpack.c.l.b16 %v2463
    %v2533 = vunpack.c.l.b16 %v2464
    %v2534 = vunpack.c.l.b16 %v2465
    %v2535 = vunpack.c.l.b16 %v2466
    %v2536 = vunpack.c.l.b16 %v2467
    %v2537 = vunpack.c.l.b16 %v2468
    %v2538 = vunpack.c.l.b16 %v2469
    %v2539 = vunpack.c.l.b16 %v2470
    %v2540 = vunpack.c.l.b16 %v2471
    %v2541 = vunpack.c.l.b16 %v2472
    %v2542 = vunpack.c.l.b16 %v2473
    %v2543 = vunpack.c.l.b16 %v2474
    %v2544 = vunpack.c.l.b16 %v2475
    %v2545 = vunpack.c.l.b16 %v2476
    %v2546 = vunpack.c.l.b16 %v2477
    %v2547 = vunpack.c.l.b16 %v2478
    %v2548 = vunpack.c.l.b16 %v2479
    %v2549 = vunpack.c.l.b16 %v2480
    %v2550 = vunpack.c.l.b16 %v2481
    %v2551 = vunpack.c.l.b16 %v2482
    %v2552 = vunpack.c.l.b16 %v2483
    %v2553 = vunpack.c.l.b16 %v2484
    %v2554 = vunpack.c.l.b16 %v2485
    %v2555 = vunpack.c.l.b16 %v2486
    %v2556 = vunpack.c.l.b16 %v2487
    %v2557 = vunpack.c.l.b16 %v2488
    %v2558 = vunpack.c.l.b16 %v2489
    %v2559 = vunpack.c.l.b16 %v2490
    %v2560 = vunpack.c.l.b16 %v2491
    %v2561 = vunpack.c.l.b16 %v2492
    %v2562 = vunpack.c.l.b16 %v2493
    %v2563 = vunpack.c.l.b16 %v2494
    %v2564 = vpack.c.b16 %v2533, %v2532
    %v2565 = vpack.c.b16 %v2535, %v2534
    %v2566 = vpack.c.b16 %v2537, %v2536
    %v2567 = vpack.c.b16 %v2539, %v2538
    %v2568 = vpack.c.b16 %v2541, %v2540
    %v2569 = vpack.c.b16 %v2543, %v2542
    %v2570 = vpack.c.b16 %v2545, %v2544
    %v2571 = vpack.c.b16 %v2547, %v2546
    %v2572 = vpack.c.b16 %v2549, %v2548
    %v2573 = vpack.c.b16 %v2551, %v2550
    %v2574 = vpack.c.b16 %v2553, %v2552
    %v2575 = vpack.c.b16 %v2555, %v2554
    %v2576 = vpack.c.b16 %v2557, %v2556
    %v2577 = vpack.c.b16 %v2559, %v2558
    %v2578 = vpack.c.b16 %v2561, %v2560
    %v2579 = vpack.c.b16 %v2563, %v2562
    %2596 = vmatpush.bf16.msra.mxu0 %v2571
    %2597 = vmatpush.bf16.msra.mxu0 %v2570
    %2598 = vmatpush.bf16.msra.mxu0 %v2569
    %2599 = vmatpush.bf16.msra.mxu0 %v2568
    %2600 = vmatpush.bf16.msra.mxu0 %v2567
    %2601 = vmatpush.bf16.msra.mxu0 %v2566
    %2602 = vmatpush.bf16.msra.mxu0 %v2565
    %2603 = vmatpush.bf16.msra.mxu0 %v2564
    %2604 = vmatmul.bf16.gmra.mxu0 %v2460
    %v2605 = vpop.f32.mrf.mxu0
    %v2606 = vadd.f32 %v2498, %v2605
    %v2607 = vpop.f32.mrf.mxu0
    %v2608 = vadd.f32 %v2498, %v2607
    %2609 = vdwg.mxu0
    %2610 = vmatpush.bf16.msra.mxu0 %v2579
    %2611 = vmatpush.bf16.msra.mxu0 %v2578
    %2612 = vmatpush.bf16.msra.mxu0 %v2577
    %2613 = vmatpush.bf16.msra.mxu0 %v2576
    %2614 = vmatpush.bf16.msra.mxu0 %v2575
    %2615 = vmatpush.bf16.msra.mxu0 %v2574
    %2616 = vmatpush.bf16.msra.mxu0 %v2573
    %2617 = vmatpush.bf16.msra.mxu0 %v2572
    %2618 = vmatmul.bf16.gmra.mxu0 %v2461
    %v2619 = vpop.f32.mrf.mxu0
    %v2620 = vadd.f32 %v2606, %v2619
    %v2621 = vpop.f32.mrf.mxu0
    %v2622 = vadd.f32 %v2608, %v2621
    %2623 = vdwg.mxu0
    %v2624 = vadd.f32 %v2289, %v2620
    %v2625 = vadd.f32 %v2290, %v2622
    %s2626 = scalar_lea.vmem %s15, 1
    %v2627 = vld [vmem:[%s2626] sm:$0x1]
    %s2628 = scalar_lea.vmem %s16, 1
    %v2629 = vld [vmem:[%s2628] sm:$0x1]
    %2630 = vadd.xlane.f32.xlu0 %v2624
    %v2631 = vpop.xlane.xlu0 %2630
    %2632 = vadd.xlane.f32.xlu0 %v2625
    %v2633 = vpop.xlane.xlu0 %2632
    %v2634 = vmul.f32 %v2631, %v162
    %v2635 = vmul.f32 %v2633, %v162
    %v2636 = vsub.f32 %v2624, %v2634
    %v2637 = vsub.f32 %v2625, %v2635
    %v2638 = vmul.f32 %v2636, %v2636
    %v2639 = vmul.f32 %v2637, %v2637
    %2640 = vadd.xlane.f32.xlu0 %v2638
    %v2641 = vpop.xlane.xlu0 %2640
    %2642 = vadd.xlane.f32.xlu0 %v2639
    %v2643 = vpop.xlane.xlu0 %2642
    %v2644 = vmul.f32 %v2641, %v162
    %v2645 = vmul.f32 %v2643, %v162
    %v2646 = vadd.f32 %v2644, 1e-05
    %v2647 = vadd.f32 %v2645, 1e-05
    %v2648 = vrsqrt.pop %v2646
    %v2649 = vmul.f32 %v2648, %v2646
    %v2650 = vmul.f32 %v2649, %v2648
    %v2651 = vmul.f32 0.5, %v2650
    %v2652 = vsub.f32 1.5, %v2651
    %v2653 = vmul.f32 %v2648, %v2652
    %vm2654 = vweird.f32 %v2646
    %vm2655 = vweird.f32 %v2648
    %vm2656 = vmor %vm2654, %vm2655
    %v2657 = vsel %vm2656, %v2648, %v2653
    %v2658 = vrsqrt.pop %v2647
    %v2659 = vmul.f32 %v2658, %v2647
    %v2660 = vmul.f32 %v2659, %v2658
    %v2661 = vmul.f32 0.5, %v2660
    %v2662 = vsub.f32 1.5, %v2661
    %v2663 = vmul.f32 %v2658, %v2662
    %vm2664 = vweird.f32 %v2647
    %vm2665 = vweird.f32 %v2658
    %vm2666 = vmor %vm2664, %vm2665
    %v2667 = vsel %vm2666, %v2658, %v2663
    %v2668 = vmul.f32 %v2636, %v2657
    %v2669 = vmul.f32 %v2637, %v2667
    %v2671 = vperm.slane %v2627, 0
    %v2673 = vmul.f32 %v2668, %v2671
    %v2674 = vmul.f32 %v2669, %v2671
    %v2676 = vperm.slane %v2629, 0
    %v2678 = vadd.f32 %v2673, %v2676
    %v2679 = vadd.f32 %v2674, %v2676
    %v2680 = vpack.c.bf16 %v2678, %v2678
    %v2681 = vpack.c.bf16 %v2679, %v2679
    %v2682 = vld [vmem:[#allocation8] sm:$0xf]
    %v2683 = vld [vmem:[#allocation8 + $0x4] sm:$0xf]
    %v2684 = vld [vmem:[#allocation8 + $0x8] sm:$0xf]
    %v2685 = vld [vmem:[#allocation8 + $0xc] sm:$0xf]
    %v2686 = vld [vmem:[#allocation8 + $0x10] sm:$0xf]
    %v2687 = vld [vmem:[#allocation8 + $0x14] sm:$0xf]
    %v2688 = vld [vmem:[#allocation8 + $0x18] sm:$0xf]
    %v2689 = vld [vmem:[#allocation8 + $0x1c] sm:$0xf]
    %v2690 = vld [vmem:[#allocation8 + $0x20] sm:$0xf]
    %v2691 = vld [vmem:[#allocation8 + $0x24] sm:$0xf]
    %v2692 = vld [vmem:[#allocation8 + $0x28] sm:$0xf]
    %v2693 = vld [vmem:[#allocation8 + $0x2c] sm:$0xf]
    %v2694 = vld [vmem:[#allocation8 + $0x30] sm:$0xf]
    %v2695 = vld [vmem:[#allocation8 + $0x34] sm:$0xf]
    %v2696 = vld [vmem:[#allocation8 + $0x38] sm:$0xf]
    %v2697 = vld [vmem:[#allocation8 + $0x3c] sm:$0xf]
    %v2698 = vld [vmem:[%s18] sm:$0x1]
    %v2700 = vperm.slane %v2698, 0
    %v2704 = vunpack.c.l.b16 %v2680
    %v2705 = vunpack.c.l.b16 %v2681
    %v2706 = vrot.slane %v2705, 7
    %vm2707 = vcmask 1041409
    %v2708 = vsel %vm2707, %v2706, %v2704
    %v2709 = vpack.c.b16 %v2708, %v2708
    %v2727 = vunpack.c.l.b16 %v2682
    %v2728 = vunpack.c.l.b16 %v2683
    %v2729 = vunpack.c.l.b16 %v2684
    %v2730 = vunpack.c.l.b16 %v2685
    %v2731 = vunpack.c.l.b16 %v2686
    %v2732 = vunpack.c.l.b16 %v2687
    %v2733 = vunpack.c.l.b16 %v2688
    %v2734 = vunpack.c.l.b16 %v2689
    %v2735 = vunpack.c.l.b16 %v2690
    %v2736 = vunpack.c.l.b16 %v2691
    %v2737 = vunpack.c.l.b16 %v2692
    %v2738 = vunpack.c.l.b16 %v2693
    %v2739 = vunpack.c.l.b16 %v2694
    %v2740 = vunpack.c.l.b16 %v2695
    %v2741 = vunpack.c.l.b16 %v2696
    %v2742 = vunpack.c.l.b16 %v2697
    %v2743 = vpack.c.b16 %v2728, %v2727
    %v2744 = vpack.c.b16 %v2730, %v2729
    %v2745 = vpack.c.b16 %v2732, %v2731
    %v2746 = vpack.c.b16 %v2734, %v2733
    %v2747 = vpack.c.b16 %v2736, %v2735
    %v2748 = vpack.c.b16 %v2738, %v2737
    %v2749 = vpack.c.b16 %v2740, %v2739
    %v2750 = vpack.c.b16 %v2742, %v2741
    %2759 = vmatpush.bf16.msra.mxu0 %v2750
    %2760 = vmatpush.bf16.msra.mxu0 %v2749
    %2761 = vmatpush.bf16.msra.mxu0 %v2748
    %2762 = vmatpush.bf16.msra.mxu0 %v2747
    %2763 = vmatpush.bf16.msra.mxu0 %v2746
    %2764 = vmatpush.bf16.msra.mxu0 %v2745
    %2765 = vmatpush.bf16.msra.mxu0 %v2744
    %2766 = vmatpush.bf16.msra.mxu0 %v2743
    %2767 = vmatmul.bf16.gmra.mxu0 %v2709
    %v2768 = vpop.f32.mrf.mxu0
    %v2769 = vadd.f32 %v2700, %v2768
    %v2770 = vpop.f32.mrf.mxu0
    %2771 = vdwg.mxu0
    %v2772 = vmax.f32 %v2769, 0.0
    %v2773 = vld [vmem:[%s2] sm:$0x3]
    %v2774 = vmul.f32 %v2772, %v2773
    %v2775 = vpack.c.bf16 %v2774, %v2774
    %v2776 = vld [vmem:[#allocation10] sm:$0xf]
    %v2777 = vld [vmem:[#allocation10 + $0x4] sm:$0xf]
    %v2778 = vld [vmem:[#allocation10 + $0x8] sm:$0xf]
    %v2779 = vld [vmem:[#allocation10 + $0xc] sm:$0xf]
    %v2780 = vld [vmem:[#allocation10 + $0x10] sm:$0xf]
    %v2781 = vld [vmem:[#allocation10 + $0x14] sm:$0xf]
    %v2782 = vld [vmem:[#allocation10 + $0x18] sm:$0xf]
    %v2783 = vld [vmem:[#allocation10 + $0x1c] sm:$0xf]
    %v2784 = vld [vmem:[#allocation10 + $0x20] sm:$0xf]
    %v2785 = vld [vmem:[#allocation10 + $0x24] sm:$0xf]
    %v2786 = vld [vmem:[#allocation10 + $0x28] sm:$0xf]
    %v2787 = vld [vmem:[#allocation10 + $0x2c] sm:$0xf]
    %v2788 = vld [vmem:[#allocation10 + $0x30] sm:$0xf]
    %v2789 = vld [vmem:[#allocation10 + $0x34] sm:$0xf]
    %v2790 = vld [vmem:[#allocation10 + $0x38] sm:$0xf]
    %v2791 = vld [vmem:[#allocation10 + $0x3c] sm:$0xf]
    %v2792 = vld [vmem:[%s20] sm:$0x1]
    %v2794 = vperm.slane %v2792, 0
    %v2812 = vunpack.c.l.b16 %v2776
    %v2813 = vunpack.c.l.b16 %v2777
    %v2814 = vunpack.c.l.b16 %v2778
    %v2815 = vunpack.c.l.b16 %v2779
    %v2816 = vunpack.c.l.b16 %v2780
    %v2817 = vunpack.c.l.b16 %v2781
    %v2818 = vunpack.c.l.b16 %v2782
    %v2819 = vunpack.c.l.b16 %v2783
    %v2820 = vunpack.c.l.b16 %v2784
    %v2821 = vunpack.c.l.b16 %v2785
    %v2822 = vunpack.c.l.b16 %v2786
    %v2823 = vunpack.c.l.b16 %v2787
    %v2824 = vunpack.c.l.b16 %v2788
    %v2825 = vunpack.c.l.b16 %v2789
    %v2826 = vunpack.c.l.b16 %v2790
    %v2827 = vunpack.c.l.b16 %v2791
    %v2828 = vpack.c.b16 %v2813, %v2812
    %v2829 = vpack.c.b16 %v2815, %v2814
    %v2830 = vpack.c.b16 %v2817, %v2816
    %v2831 = vpack.c.b16 %v2819, %v2818
    %v2832 = vpack.c.b16 %v2821, %v2820
    %v2833 = vpack.c.b16 %v2823, %v2822
    %v2834 = vpack.c.b16 %v2825, %v2824
    %v2835 = vpack.c.b16 %v2827, %v2826
    %2844 = vmatpush.bf16.msra.mxu0 %v2835
    %2845 = vmatpush.bf16.msra.mxu0 %v2834
    %2846 = vmatpush.bf16.msra.mxu0 %v2833
    %2847 = vmatpush.bf16.msra.mxu0 %v2832
    %2848 = vmatpush.bf16.msra.mxu0 %v2831
    %2849 = vmatpush.bf16.msra.mxu0 %v2830
    %2850 = vmatpush.bf16.msra.mxu0 %v2829
    %2851 = vmatpush.bf16.msra.mxu0 %v2828
    %2852 = vmatmul.bf16.gmra.mxu0 %v2775
    %v2853 = vpop.f32.mrf.mxu0
    %v2854 = vadd.f32 %v2794, %v2853
    %v2855 = vpop.f32.mrf.mxu0
    %2856 = vdwg.mxu0
    %2857 = vst [vmem:[#allocation11] sm:$0x3] %v2854
    // Predicated region
    $region106: #{roberta_class_forward.1} parent=1 // pred_check
      _
    $region107: #{roberta_class_forward.1} parent=1 // pred_check_branch
      %2859 = sbr.rel (0) target = $region109
    $region108: #{roberta_class_forward.1} parent=1 // pred_region
      %2861 = vsyncadd [#allocation4], 0
      %s2863 = sshll.u32 [#allocation11], 4
      %s2864 = int_to_ptr.vmem [resolvable:$true] %s2863
      %s2865 = sshll.u32 %s21, 4
      %s2866 = int_to_ptr.hbm [resolvable:$true] %s2865
      %2868 = dma.vmem_to_hbm [thread:$0]  %s2864, 32, %s2866, [#allocation4]
    $region109: #{roberta_class_forward.1} parent=1 // pred_fallthru
      _
    // Predicated region
    $region110: #{roberta_class_forward.1} parent=1 // pred_check
      _
    $region111: #{roberta_class_forward.1} parent=1 // pred_check_branch
      %2870 = sbr.rel (0) target = $region113
    $region112: #{roberta_class_forward.1} parent=1 // pred_region
      %2872 = dma.done [#allocation4], 32
    $region113: #{roberta_class_forward.1} parent=1 // pred_fallthru
      _
    %2873 = vsyncpa [#allocation3], 1
    %2874 = vsyncpa [#allocation6], 1
    %2875 = vsyncpa [#allocation9], 1
    %2876 = vsyncpa [#allocation4], 1

</llo_original>
